<compile_context>
chip_gen: v7x
topology: tpu7x:2x2x1
jax: 0.10.0
libtpu: 0.0.40
codegen_flags: <defaults>
</compile_context>

<pallas_src>
import functools

import jax
import jax.numpy as jnp
from jax import lax
from jax.experimental import pallas as pl
from jax.experimental.pallas import tpu as pltpu

NEG_FILL = -1e20  # matches torch masked_fill(mask == 0, float('-1e20'))


def _round_up(x, m):
    return ((x + m - 1) // m) * m


# ---------------------------------------------------------------------------
# Kernel 1: tiled matmul (+bias, +optional ReLU) with f32 accumulator
# ---------------------------------------------------------------------------

def _matmul_kernel(x_ref, w_ref, b_ref, o_ref, acc_ref, *, activation):
    @pl.when(pl.program_id(2) == 0)
    def _():
        acc_ref[...] = jnp.zeros_like(acc_ref)

    acc_ref[...] += jnp.dot(x_ref[...], w_ref[...],
                            preferred_element_type=jnp.float32)

    @pl.when(pl.program_id(2) == pl.num_programs(2) - 1)
    def _():
        y = acc_ref[...] + b_ref[...].astype(jnp.float32)
        if activation == "relu":
            y = jnp.maximum(y, 0.0)
        o_ref[...] = y.astype(o_ref.dtype)


def pallas_linear(x, w, b=None, activation=None, tm=256, tn=256, tk=512):
    """y = x @ w + b (optional ReLU).  x:(M,K) w:(K,Nout) b:(Nout,)."""
    M, K = x.shape
    Nout = w.shape[1]
    if b is None:
        b = jnp.zeros((Nout,), x.dtype)

    # Clamp tiles to the (padded) problem; keep lane dims multiples of 128.
    tm = min(tm, _round_up(M, 8))
    tn = min(tn, _round_up(Nout, 128))
    tk = min(tk, _round_up(K, 128))
    Mp, Kp, Np = _round_up(M, tm), _round_up(K, tk), _round_up(Nout, tn)

    xp = jnp.pad(x, ((0, Mp - M), (0, Kp - K)))
    wp = jnp.pad(w, ((0, Kp - K), (0, Np - Nout)))
    bp = jnp.pad(b, (0, Np - Nout)).reshape(1, Np).astype(x.dtype)

    out = pl.pallas_call(
        functools.partial(_matmul_kernel, activation=activation),
        out_shape=jax.ShapeDtypeStruct((Mp, Np), x.dtype),
        grid=(Mp // tm, Np // tn, Kp // tk),
        in_specs=[
            pl.BlockSpec((tm, tk), lambda i, j, k: (i, k)),
            pl.BlockSpec((tk, tn), lambda i, j, k: (k, j)),
            pl.BlockSpec((1, tn), lambda i, j, k: (0, j)),
        ],
        out_specs=pl.BlockSpec((tm, tn), lambda i, j, k: (i, j)),
        scratch_shapes=[pltpu.VMEM((tm, tn), jnp.float32)],
        compiler_params=pltpu.CompilerParams(
            dimension_semantics=("parallel", "parallel", "arbitrary")),
    )(xp, wp, bp)
    return out[:M, :Nout]


# ---------------------------------------------------------------------------
# Kernel 2: flash-attention core, heads batched, in-kernel mask generation.
# Inputs / outputs stay in head-concatenated (N, L, E) layout.
# ---------------------------------------------------------------------------

def _flash_attn_kernel(q_ref, k_ref, v_ref, kvm_ref, o_ref,
                       m_sc, l_sc, acc_sc, *, scale, causal, lk,
                       tq, tk, heads, head_dim):
    qi = pl.program_id(1)
    ki = pl.program_id(2)

    @pl.when(ki == 0)
    def _():
        m_sc[...] = jnp.full_like(m_sc, -jnp.inf)
        l_sc[...] = jnp.zeros_like(l_sc)
        acc_sc[...] = jnp.zeros_like(acc_sc)

    def compute():
        # masks generated in-kernel: key padding + optional causal + k-bounds.
        k_idx = ki * tk + lax.broadcasted_iota(jnp.int32, (tq, tk), 1)
        allow = (k_idx < lk) & (kvm_ref[0] != 0.0)          # (tq,tk)&(1,tk)
        if causal:
            q_idx = qi * tq + lax.broadcasted_iota(jnp.int32, (tq, tk), 0)
            allow = allow & (k_idx <= q_idx)

        for h in range(heads):
            lo = h * head_dim
            hi = lo + head_dim
            qh = q_ref[0, :, lo:hi].astype(jnp.float32)     # (tq, D)
            kh = k_ref[0, :, lo:hi].astype(jnp.float32)     # (tk, D)
            vh = v_ref[0, :, lo:hi].astype(jnp.float32)     # (tk, D)

            s = lax.dot_general(qh, kh, (((1,), (1,)), ((), ())),
                                preferred_element_type=jnp.float32)  # (tq,tk)
            # masked_fill BEFORE scaling, like the PyTorch reference.
            s = jnp.where(allow, s, NEG_FILL) * scale

            m_prev = m_sc[h]                                 # (tq, 1)
            m_new = jnp.maximum(m_prev, jnp.max(s, axis=-1, keepdims=True))
            alpha = jnp.exp(m_prev - m_new)
            p = jnp.exp(s - m_new)
            l_sc[h] = alpha * l_sc[h] + jnp.sum(p, axis=-1, keepdims=True)
            acc_sc[h] = alpha * acc_sc[h] + jnp.dot(
                p, vh, preferred_element_type=jnp.float32)
            m_sc[h] = m_new

    if causal:
        # Skip key blocks entirely above the diagonal.
        pl.when(ki * tk <= qi * tq + (tq - 1))(compute)
    else:
        compute()

    @pl.when(ki == pl.num_programs(2) - 1)
    def _():
        parts = []
        for h in range(heads):
            inv_l = pl.reciprocal(l_sc[h], approx=True)      # (tq, 1)
            parts.append(acc_sc[h] * inv_l)                  # (tq, D)
        o = parts[0] if heads == 1 else jnp.concatenate(parts, axis=-1)
        o_ref[0] = o.astype(o_ref.dtype)                     # lane-dense (tq, E)


def pallas_flash_attention(q, k, v, kv_mask, *, scale, causal, heads):
    # q:(N,Lq,E) k,v:(N,Lk,E) head-concat layout; kv_mask:(N,Lk) float 0/1.
    N, Lq, E = q.shape
    Lk = k.shape[1]
    assert E % heads == 0
    D = E // heads
    tq = Lq if Lq <= 128 else 128
    tk = Lk if Lk <= 128 else 128
    nq, nk = pl.cdiv(Lq, tq), pl.cdiv(Lk, tk)
    kvm = kv_mask.astype(jnp.float32).reshape(N, 1, Lk)

    return pl.pallas_call(
        functools.partial(_flash_attn_kernel, scale=scale, causal=causal,
                          lk=Lk, tq=tq, tk=tk, heads=heads, head_dim=D),
        out_shape=jax.ShapeDtypeStruct((N, Lq, E), q.dtype),
        grid=(N, nq, nk),
        in_specs=[
            pl.BlockSpec((1, tq, E), lambda n, qi, ki: (n, qi, 0)),
            pl.BlockSpec((1, tk, E), lambda n, qi, ki: (n, ki, 0)),
            pl.BlockSpec((1, tk, E), lambda n, qi, ki: (n, ki, 0)),
            pl.BlockSpec((1, 1, tk), lambda n, qi, ki: (n, 0, ki)),
        ],
        out_specs=pl.BlockSpec((1, tq, E), lambda n, qi, ki: (n, qi, 0)),
        scratch_shapes=[pltpu.VMEM((heads, tq, 1), jnp.float32),
                        pltpu.VMEM((heads, tq, 1), jnp.float32),
                        pltpu.VMEM((heads, tq, D), jnp.float32)],
        compiler_params=pltpu.CompilerParams(
            dimension_semantics=("parallel", "parallel", "arbitrary")),
    )(q, k, v, kvm)


# ---------------------------------------------------------------------------
# Kernel 3: residual add + LayerNorm (tiled over rows) — fallback building block
# ---------------------------------------------------------------------------

def _add_ln_kernel(a_ref, b_ref, g_ref, beta_ref, o_ref, *, eps):
    x = a_ref[...].astype(jnp.float32) + b_ref[...].astype(jnp.float32)
    mean = jnp.mean(x, axis=-1, keepdims=True)
    xc = x - mean
    var = jnp.mean(xc * xc, axis=-1, keepdims=True)
    y = xc * lax.rsqrt(var + eps) * g_ref[...].astype(jnp.float32) \
        + beta_ref[...].astype(jnp.float32)
    o_ref[...] = y.astype(o_ref.dtype)


def pallas_add_layernorm(a, b, gamma, beta, eps=1e-5):
    M, E = a.shape
    tm = min(256, _round_up(M, 8))
    Mp = _round_up(M, tm)
    ap = jnp.pad(a, ((0, Mp - M), (0, 0)))
    bp = jnp.pad(b, ((0, Mp - M), (0, 0)))
    g2 = gamma.reshape(1, E).astype(jnp.float32)
    b2 = beta.reshape(1, E).astype(jnp.float32)

    out = pl.pallas_call(
        functools.partial(_add_ln_kernel, eps=eps),
        out_shape=jax.ShapeDtypeStruct((Mp, E), a.dtype),
        grid=(Mp // tm,),
        in_specs=[
            pl.BlockSpec((tm, E), lambda i: (i, 0)),
            pl.BlockSpec((tm, E), lambda i: (i, 0)),
            pl.BlockSpec((1, E), lambda i: (0, 0)),
            pl.BlockSpec((1, E), lambda i: (0, 0)),
        ],
        out_specs=pl.BlockSpec((tm, E), lambda i: (i, 0)),
        compiler_params=pltpu.CompilerParams(dimension_semantics=("parallel",)),
    )(ap, bp, g2, b2)
    return out[:M]


# ---------------------------------------------------------------------------
# Kernel 4: fused attention-output projection + residual + LayerNorm
# ---------------------------------------------------------------------------

def _proj_add_ln_kernel(x_ref, w_ref, b_ref, r_ref, g_ref, beta_ref, o_ref, *, eps):
    x = x_ref[...].astype(jnp.float32)
    y = jnp.dot(x, w_ref[...], preferred_element_type=jnp.float32) \
        + b_ref[...].astype(jnp.float32)
    y = y + r_ref[...].astype(jnp.float32)          # residual
    mean = jnp.mean(y, axis=-1, keepdims=True)
    yc = y - mean
    var = jnp.mean(yc * yc, axis=-1, keepdims=True)
    out = yc * lax.rsqrt(var + eps) * g_ref[...].astype(jnp.float32) \
        + beta_ref[...].astype(jnp.float32)
    o_ref[...] = out.astype(o_ref.dtype)


def pallas_proj_add_layernorm(x, w, b, res, gamma, beta, eps=1e-5):
    """LayerNorm( x @ w + b + res ) — fc_out fused with residual + LN."""
    M, E = x.shape
    Eout = w.shape[1]
    # Un-tiled, double-buffered weight must fit comfortably in scoped VMEM
    # (v7x has the smallest budget); otherwise fall back to tiled kernels.
    if 2 * 2 * 4 * E * Eout > 8 * 1024 * 1024:
        y = pallas_linear(x, w, b)
        return pallas_add_layernorm(y, res, gamma, beta, eps)

    tm = min(256, _round_up(M, 8))
    Mp = _round_up(M, tm)
    xp = jnp.pad(x, ((0, Mp - M), (0, 0)))
    rp = jnp.pad(res, ((0, Mp - M), (0, 0)))
    b2 = b.reshape(1, Eout).astype(jnp.float32)
    g2 = gamma.reshape(1, Eout).astype(jnp.float32)
    bt2 = beta.reshape(1, Eout).astype(jnp.float32)

    out = pl.pallas_call(
        functools.partial(_proj_add_ln_kernel, eps=eps),
        out_shape=jax.ShapeDtypeStruct((Mp, Eout), x.dtype),
        grid=(Mp // tm,),
        in_specs=[
            pl.BlockSpec((tm, E), lambda i: (i, 0)),
            pl.BlockSpec((E, Eout), lambda i: (0, 0)),
            pl.BlockSpec((1, Eout), lambda i: (0, 0)),
            pl.BlockSpec((tm, Eout), lambda i: (i, 0)),
            pl.BlockSpec((1, Eout), lambda i: (0, 0)),
            pl.BlockSpec((1, Eout), lambda i: (0, 0)),
        ],
        out_specs=pl.BlockSpec((tm, Eout), lambda i: (i, 0)),
        compiler_params=pltpu.CompilerParams(dimension_semantics=("parallel",)),
    )(xp, w, b2, rp, g2, bt2)
    return out[:M]


# ---------------------------------------------------------------------------
# Kernel 5: fused FFN (linear+ReLU+linear) + residual + LayerNorm
# ---------------------------------------------------------------------------

def _ffn_ln_kernel(x_ref, w1_ref, b1_ref, w2_ref, b2_ref, g_ref, beta_ref,
                   o_ref, *, eps):
    x = x_ref[...].astype(jnp.float32)
    h = jnp.dot(x, w1_ref[...], preferred_element_type=jnp.float32) \
        + b1_ref[...].astype(jnp.float32)
    h = jnp.maximum(h, 0.0)
    f = jnp.dot(h, w2_ref[...], preferred_element_type=jnp.float32) \
        + b2_ref[...].astype(jnp.float32)
    y = f + x                                   # residual
    mean = jnp.mean(y, axis=-1, keepdims=True)
    yc = y - mean
    var = jnp.mean(yc * yc, axis=-1, keepdims=True)
    out = yc * lax.rsqrt(var + eps) * g_ref[...].astype(jnp.float32) \
        + beta_ref[...].astype(jnp.float32)
    o_ref[...] = out.astype(o_ref.dtype)


def pallas_ffn_block(x, w1, b1, w2, b2, gamma, beta, eps=1e-5):
    """LayerNorm( relu(x@w1+b1) @ w2 + b2 + x )  — hidden stays in VMEM."""
    M, E = x.shape
    F = w1.shape[1]
    if 2 * 2 * 4 * E * F > 8 * 1024 * 1024:
        # TODO(synk): K-tiled fused FFN for very wide models.
        h = pallas_linear(x, w1, b1, activation="relu")
        f = pallas_linear(h, w2, b2)
        return pallas_add_layernorm(f, x, gamma, beta, eps)

    tm = min(256, _round_up(M, 8))
    Mp = _round_up(M, tm)
    xp = jnp.pad(x, ((0, Mp - M), (0, 0)))
    b1p = b1.reshape(1, F).astype(jnp.float32)
    b2p = b2.reshape(1, E).astype(jnp.float32)
    g2 = gamma.reshape(1, E).astype(jnp.float32)
    bt2 = beta.reshape(1, E).astype(jnp.float32)

    out = pl.pallas_call(
        functools.partial(_ffn_ln_kernel, eps=eps),
        out_shape=jax.ShapeDtypeStruct((Mp, E), x.dtype),
        grid=(Mp // tm,),
        in_specs=[
            pl.BlockSpec((tm, E), lambda i: (i, 0)),
            pl.BlockSpec((E, F), lambda i: (0, 0)),
            pl.BlockSpec((1, F), lambda i: (0, 0)),
            pl.BlockSpec((F, E), lambda i: (0, 0)),
            pl.BlockSpec((1, E), lambda i: (0, 0)),
            pl.BlockSpec((1, E), lambda i: (0, 0)),
            pl.BlockSpec((1, E), lambda i: (0, 0)),
        ],
        out_specs=pl.BlockSpec((tm, E), lambda i: (i, 0)),
        compiler_params=pltpu.CompilerParams(dimension_semantics=("parallel",)),
    )(xp, w1, b1p, w2, b2p, g2, bt2)
    return out[:M]


# ---------------------------------------------------------------------------
# Model forward (glue around the kernels)
# ---------------------------------------------------------------------------

def self_attention_core(p, values, keys, query, kv_mask, causal, heads,
                        embed_size):
    """Per-head projections + scaled-dot-product attention.
    Returns the head-concatenated output (N, Lq, E) BEFORE fc_out (which is
    fused with the following residual+LayerNorm)."""
    N, Lq, E = query.shape
    Lk = keys.shape[1]
    D = E // heads
    eye = jnp.eye(heads, dtype=jnp.float32)
    # per-head (D,D) weight shared across heads == block-diagonal (E,E) weight
    Wq = jnp.kron(eye, p["wq"])
    Wk = jnp.kron(eye, p["wk"])
    Wv = jnp.kron(eye, p["wv"])

    if (query is keys) and (keys is values):
        # fused Q/K/V projection: one (M,E) @ (E,3E) matmul
        qkv = pallas_linear(query.reshape(N * Lq, E),
                            jnp.concatenate([Wq, Wk, Wv], axis=1))
        qf = qkv[:, :E].reshape(N, Lq, E)
        kf = qkv[:, E:2 * E].reshape(N, Lq, E)
        vf = qkv[:, 2 * E:].reshape(N, Lq, E)
    else:
        qf = pallas_linear(query.reshape(N * Lq, E), Wq).reshape(N, Lq, E)
        if keys is values:
            kv = pallas_linear(keys.reshape(N * Lk, E),
                               jnp.concatenate([Wk, Wv], axis=1))
            kf = kv[:, :E].reshape(N, Lk, E)
            vf = kv[:, E:].reshape(N, Lk, E)
        else:
            Lv = values.shape[1]
            kf = pallas_linear(keys.reshape(N * Lk, E), Wk).reshape(N, Lk, E)
            vf = pallas_linear(values.reshape(N * Lv, E), Wv).reshape(N, Lv, E)

    scale = 1.0 / (embed_size ** 0.5)
    return pallas_flash_attention(qf, kf, vf, kv_mask, scale=scale,
                                  causal=causal, heads=heads)


def transformer_block(p, value, key, query, kv_mask, heads, embed_size):
    N, Lq, E = query.shape
    attn = self_attention_core(p["attn"], value, key, query, kv_mask, False,
                               heads, embed_size)
    # fc_out projection + residual(query) + LayerNorm fused into one kernel
    x = pallas_proj_add_layernorm(attn.reshape(N * Lq, E),
                                  p["attn"]["wo"], p["attn"]["bo"],
                                  query.reshape(N * Lq, E),
                                  p["ln1_g"], p["ln1_b"])
    out = pallas_ffn_block(x, p["ff1_w"], p["ff1_b"], p["ff2_w"], p["ff2_b"],
                           p["ln2_g"], p["ln2_b"])
    return out.reshape(N, Lq, E)


def decoder_block(p, x, value, key, src_kv_mask, heads, embed_size):
    N, L, E = x.shape
    causal_kv_mask = jnp.ones((N, L), jnp.float32)   # target mask is purely causal
    attn = self_attention_core(p["attn"], x, x, x, causal_kv_mask, True,
                               heads, embed_size)
    query = pallas_proj_add_layernorm(attn.reshape(N * L, E),
                                      p["attn"]["wo"], p["attn"]["bo"],
                                      x.reshape(N * L, E),
                                      p["ln_g"], p["ln_b"]).reshape(N, L, E)
    return transformer_block(p["tb"], value, key, query, src_kv_mask,
                             heads, embed_size)


def encoder_fwd(p, src, src_kv_mask, heads, embed_size):
    N, L = src.shape
    out = p["word_emb"][src] + p["pos_emb"][jnp.arange(L)][None, :, :]  # gather glue
    for lp in p["layers"]:
        out = transformer_block(lp, out, out, out, src_kv_mask, heads, embed_size)
    return out


def decoder_fwd(p, tgt, enc_out, src_kv_mask, heads, embed_size):
    N, L = tgt.shape
    x = p["word_emb"][tgt] + p["pos_emb"][jnp.arange(L)][None, :, :]
    for lp in p["layers"]:
        x = decoder_block(lp, x, enc_out, enc_out, src_kv_mask, heads, embed_size)
    out = pallas_linear(x.reshape(N * L, embed_size), p["fc_w"], p["fc_b"])
    return out.reshape(N, L, -1)


def transformer_fwd(params, src, target, src_pad_idx, tgt_pad_idx, heads,
                    embed_size):
    del tgt_pad_idx  # reference model only uses the causal target mask
    src_kv_mask = (src != src_pad_idx).astype(jnp.float32)   # (N, Ls) pad mask
    enc = encoder_fwd(params["encoder"], src, src_kv_mask, heads, embed_size)
    return decoder_fwd(params["decoder"], target, enc, src_kv_mask,
                       heads, embed_size)


# ---------------------------------------------------------------------------
# Deterministic parameter init (synthetic; weights stored as (in, out))
# ---------------------------------------------------------------------------

def init_params(key, src_vocab, tgt_vocab, embed_size, num_layers, heads,
                forward_expansion, max_len):
    D = embed_size // heads
    keys = iter(jax.random.split(key, 256))

    def nrm(shape, scale=0.02):
        return (scale * jax.random.normal(next(keys), shape)).astype(jnp.float32)

    def attn_params():
        return dict(wv=nrm((D, D)), wk=nrm((D, D)), wq=nrm((D, D)),
                    wo=nrm((embed_size, embed_size)),
                    bo=jnp.zeros((embed_size,), jnp.float32))

    def tb_params():
        F = forward_expansion * embed_size
        return dict(attn=attn_params(),
                    ln1_g=jnp.ones((embed_size,), jnp.float32),
                    ln1_b=jnp.zeros((embed_size,), jnp.float32),
                    ln2_g=jnp.ones((embed_size,), jnp.float32),
                    ln2_b=jnp.zeros((embed_size,), jnp.float32),
                    ff1_w=nrm((embed_size, F)), ff1_b=jnp.zeros((F,), jnp.float32),
                    ff2_w=nrm((F, embed_size)),
                    ff2_b=jnp.zeros((embed_size,), jnp.float32))

    def db_params():
        return dict(attn=attn_params(),
                    ln_g=jnp.ones((embed_size,), jnp.float32),
                    ln_b=jnp.zeros((embed_size,), jnp.float32),
                    tb=tb_params())

    encoder = dict(word_emb=nrm((src_vocab, embed_size), 1.0),
                   pos_emb=nrm((max_len, embed_size), 1.0),
                   layers=[tb_params() for _ in range(num_layers)])
    decoder = dict(word_emb=nrm((tgt_vocab, embed_size), 1.0),
                   pos_emb=nrm((max_len, embed_size), 1.0),
                   layers=[db_params() for _ in range(num_layers)],
                   fc_w=nrm((embed_size, tgt_vocab)),
                   fc_b=jnp.zeros((tgt_vocab,), jnp.float32))
    return dict(encoder=encoder, decoder=decoder)


# ---------------------------------------------------------------------------

if __name__ == "__main__":
    SRC_VOCAB, TGT_VOCAB = 50, 50
    SRC_PAD, TGT_PAD = 0, 0
    EMBED, LAYERS, HEADS, FEXP, MAX_LEN = 32, 2, 4, 4, 16
    N, L_SRC, L_TGT = 2, 8, 8

    root = jax.random.PRNGKey(0)
    k_par, k_src, k_tgt = jax.random.split(root, 3)

    params = init_params(k_par, SRC_VOCAB, TGT_VOCAB, EMBED, LAYERS, HEADS,
                         FEXP, MAX_LEN)

    src = jax.random.randint(k_src, (N, L_SRC), 1, SRC_VOCAB, dtype=jnp.int32)
    tgt = jax.random.randint(k_tgt, (N, L_TGT), 1, TGT_VOCAB, dtype=jnp.int32)
    # introduce a pad token so the src key-padding mask is exercised
    src = src.at[:, -1].set(SRC_PAD)

    fwd = jax.jit(functools.partial(transformer_fwd, src_pad_idx=SRC_PAD,
                                    tgt_pad_idx=TGT_PAD, heads=HEADS,
                                    embed_size=EMBED))
    out = fwd(params, src, tgt)
    out = jax.block_until_ready(out)

    assert out.shape == (N, L_TGT, TGT_VOCAB), out.shape
    assert bool(jnp.all(jnp.isfinite(out)))
    print("KERNEL_OK")
</pallas_src>

<mosaic_0001>
module attributes {stable_mosaic.version = 11 : i64} {
  func.func @_matmul_kernel(%arg0: i32, %arg1: i32, %arg2: i32, %arg3: memref<16x128xf32, #tpu.memory_space<vmem>>, %arg4: memref<128x128xf32, #tpu.memory_space<vmem>>, %arg5: memref<1x128xf32, #tpu.memory_space<vmem>>, %arg6: memref<16x128xf32, #tpu.memory_space<vmem>>, %arg7: memref<16x128xf32, #tpu.memory_space<vmem>>) attributes {dimension_semantics = [#tpu.dimension_semantics<parallel>, #tpu.dimension_semantics<parallel>, #tpu.dimension_semantics<arbitrary>], iteration_bounds = array<i64: 1, 1, 1>, scalar_prefetch = 0 : i64, scratch_operands = 1 : i64, tpu.core_type = #tpu.core_type<tc>, window_params = [{transform_indices = @transform_0, window_bounds = array<i64: 16, 128>}, {transform_indices = @transform_1, window_bounds = array<i64: 128, 128>}, {transform_indices = @transform_2, window_bounds = array<i64: 1, 128>}, {transform_indices = @transform_3, window_bounds = array<i64: 16, 128>}]} {
    %c0_i32 = arith.constant 0 : i32
    %0 = arith.cmpi eq, %arg2, %c0_i32 : i32
    %1 = arith.extui %0 : i1 to i32
    %c0_i32_0 = arith.constant 0 : i32
    %2 = arith.cmpi ne, %1, %c0_i32_0 : i32
    scf.if %2 {
      %cst_10 = arith.constant 0.000000e+00 : f32
      %12 = vector.broadcast %cst_10 : f32 to vector<16x128xf32>
      %c0_11 = arith.constant 0 : index
      %c0_12 = arith.constant 0 : index
      %13 = vector.load %arg7[%c0_11, %c0_12] : memref<16x128xf32, #tpu.memory_space<vmem>>, vector<16x128xf32>
      tpu.vector_store %arg7[%c0_11, %c0_12], %12 {strides = array<i32>} : memref<16x128xf32, #tpu.memory_space<vmem>>, vector<16x128xf32>,
    } else {
    }
    %c0 = arith.constant 0 : index
    %c0_1 = arith.constant 0 : index
    %3 = vector.load %arg7[%c0, %c0_1] : memref<16x128xf32, #tpu.memory_space<vmem>>, vector<16x128xf32>
    %c0_2 = arith.constant 0 : index
    %c0_3 = arith.constant 0 : index
    %4 = vector.load %arg3[%c0_2, %c0_3] : memref<16x128xf32, #tpu.memory_space<vmem>>, vector<16x128xf32>
    %c0_4 = arith.constant 0 : index
    %c0_5 = arith.constant 0 : index
    %5 = vector.load %arg4[%c0_4, %c0_5] : memref<128x128xf32, #tpu.memory_space<vmem>>, vector<128x128xf32>
    %cst = arith.constant dense<0.000000e+00> : vector<16x128xf32>
    %6 = tpu.matmul %4, %5, %cst {dimension_numbers = #tpu.dot_dimension_numbers<[1], [0], [0], [1], [0, 0, 1, 1], [], []>} : vector<16x128xf32>, vector<128x128xf32>, vector<16x128xf32> -> vector<16x128xf32>
    %7 = arith.addf %3, %6 : vector<16x128xf32>
    %c0_6 = arith.constant 0 : index
    %c0_7 = arith.constant 0 : index
    %8 = vector.load %arg7[%c0_6, %c0_7] : memref<16x128xf32, #tpu.memory_space<vmem>>, vector<16x128xf32>
    tpu.vector_store %arg7[%c0_6, %c0_7], %7 {strides = array<i32>} : memref<16x128xf32, #tpu.memory_space<vmem>>, vector<16x128xf32>,
    %c0_i32_8 = arith.constant 0 : i32
    %9 = arith.cmpi eq, %arg2, %c0_i32_8 : i32
    %10 = arith.extui %9 : i1 to i32
    %c0_i32_9 = arith.constant 0 : i32
    %11 = arith.cmpi ne, %10, %c0_i32_9 : i32
    scf.if %11 {
      %c0_10 = arith.constant 0 : index
      %c0_11 = arith.constant 0 : index
      %12 = vector.load %arg7[%c0_10, %c0_11] : memref<16x128xf32, #tpu.memory_space<vmem>>, vector<16x128xf32>
      %c0_12 = arith.constant 0 : index
      %c0_13 = arith.constant 0 : index
      %13 = vector.load %arg5[%c0_12, %c0_13] : memref<1x128xf32, #tpu.memory_space<vmem>>, vector<1x128xf32>
      %14 = vector.broadcast %13 : vector<1x128xf32> to vector<16x128xf32>
      %15 = arith.addf %12, %14 : vector<16x128xf32>
      %c0_14 = arith.constant 0 : index
      %c0_15 = arith.constant 0 : index
      %16 = vector.load %arg6[%c0_14, %c0_15] : memref<16x128xf32, #tpu.memory_space<vmem>>, vector<16x128xf32>
      tpu.vector_store %arg6[%c0_14, %c0_15], %15 {strides = array<i32>} : memref<16x128xf32, #tpu.memory_space<vmem>>, vector<16x128xf32>,
    } else {
    }
    return
  }
  func.func @transform_0(%arg0: i32, %arg1: i32, %arg2: i32) -> (i32, i32) {
    %c0_i32 = arith.constant 0 : i32
    return %arg0, %arg2 : i32, i32
  }
  func.func @transform_1(%arg0: i32, %arg1: i32, %arg2: i32) -> (i32, i32) {
    %c0_i32 = arith.constant 0 : i32
    return %arg2, %arg1 : i32, i32
  }
  func.func @transform_2(%arg0: i32, %arg1: i32, %arg2: i32) -> (i32, i32) {
    %c0_i32 = arith.constant 0 : i32
    %c0_i32_0 = arith.constant 0 : i32
    return %c0_i32, %arg1 : i32, i32
  }
  func.func @transform_3(%arg0: i32, %arg1: i32, %arg2: i32) -> (i32, i32) {
    %c0_i32 = arith.constant 0 : i32
    return %arg0, %arg1 : i32, i32
  }
}

module attributes {stable_mosaic.version = 11 : i64} {
  func.func @_ffn_ln_kernel(%arg0: i32, %arg1: memref<16x32xf32, #tpu.memory_space<vmem>>, %arg2: memref<32x128xf32, #tpu.memory_space<vmem>>, %arg3: memref<1x128xf32, #tpu.memory_space<vmem>>, %arg4: memref<128x32xf32, #tpu.memory_space<vmem>>, %arg5: memref<1x32xf32, #tpu.memory_space<vmem>>, %arg6: memref<1x32xf32, #tpu.memory_space<vmem>>, %arg7: memref<1x32xf32, #tpu.memory_space<vmem>>, %arg8: memref<16x32xf32, #tpu.memory_space<vmem>>) attributes {dimension_semantics = [#tpu.dimension_semantics<parallel>], iteration_bounds = array<i64: 1>, scalar_prefetch = 0 : i64, scratch_operands = 0 : i64, tpu.core_type = #tpu.core_type<tc>, window_params = [{transform_indices = @transform_0, window_bounds = array<i64: 16, 32>}, {pipeline_mode = #tpu.pipeline_mode<synchronous>, transform_indices = @transform_1, window_bounds = array<i64: 32, 128>}, {pipeline_mode = #tpu.pipeline_mode<synchronous>, transform_indices = @transform_2, window_bounds = array<i64: 1, 128>}, {pipeline_mode = #tpu.pipeline_mode<synchronous>, transform_indices = @transform_3, window_bounds = array<i64: 128, 32>}, {pipeline_mode = #tpu.pipeline_mode<synchronous>, transform_indices = @transform_4, window_bounds = array<i64: 1, 32>}, {pipeline_mode = #tpu.pipeline_mode<synchronous>, transform_indices = @transform_5, window_bounds = array<i64: 1, 32>}, {pipeline_mode = #tpu.pipeline_mode<synchronous>, transform_indices = @transform_6, window_bounds = array<i64: 1, 32>}, {transform_indices = @transform_7, window_bounds = array<i64: 16, 32>}]} {
    %c0 = arith.constant 0 : index
    %c0_0 = arith.constant 0 : index
    %0 = vector.load %arg1[%c0, %c0_0] : memref<16x32xf32, #tpu.memory_space<vmem>>, vector<16x32xf32>
    %c0_1 = arith.constant 0 : index
    %c0_2 = arith.constant 0 : index
    %1 = vector.load %arg2[%c0_1, %c0_2] : memref<32x128xf32, #tpu.memory_space<vmem>>, vector<32x128xf32>
    %cst = arith.constant dense<0.000000e+00> : vector<16x128xf32>
    %2 = tpu.matmul %0, %1, %cst {dimension_numbers = #tpu.dot_dimension_numbers<[1], [0], [0], [1], [0, 0, 1, 1], [], []>} : vector<16x32xf32>, vector<32x128xf32>, vector<16x128xf32> -> vector<16x128xf32>
    %c0_3 = arith.constant 0 : index
    %c0_4 = arith.constant 0 : index
    %3 = vector.load %arg3[%c0_3, %c0_4] : memref<1x128xf32, #tpu.memory_space<vmem>>, vector<1x128xf32>
    %4 = vector.broadcast %3 : vector<1x128xf32> to vector<16x128xf32>
    %5 = arith.addf %2, %4 : vector<16x128xf32>
    %cst_5 = arith.constant 0.000000e+00 : f32
    %6 = vector.broadcast %cst_5 : f32 to vector<16x128xf32>
    %7 = arith.maximumf %5, %6 : vector<16x128xf32>
    %c0_6 = arith.constant 0 : index
    %c0_7 = arith.constant 0 : index
    %8 = vector.load %arg4[%c0_6, %c0_7] : memref<128x32xf32, #tpu.memory_space<vmem>>, vector<128x32xf32>
    %cst_8 = arith.constant dense<0.000000e+00> : vector<16x32xf32>
    %9 = tpu.matmul %7, %8, %cst_8 {dimension_numbers = #tpu.dot_dimension_numbers<[1], [0], [0], [1], [0, 0, 1, 1], [], []>} : vector<16x128xf32>, vector<128x32xf32>, vector<16x32xf32> -> vector<16x32xf32>
    %c0_9 = arith.constant 0 : index
    %c0_10 = arith.constant 0 : index
    %10 = vector.load %arg5[%c0_9, %c0_10] : memref<1x32xf32, #tpu.memory_space<vmem>>, vector<1x32xf32>
    %11 = vector.broadcast %10 : vector<1x32xf32> to vector<16x32xf32>
    %12 = arith.addf %9, %11 : vector<16x32xf32>
    %13 = arith.addf %12, %0 : vector<16x32xf32>
    %cst_11 = arith.constant dense<0.000000e+00> : vector<16xf32>
    %14 = vector.multi_reduction <add>, %13, %cst_11 [1] : vector<16x32xf32> to vector<16xf32>
    %15 = vector.shape_cast %14 : vector<16xf32> to vector<16x1xf32>
    %cst_12 = arith.constant 3.200000e+01 : f32
    %16 = vector.broadcast %cst_12 : f32 to vector<16x1xf32>
    %17 = arith.divf %15, %16 : vector<16x1xf32>
    %18 = vector.broadcast %17 : vector<16x1xf32> to vector<16x32xf32>
    %19 = arith.subf %13, %18 : vector<16x32xf32>
    %20 = arith.mulf %19, %19 : vector<16x32xf32>
    %cst_13 = arith.constant dense<0.000000e+00> : vector<16xf32>
    %21 = vector.multi_reduction <add>, %20, %cst_13 [1] : vector<16x32xf32> to vector<16xf32>
    %22 = vector.shape_cast %21 : vector<16xf32> to vector<16x1xf32>
    %cst_14 = arith.constant 3.200000e+01 : f32
    %23 = vector.broadcast %cst_14 : f32 to vector<16x1xf32>
    %24 = arith.divf %22, %23 : vector<16x1xf32>
    %cst_15 = arith.constant 9.99999974E-6 : f32
    %25 = vector.broadcast %cst_15 : f32 to vector<16x1xf32>
    %26 = arith.addf %24, %25 : vector<16x1xf32>
    %27 = math.rsqrt %26 : vector<16x1xf32>
    %28 = vector.broadcast %27 : vector<16x1xf32> to vector<16x32xf32>
    %29 = arith.mulf %19, %28 : vector<16x32xf32>
    %c0_16 = arith.constant 0 : index
    %c0_17 = arith.constant 0 : index
    %30 = vector.load %arg6[%c0_16, %c0_17] : memref<1x32xf32, #tpu.memory_space<vmem>>, vector<1x32xf32>
    %31 = vector.broadcast %30 : vector<1x32xf32> to vector<16x32xf32>
    %32 = arith.mulf %29, %31 : vector<16x32xf32>
    %c0_18 = arith.constant 0 : index
    %c0_19 = arith.constant 0 : index
    %33 = vector.load %arg7[%c0_18, %c0_19] : memref<1x32xf32, #tpu.memory_space<vmem>>, vector<1x32xf32>
    %34 = vector.broadcast %33 : vector<1x32xf32> to vector<16x32xf32>
    %35 = arith.addf %32, %34 : vector<16x32xf32>
    %c0_20 = arith.constant 0 : index
    %c0_21 = arith.constant 0 : index
    %36 = vector.load %arg8[%c0_20, %c0_21] : memref<16x32xf32, #tpu.memory_space<vmem>>, vector<16x32xf32>
    tpu.vector_store %arg8[%c0_20, %c0_21], %35 {strides = array<i32>} : memref<16x32xf32, #tpu.memory_space<vmem>>, vector<16x32xf32>,
    return
  }
  func.func @transform_0(%arg0: i32) -> (i32, i32) {
    %c0_i32 = arith.constant 0 : i32
    %c0_i32_0 = arith.constant 0 : i32
    return %arg0, %c0_i32 : i32, i32
  }
  func.func @transform_1(%arg0: i32) -> (i32, i32) {
    %c0_i32 = arith.constant 0 : i32
    %c0_i32_0 = arith.constant 0 : i32
    %c0_i32_1 = arith.constant 0 : i32
    return %c0_i32, %c0_i32_0 : i32, i32
  }
  func.func @transform_2(%arg0: i32) -> (i32, i32) {
    %c0_i32 = arith.constant 0 : i32
    %c0_i32_0 = arith.constant 0 : i32
    %c0_i32_1 = arith.constant 0 : i32
    return %c0_i32, %c0_i32_0 : i32, i32
  }
  func.func @transform_3(%arg0: i32) -> (i32, i32) {
    %c0_i32 = arith.constant 0 : i32
    %c0_i32_0 = arith.constant 0 : i32
    %c0_i32_1 = arith.constant 0 : i32
    return %c0_i32, %c0_i32_0 : i32, i32
  }
  func.func @transform_4(%arg0: i32) -> (i32, i32) {
    %c0_i32 = arith.constant 0 : i32
    %c0_i32_0 = arith.constant 0 : i32
    %c0_i32_1 = arith.constant 0 : i32
    return %c0_i32, %c0_i32_0 : i32, i32
  }
  func.func @transform_5(%arg0: i32) -> (i32, i32) {
    %c0_i32 = arith.constant 0 : i32
    %c0_i32_0 = arith.constant 0 : i32
    %c0_i32_1 = arith.constant 0 : i32
    return %c0_i32, %c0_i32_0 : i32, i32
  }
  func.func @transform_6(%arg0: i32) -> (i32, i32) {
    %c0_i32 = arith.constant 0 : i32
    %c0_i32_0 = arith.constant 0 : i32
    %c0_i32_1 = arith.constant 0 : i32
    return %c0_i32, %c0_i32_0 : i32, i32
  }
  func.func @transform_7(%arg0: i32) -> (i32, i32) {
    %c0_i32 = arith.constant 0 : i32
    %c0_i32_0 = arith.constant 0 : i32
    return %arg0, %c0_i32 : i32, i32
  }
}

module attributes {stable_mosaic.version = 11 : i64} {
  func.func @_proj_add_ln_kernel(%arg0: i32, %arg1: memref<16x32xf32, #tpu.memory_space<vmem>>, %arg2: memref<32x32xf32, #tpu.memory_space<vmem>>, %arg3: memref<1x32xf32, #tpu.memory_space<vmem>>, %arg4: memref<16x32xf32, #tpu.memory_space<vmem>>, %arg5: memref<1x32xf32, #tpu.memory_space<vmem>>, %arg6: memref<1x32xf32, #tpu.memory_space<vmem>>, %arg7: memref<16x32xf32, #tpu.memory_space<vmem>>) attributes {dimension_semantics = [#tpu.dimension_semantics<parallel>], iteration_bounds = array<i64: 1>, scalar_prefetch = 0 : i64, scratch_operands = 0 : i64, tpu.core_type = #tpu.core_type<tc>, window_params = [{transform_indices = @transform_0, window_bounds = array<i64: 16, 32>}, {pipeline_mode = #tpu.pipeline_mode<synchronous>, transform_indices = @transform_1, window_bounds = array<i64: 32, 32>}, {pipeline_mode = #tpu.pipeline_mode<synchronous>, transform_indices = @transform_2, window_bounds = array<i64: 1, 32>}, {transform_indices = @transform_3, window_bounds = array<i64: 16, 32>}, {pipeline_mode = #tpu.pipeline_mode<synchronous>, transform_indices = @transform_4, window_bounds = array<i64: 1, 32>}, {pipeline_mode = #tpu.pipeline_mode<synchronous>, transform_indices = @transform_5, window_bounds = array<i64: 1, 32>}, {transform_indices = @transform_6, window_bounds = array<i64: 16, 32>}]} {
    %c0 = arith.constant 0 : index
    %c0_0 = arith.constant 0 : index
    %0 = vector.load %arg1[%c0, %c0_0] : memref<16x32xf32, #tpu.memory_space<vmem>>, vector<16x32xf32>
    %c0_1 = arith.constant 0 : index
    %c0_2 = arith.constant 0 : index
    %1 = vector.load %arg2[%c0_1, %c0_2] : memref<32x32xf32, #tpu.memory_space<vmem>>, vector<32x32xf32>
    %cst = arith.constant dense<0.000000e+00> : vector<16x32xf32>
    %2 = tpu.matmul %0, %1, %cst {dimension_numbers = #tpu.dot_dimension_numbers<[1], [0], [0], [1], [0, 0, 1, 1], [], []>} : vector<16x32xf32>, vector<32x32xf32>, vector<16x32xf32> -> vector<16x32xf32>
    %c0_3 = arith.constant 0 : index
    %c0_4 = arith.constant 0 : index
    %3 = vector.load %arg3[%c0_3, %c0_4] : memref<1x32xf32, #tpu.memory_space<vmem>>, vector<1x32xf32>
    %4 = vector.broadcast %3 : vector<1x32xf32> to vector<16x32xf32>
    %5 = arith.addf %2, %4 : vector<16x32xf32>
    %c0_5 = arith.constant 0 : index
    %c0_6 = arith.constant 0 : index
    %6 = vector.load %arg4[%c0_5, %c0_6] : memref<16x32xf32, #tpu.memory_space<vmem>>, vector<16x32xf32>
    %7 = arith.addf %5, %6 : vector<16x32xf32>
    %cst_7 = arith.constant dense<0.000000e+00> : vector<16xf32>
    %8 = vector.multi_reduction <add>, %7, %cst_7 [1] : vector<16x32xf32> to vector<16xf32>
    %9 = vector.shape_cast %8 : vector<16xf32> to vector<16x1xf32>
    %cst_8 = arith.constant 3.200000e+01 : f32
    %10 = vector.broadcast %cst_8 : f32 to vector<16x1xf32>
    %11 = arith.divf %9, %10 : vector<16x1xf32>
    %12 = vector.broadcast %11 : vector<16x1xf32> to vector<16x32xf32>
    %13 = arith.subf %7, %12 : vector<16x32xf32>
    %14 = arith.mulf %13, %13 : vector<16x32xf32>
    %cst_9 = arith.constant dense<0.000000e+00> : vector<16xf32>
    %15 = vector.multi_reduction <add>, %14, %cst_9 [1] : vector<16x32xf32> to vector<16xf32>
    %16 = vector.shape_cast %15 : vector<16xf32> to vector<16x1xf32>
    %cst_10 = arith.constant 3.200000e+01 : f32
    %17 = vector.broadcast %cst_10 : f32 to vector<16x1xf32>
    %18 = arith.divf %16, %17 : vector<16x1xf32>
    %cst_11 = arith.constant 9.99999974E-6 : f32
    %19 = vector.broadcast %cst_11 : f32 to vector<16x1xf32>
    %20 = arith.addf %18, %19 : vector<16x1xf32>
    %21 = math.rsqrt %20 : vector<16x1xf32>
    %22 = vector.broadcast %21 : vector<16x1xf32> to vector<16x32xf32>
    %23 = arith.mulf %13, %22 : vector<16x32xf32>
    %c0_12 = arith.constant 0 : index
    %c0_13 = arith.constant 0 : index
    %24 = vector.load %arg5[%c0_12, %c0_13] : memref<1x32xf32, #tpu.memory_space<vmem>>, vector<1x32xf32>
    %25 = vector.broadcast %24 : vector<1x32xf32> to vector<16x32xf32>
    %26 = arith.mulf %23, %25 : vector<16x32xf32>
    %c0_14 = arith.constant 0 : index
    %c0_15 = arith.constant 0 : index
    %27 = vector.load %arg6[%c0_14, %c0_15] : memref<1x32xf32, #tpu.memory_space<vmem>>, vector<1x32xf32>
    %28 = vector.broadcast %27 : vector<1x32xf32> to vector<16x32xf32>
    %29 = arith.addf %26, %28 : vector<16x32xf32>
    %c0_16 = arith.constant 0 : index
    %c0_17 = arith.constant 0 : index
    %30 = vector.load %arg7[%c0_16, %c0_17] : memref<16x32xf32, #tpu.memory_space<vmem>>, vector<16x32xf32>
    tpu.vector_store %arg7[%c0_16, %c0_17], %29 {strides = array<i32>} : memref<16x32xf32, #tpu.memory_space<vmem>>, vector<16x32xf32>,
    return
  }
  func.func @transform_0(%arg0: i32) -> (i32, i32) {
    %c0_i32 = arith.constant 0 : i32
    %c0_i32_0 = arith.constant 0 : i32
    return %arg0, %c0_i32 : i32, i32
  }
  func.func @transform_1(%arg0: i32) -> (i32, i32) {
    %c0_i32 = arith.constant 0 : i32
    %c0_i32_0 = arith.constant 0 : i32
    %c0_i32_1 = arith.constant 0 : i32
    return %c0_i32, %c0_i32_0 : i32, i32
  }
  func.func @transform_2(%arg0: i32) -> (i32, i32) {
    %c0_i32 = arith.constant 0 : i32
    %c0_i32_0 = arith.constant 0 : i32
    %c0_i32_1 = arith.constant 0 : i32
    return %c0_i32, %c0_i32_0 : i32, i32
  }
  func.func @transform_3(%arg0: i32) -> (i32, i32) {
    %c0_i32 = arith.constant 0 : i32
    %c0_i32_0 = arith.constant 0 : i32
    return %arg0, %c0_i32 : i32, i32
  }
  func.func @transform_4(%arg0: i32) -> (i32, i32) {
    %c0_i32 = arith.constant 0 : i32
    %c0_i32_0 = arith.constant 0 : i32
    %c0_i32_1 = arith.constant 0 : i32
    return %c0_i32, %c0_i32_0 : i32, i32
  }
  func.func @transform_5(%arg0: i32) -> (i32, i32) {
    %c0_i32 = arith.constant 0 : i32
    %c0_i32_0 = arith.constant 0 : i32
    %c0_i32_1 = arith.constant 0 : i32
    return %c0_i32, %c0_i32_0 : i32, i32
  }
  func.func @transform_6(%arg0: i32) -> (i32, i32) {
    %c0_i32 = arith.constant 0 : i32
    %c0_i32_0 = arith.constant 0 : i32
    return %arg0, %c0_i32 : i32, i32
  }
}

module attributes {stable_mosaic.version = 11 : i64} {
  func.func @_flash_attn_kernel(%arg0: i32, %arg1: i32, %arg2: i32, %arg3: memref<1x8x32xf32, #tpu.memory_space<vmem>>, %arg4: memref<1x8x32xf32, #tpu.memory_space<vmem>>, %arg5: memref<1x8x32xf32, #tpu.memory_space<vmem>>, %arg6: memref<1x1x8xf32, #tpu.memory_space<vmem>>, %arg7: memref<1x8x32xf32, #tpu.memory_space<vmem>>, %arg8: memref<4x8x1xf32, #tpu.memory_space<vmem>>, %arg9: memref<4x8x1xf32, #tpu.memory_space<vmem>>, %arg10: memref<4x8x8xf32, #tpu.memory_space<vmem>>) attributes {dimension_semantics = [#tpu.dimension_semantics<parallel>, #tpu.dimension_semantics<parallel>, #tpu.dimension_semantics<arbitrary>], iteration_bounds = array<i64: 2, 1, 1>, scalar_prefetch = 0 : i64, scratch_operands = 3 : i64, tpu.core_type = #tpu.core_type<tc>, window_params = [{transform_indices = @transform_0, window_bounds = array<i64: 1, 8, 32>}, {transform_indices = @transform_1, window_bounds = array<i64: 1, 8, 32>}, {transform_indices = @transform_2, window_bounds = array<i64: 1, 8, 32>}, {transform_indices = @transform_3, window_bounds = array<i64: 1, 1, 8>}, {transform_indices = @transform_4, window_bounds = array<i64: 1, 8, 32>}]} {
    %c0_i32 = arith.constant 0 : i32
    %0 = arith.cmpi eq, %arg2, %c0_i32 : i32
    %1 = arith.extui %0 : i1 to i32
    %c0_i32_0 = arith.constant 0 : i32
    %2 = arith.cmpi ne, %1, %c0_i32_0 : i32
    scf.if %2 {
      %cst_132 = arith.constant 0xFF800000 : f32
      %186 = vector.broadcast %cst_132 : f32 to vector<4x8x1xf32>
      %c0_133 = arith.constant 0 : index
      %c0_134 = arith.constant 0 : index
      %c0_135 = arith.constant 0 : index
      %187 = vector.load %arg8[%c0_133, %c0_134, %c0_135] : memref<4x8x1xf32, #tpu.memory_space<vmem>>, vector<4x8x1xf32>
      tpu.vector_store %arg8[%c0_133, %c0_134, %c0_135], %186 {strides = array<i32>} : memref<4x8x1xf32, #tpu.memory_space<vmem>>, vector<4x8x1xf32>,
      %cst_136 = arith.constant 0.000000e+00 : f32
      %188 = vector.broadcast %cst_136 : f32 to vector<4x8x1xf32>
      %c0_137 = arith.constant 0 : index
      %c0_138 = arith.constant 0 : index
      %c0_139 = arith.constant 0 : index
      %189 = vector.load %arg9[%c0_137, %c0_138, %c0_139] : memref<4x8x1xf32, #tpu.memory_space<vmem>>, vector<4x8x1xf32>
      tpu.vector_store %arg9[%c0_137, %c0_138, %c0_139], %188 {strides = array<i32>} : memref<4x8x1xf32, #tpu.memory_space<vmem>>, vector<4x8x1xf32>,
      %cst_140 = arith.constant 0.000000e+00 : f32
      %190 = vector.broadcast %cst_140 : f32 to vector<4x8x8xf32>
      %c0_141 = arith.constant 0 : index
      %c0_142 = arith.constant 0 : index
      %c0_143 = arith.constant 0 : index
      %191 = vector.load %arg10[%c0_141, %c0_142, %c0_143] : memref<4x8x8xf32, #tpu.memory_space<vmem>>, vector<4x8x8xf32>
      tpu.vector_store %arg10[%c0_141, %c0_142, %c0_143], %190 {strides = array<i32>} : memref<4x8x8xf32, #tpu.memory_space<vmem>>, vector<4x8x8xf32>,
    } else {
    }
    %c8_i32 = arith.constant 8 : i32
    %3 = arith.muli %arg2, %c8_i32 : i32
    %4 = tpu.iota {dimensions = array<i32: 1>} : vector<8x8xi32>
    %5 = vector.broadcast %3 : i32 to vector<8x8xi32>
    %6 = arith.addi %5, %4 : vector<8x8xi32>
    %c8_i32_1 = arith.constant 8 : i32
    %7 = vector.broadcast %c8_i32_1 : i32 to vector<8x8xi32>
    %8 = arith.cmpi slt, %6, %7 : vector<8x8xi32>
    %c0 = arith.constant 0 : index
    %c0_2 = arith.constant 0 : index
    %c0_3 = arith.constant 0 : index
    %9 = vector.load %arg6[%c0, %c0_2, %c0_3] : memref<1x1x8xf32, #tpu.memory_space<vmem>>, vector<1x1x8xf32>
    %10 = vector.shape_cast %9 : vector<1x1x8xf32> to vector<1x8xf32>
    %cst = arith.constant 0.000000e+00 : f32
    %11 = vector.broadcast %cst : f32 to vector<1x8xf32>
    %12 = arith.cmpf one, %10, %11 : vector<1x8xf32>
    %13 = vector.broadcast %12 : vector<1x8xi1> to vector<8x8xi1>
    %14 = arith.andi %8, %13 : vector<8x8xi1>
    %c0_4 = arith.constant 0 : index
    %c0_5 = arith.constant 0 : index
    %c0_6 = arith.constant 0 : index
    %15 = vector.load %arg3[%c0_4, %c0_5, %c0_6] : memref<1x8x32xf32, #tpu.memory_space<vmem>>, vector<1x8x8xf32>
    %16 = vector.shape_cast %15 : vector<1x8x8xf32> to vector<8x8xf32>
    %c0_7 = arith.constant 0 : index
    %c0_8 = arith.constant 0 : index
    %c0_9 = arith.constant 0 : index
    %17 = vector.load %arg4[%c0_7, %c0_8, %c0_9] : memref<1x8x32xf32, #tpu.memory_space<vmem>>, vector<1x8x8xf32>
    %18 = vector.shape_cast %17 : vector<1x8x8xf32> to vector<8x8xf32>
    %c0_10 = arith.constant 0 : index
    %c0_11 = arith.constant 0 : index
    %c0_12 = arith.constant 0 : index
    %19 = vector.load %arg5[%c0_10, %c0_11, %c0_12] : memref<1x8x32xf32, #tpu.memory_space<vmem>>, vector<1x8x8xf32>
    %20 = vector.shape_cast %19 : vector<1x8x8xf32> to vector<8x8xf32>
    %cst_13 = arith.constant dense<0.000000e+00> : vector<8x8xf32>
    %21 = tpu.matmul %16, %18, %cst_13 {dimension_numbers = #tpu.dot_dimension_numbers<[1], [1], [0], [0], [0, 0, 1, 0], [], []>} : vector<8x8xf32>, vector<8x8xf32>, vector<8x8xf32> -> vector<8x8xf32>
    %cst_14 = arith.constant -1.000000e+20 : f32
    %22 = vector.broadcast %cst_14 : f32 to vector<8x8xf32>
    %23 = arith.select %14, %21, %22 : vector<8x8xi1>, vector<8x8xf32>
    %cst_15 = arith.constant 0.176776692 : f32
    %24 = vector.broadcast %cst_15 : f32 to vector<8x8xf32>
    %25 = arith.mulf %23, %24 : vector<8x8xf32>
    %c0_16 = arith.constant 0 : index
    %c0_17 = arith.constant 0 : index
    %c0_18 = arith.constant 0 : index
    %26 = vector.load %arg8[%c0_16, %c0_17, %c0_18] : memref<4x8x1xf32, #tpu.memory_space<vmem>>, vector<1x8x1xf32>
    %27 = vector.shape_cast %26 : vector<1x8x1xf32> to vector<8x1xf32>
    %cst_19 = arith.constant dense<0xFF800000> : vector<8xf32>
    %28 = vector.multi_reduction <maximumf>, %25, %cst_19 [1] : vector<8x8xf32> to vector<8xf32>
    %29 = vector.shape_cast %28 : vector<8xf32> to vector<8x1xf32>
    %30 = arith.maximumf %27, %29 : vector<8x1xf32>
    %31 = arith.subf %27, %30 : vector<8x1xf32>
    %32 = math.exp %31 : vector<8x1xf32>
    %33 = vector.broadcast %30 : vector<8x1xf32> to vector<8x8xf32>
    %34 = arith.subf %25, %33 : vector<8x8xf32>
    %35 = math.exp %34 : vector<8x8xf32>
    %c0_20 = arith.constant 0 : index
    %c0_21 = arith.constant 0 : index
    %c0_22 = arith.constant 0 : index
    %36 = vector.load %arg9[%c0_20, %c0_21, %c0_22] : memref<4x8x1xf32, #tpu.memory_space<vmem>>, vector<1x8x1xf32>
    %37 = vector.shape_cast %36 : vector<1x8x1xf32> to vector<8x1xf32>
    %38 = arith.mulf %32, %37 : vector<8x1xf32>
    %cst_23 = arith.constant dense<0.000000e+00> : vector<8xf32>
    %39 = vector.multi_reduction <add>, %35, %cst_23 [1] : vector<8x8xf32> to vector<8xf32>
    %40 = vector.shape_cast %39 : vector<8xf32> to vector<8x1xf32>
    %41 = arith.addf %38, %40 : vector<8x1xf32>
    %c0_24 = arith.constant 0 : index
    %c0_25 = arith.constant 0 : index
    %c0_26 = arith.constant 0 : index
    %42 = vector.load %arg9[%c0_24, %c0_25, %c0_26] : memref<4x8x1xf32, #tpu.memory_space<vmem>>, vector<1x8x1xf32>
    %43 = vector.shape_cast %42 : vector<1x8x1xf32> to vector<8x1xf32>
    %44 = vector.shape_cast %41 : vector<8x1xf32> to vector<1x8x1xf32>
    tpu.vector_store %arg9[%c0_24, %c0_25, %c0_26], %44 {strides = array<i32>} : memref<4x8x1xf32, #tpu.memory_space<vmem>>, vector<1x8x1xf32>,
    %c0_27 = arith.constant 0 : index
    %c0_28 = arith.constant 0 : index
    %c0_29 = arith.constant 0 : index
    %45 = vector.load %arg10[%c0_27, %c0_28, %c0_29] : memref<4x8x8xf32, #tpu.memory_space<vmem>>, vector<1x8x8xf32>
    %46 = vector.shape_cast %45 : vector<1x8x8xf32> to vector<8x8xf32>
    %47 = vector.broadcast %32 : vector<8x1xf32> to vector<8x8xf32>
    %48 = arith.mulf %47, %46 : vector<8x8xf32>
    %cst_30 = arith.constant dense<0.000000e+00> : vector<8x8xf32>
    %49 = tpu.matmul %35, %20, %cst_30 {dimension_numbers = #tpu.dot_dimension_numbers<[1], [0], [0], [1], [0, 0, 1, 1], [], []>} : vector<8x8xf32>, vector<8x8xf32>, vector<8x8xf32> -> vector<8x8xf32>
    %50 = arith.addf %48, %49 : vector<8x8xf32>
    %c0_31 = arith.constant 0 : index
    %c0_32 = arith.constant 0 : index
    %c0_33 = arith.constant 0 : index
    %51 = vector.load %arg10[%c0_31, %c0_32, %c0_33] : memref<4x8x8xf32, #tpu.memory_space<vmem>>, vector<1x8x8xf32>
    %52 = vector.shape_cast %51 : vector<1x8x8xf32> to vector<8x8xf32>
    %53 = vector.shape_cast %50 : vector<8x8xf32> to vector<1x8x8xf32>
    tpu.vector_store %arg10[%c0_31, %c0_32, %c0_33], %53 {strides = array<i32>} : memref<4x8x8xf32, #tpu.memory_space<vmem>>, vector<1x8x8xf32>,
    %c0_34 = arith.constant 0 : index
    %c0_35 = arith.constant 0 : index
    %c0_36 = arith.constant 0 : index
    %54 = vector.load %arg8[%c0_34, %c0_35, %c0_36] : memref<4x8x1xf32, #tpu.memory_space<vmem>>, vector<1x8x1xf32>
    %55 = vector.shape_cast %54 : vector<1x8x1xf32> to vector<8x1xf32>
    %56 = vector.shape_cast %30 : vector<8x1xf32> to vector<1x8x1xf32>
    tpu.vector_store %arg8[%c0_34, %c0_35, %c0_36], %56 {strides = array<i32>} : memref<4x8x1xf32, #tpu.memory_space<vmem>>, vector<1x8x1xf32>,
    %c0_37 = arith.constant 0 : index
    %c0_38 = arith.constant 0 : index
    %c8 = arith.constant 8 : index
    %57 = vector.load %arg3[%c0_37, %c0_38, %c8] : memref<1x8x32xf32, #tpu.memory_space<vmem>>, vector<1x8x8xf32>
    %58 = vector.shape_cast %57 : vector<1x8x8xf32> to vector<8x8xf32>
    %c0_39 = arith.constant 0 : index
    %c0_40 = arith.constant 0 : index
    %c8_41 = arith.constant 8 : index
    %59 = vector.load %arg4[%c0_39, %c0_40, %c8_41] : memref<1x8x32xf32, #tpu.memory_space<vmem>>, vector<1x8x8xf32>
    %60 = vector.shape_cast %59 : vector<1x8x8xf32> to vector<8x8xf32>
    %c0_42 = arith.constant 0 : index
    %c0_43 = arith.constant 0 : index
    %c8_44 = arith.constant 8 : index
    %61 = vector.load %arg5[%c0_42, %c0_43, %c8_44] : memref<1x8x32xf32, #tpu.memory_space<vmem>>, vector<1x8x8xf32>
    %62 = vector.shape_cast %61 : vector<1x8x8xf32> to vector<8x8xf32>
    %cst_45 = arith.constant dense<0.000000e+00> : vector<8x8xf32>
    %63 = tpu.matmul %58, %60, %cst_45 {dimension_numbers = #tpu.dot_dimension_numbers<[1], [1], [0], [0], [0, 0, 1, 0], [], []>} : vector<8x8xf32>, vector<8x8xf32>, vector<8x8xf32> -> vector<8x8xf32>
    %cst_46 = arith.constant -1.000000e+20 : f32
    %64 = vector.broadcast %cst_46 : f32 to vector<8x8xf32>
    %65 = arith.select %14, %63, %64 : vector<8x8xi1>, vector<8x8xf32>
    %cst_47 = arith.constant 0.176776692 : f32
    %66 = vector.broadcast %cst_47 : f32 to vector<8x8xf32>
    %67 = arith.mulf %65, %66 : vector<8x8xf32>
    %c1 = arith.constant 1 : index
    %c0_48 = arith.constant 0 : index
    %c0_49 = arith.constant 0 : index
    %68 = vector.load %arg8[%c1, %c0_48, %c0_49] : memref<4x8x1xf32, #tpu.memory_space<vmem>>, vector<1x8x1xf32>
    %69 = vector.shape_cast %68 : vector<1x8x1xf32> to vector<8x1xf32>
    %cst_50 = arith.constant dense<0xFF800000> : vector<8xf32>
    %70 = vector.multi_reduction <maximumf>, %67, %cst_50 [1] : vector<8x8xf32> to vector<8xf32>
    %71 = vector.shape_cast %70 : vector<8xf32> to vector<8x1xf32>
    %72 = arith.maximumf %69, %71 : vector<8x1xf32>
    %73 = arith.subf %69, %72 : vector<8x1xf32>
    %74 = math.exp %73 : vector<8x1xf32>
    %75 = vector.broadcast %72 : vector<8x1xf32> to vector<8x8xf32>
    %76 = arith.subf %67, %75 : vector<8x8xf32>
    %77 = math.exp %76 : vector<8x8xf32>
    %c1_51 = arith.constant 1 : index
    %c0_52 = arith.constant 0 : index
    %c0_53 = arith.constant 0 : index
    %78 = vector.load %arg9[%c1_51, %c0_52, %c0_53] : memref<4x8x1xf32, #tpu.memory_space<vmem>>, vector<1x8x1xf32>
    %79 = vector.shape_cast %78 : vector<1x8x1xf32> to vector<8x1xf32>
    %80 = arith.mulf %74, %79 : vector<8x1xf32>
    %cst_54 = arith.constant dense<0.000000e+00> : vector<8xf32>
    %81 = vector.multi_reduction <add>, %77, %cst_54 [1] : vector<8x8xf32> to vector<8xf32>
    %82 = vector.shape_cast %81 : vector<8xf32> to vector<8x1xf32>
    %83 = arith.addf %80, %82 : vector<8x1xf32>
    %c1_55 = arith.constant 1 : index
    %c0_56 = arith.constant 0 : index
    %c0_57 = arith.constant 0 : index
    %84 = vector.load %arg9[%c1_55, %c0_56, %c0_57] : memref<4x8x1xf32, #tpu.memory_space<vmem>>, vector<1x8x1xf32>
    %85 = vector.shape_cast %84 : vector<1x8x1xf32> to vector<8x1xf32>
    %86 = vector.shape_cast %83 : vector<8x1xf32> to vector<1x8x1xf32>
    tpu.vector_store %arg9[%c1_55, %c0_56, %c0_57], %86 {strides = array<i32>} : memref<4x8x1xf32, #tpu.memory_space<vmem>>, vector<1x8x1xf32>,
    %c1_58 = arith.constant 1 : index
    %c0_59 = arith.constant 0 : index
    %c0_60 = arith.constant 0 : index
    %87 = vector.load %arg10[%c1_58, %c0_59, %c0_60] : memref<4x8x8xf32, #tpu.memory_space<vmem>>, vector<1x8x8xf32>
    %88 = vector.shape_cast %87 : vector<1x8x8xf32> to vector<8x8xf32>
    %89 = vector.broadcast %74 : vector<8x1xf32> to vector<8x8xf32>
    %90 = arith.mulf %89, %88 : vector<8x8xf32>
    %cst_61 = arith.constant dense<0.000000e+00> : vector<8x8xf32>
    %91 = tpu.matmul %77, %62, %cst_61 {dimension_numbers = #tpu.dot_dimension_numbers<[1], [0], [0], [1], [0, 0, 1, 1], [], []>} : vector<8x8xf32>, vector<8x8xf32>, vector<8x8xf32> -> vector<8x8xf32>
    %92 = arith.addf %90, %91 : vector<8x8xf32>
    %c1_62 = arith.constant 1 : index
    %c0_63 = arith.constant 0 : index
    %c0_64 = arith.constant 0 : index
    %93 = vector.load %arg10[%c1_62, %c0_63, %c0_64] : memref<4x8x8xf32, #tpu.memory_space<vmem>>, vector<1x8x8xf32>
    %94 = vector.shape_cast %93 : vector<1x8x8xf32> to vector<8x8xf32>
    %95 = vector.shape_cast %92 : vector<8x8xf32> to vector<1x8x8xf32>
    tpu.vector_store %arg10[%c1_62, %c0_63, %c0_64], %95 {strides = array<i32>} : memref<4x8x8xf32, #tpu.memory_space<vmem>>, vector<1x8x8xf32>,
    %c1_65 = arith.constant 1 : index
    %c0_66 = arith.constant 0 : index
    %c0_67 = arith.constant 0 : index
    %96 = vector.load %arg8[%c1_65, %c0_66, %c0_67] : memref<4x8x1xf32, #tpu.memory_space<vmem>>, vector<1x8x1xf32>
    %97 = vector.shape_cast %96 : vector<1x8x1xf32> to vector<8x1xf32>
    %98 = vector.shape_cast %72 : vector<8x1xf32> to vector<1x8x1xf32>
    tpu.vector_store %arg8[%c1_65, %c0_66, %c0_67], %98 {strides = array<i32>} : memref<4x8x1xf32, #tpu.memory_space<vmem>>, vector<1x8x1xf32>,
    %c0_68 = arith.constant 0 : index
    %c0_69 = arith.constant 0 : index
    %c16 = arith.constant 16 : index
    %99 = vector.load %arg3[%c0_68, %c0_69, %c16] : memref<1x8x32xf32, #tpu.memory_space<vmem>>, vector<1x8x8xf32>
    %100 = vector.shape_cast %99 : vector<1x8x8xf32> to vector<8x8xf32>
    %c0_70 = arith.constant 0 : index
    %c0_71 = arith.constant 0 : index
    %c16_72 = arith.constant 16 : index
    %101 = vector.load %arg4[%c0_70, %c0_71, %c16_72] : memref<1x8x32xf32, #tpu.memory_space<vmem>>, vector<1x8x8xf32>
    %102 = vector.shape_cast %101 : vector<1x8x8xf32> to vector<8x8xf32>
    %c0_73 = arith.constant 0 : index
    %c0_74 = arith.constant 0 : index
    %c16_75 = arith.constant 16 : index
    %103 = vector.load %arg5[%c0_73, %c0_74, %c16_75] : memref<1x8x32xf32, #tpu.memory_space<vmem>>, vector<1x8x8xf32>
    %104 = vector.shape_cast %103 : vector<1x8x8xf32> to vector<8x8xf32>
    %cst_76 = arith.constant dense<0.000000e+00> : vector<8x8xf32>
    %105 = tpu.matmul %100, %102, %cst_76 {dimension_numbers = #tpu.dot_dimension_numbers<[1], [1], [0], [0], [0, 0, 1, 0], [], []>} : vector<8x8xf32>, vector<8x8xf32>, vector<8x8xf32> -> vector<8x8xf32>
    %cst_77 = arith.constant -1.000000e+20 : f32
    %106 = vector.broadcast %cst_77 : f32 to vector<8x8xf32>
    %107 = arith.select %14, %105, %106 : vector<8x8xi1>, vector<8x8xf32>
    %cst_78 = arith.constant 0.176776692 : f32
    %108 = vector.broadcast %cst_78 : f32 to vector<8x8xf32>
    %109 = arith.mulf %107, %108 : vector<8x8xf32>
    %c2 = arith.constant 2 : index
    %c0_79 = arith.constant 0 : index
    %c0_80 = arith.constant 0 : index
    %110 = vector.load %arg8[%c2, %c0_79, %c0_80] : memref<4x8x1xf32, #tpu.memory_space<vmem>>, vector<1x8x1xf32>
    %111 = vector.shape_cast %110 : vector<1x8x1xf32> to vector<8x1xf32>
    %cst_81 = arith.constant dense<0xFF800000> : vector<8xf32>
    %112 = vector.multi_reduction <maximumf>, %109, %cst_81 [1] : vector<8x8xf32> to vector<8xf32>
    %113 = vector.shape_cast %112 : vector<8xf32> to vector<8x1xf32>
    %114 = arith.maximumf %111, %113 : vector<8x1xf32>
    %115 = arith.subf %111, %114 : vector<8x1xf32>
    %116 = math.exp %115 : vector<8x1xf32>
    %117 = vector.broadcast %114 : vector<8x1xf32> to vector<8x8xf32>
    %118 = arith.subf %109, %117 : vector<8x8xf32>
    %119 = math.exp %118 : vector<8x8xf32>
    %c2_82 = arith.constant 2 : index
    %c0_83 = arith.constant 0 : index
    %c0_84 = arith.constant 0 : index
    %120 = vector.load %arg9[%c2_82, %c0_83, %c0_84] : memref<4x8x1xf32, #tpu.memory_space<vmem>>, vector<1x8x1xf32>
    %121 = vector.shape_cast %120 : vector<1x8x1xf32> to vector<8x1xf32>
    %122 = arith.mulf %116, %121 : vector<8x1xf32>
    %cst_85 = arith.constant dense<0.000000e+00> : vector<8xf32>
    %123 = vector.multi_reduction <add>, %119, %cst_85 [1] : vector<8x8xf32> to vector<8xf32>
    %124 = vector.shape_cast %123 : vector<8xf32> to vector<8x1xf32>
    %125 = arith.addf %122, %124 : vector<8x1xf32>
    %c2_86 = arith.constant 2 : index
    %c0_87 = arith.constant 0 : index
    %c0_88 = arith.constant 0 : index
    %126 = vector.load %arg9[%c2_86, %c0_87, %c0_88] : memref<4x8x1xf32, #tpu.memory_space<vmem>>, vector<1x8x1xf32>
    %127 = vector.shape_cast %126 : vector<1x8x1xf32> to vector<8x1xf32>
    %128 = vector.shape_cast %125 : vector<8x1xf32> to vector<1x8x1xf32>
    tpu.vector_store %arg9[%c2_86, %c0_87, %c0_88], %128 {strides = array<i32>} : memref<4x8x1xf32, #tpu.memory_space<vmem>>, vector<1x8x1xf32>,
    %c2_89 = arith.constant 2 : index
    %c0_90 = arith.constant 0 : index
    %c0_91 = arith.constant 0 : index
    %129 = vector.load %arg10[%c2_89, %c0_90, %c0_91] : memref<4x8x8xf32, #tpu.memory_space<vmem>>, vector<1x8x8xf32>
    %130 = vector.shape_cast %129 : vector<1x8x8xf32> to vector<8x8xf32>
    %131 = vector.broadcast %116 : vector<8x1xf32> to vector<8x8xf32>
    %132 = arith.mulf %131, %130 : vector<8x8xf32>
    %cst_92 = arith.constant dense<0.000000e+00> : vector<8x8xf32>
    %133 = tpu.matmul %119, %104, %cst_92 {dimension_numbers = #tpu.dot_dimension_numbers<[1], [0], [0], [1], [0, 0, 1, 1], [], []>} : vector<8x8xf32>, vector<8x8xf32>, vector<8x8xf32> -> vector<8x8xf32>
    %134 = arith.addf %132, %133 : vector<8x8xf32>
    %c2_93 = arith.constant 2 : index
    %c0_94 = arith.constant 0 : index
    %c0_95 = arith.constant 0 : index
    %135 = vector.load %arg10[%c2_93, %c0_94, %c0_95] : memref<4x8x8xf32, #tpu.memory_space<vmem>>, vector<1x8x8xf32>
    %136 = vector.shape_cast %135 : vector<1x8x8xf32> to vector<8x8xf32>
    %137 = vector.shape_cast %134 : vector<8x8xf32> to vector<1x8x8xf32>
    tpu.vector_store %arg10[%c2_93, %c0_94, %c0_95], %137 {strides = array<i32>} : memref<4x8x8xf32, #tpu.memory_space<vmem>>, vector<1x8x8xf32>,
    %c2_96 = arith.constant 2 : index
    %c0_97 = arith.constant 0 : index
    %c0_98 = arith.constant 0 : index
    %138 = vector.load %arg8[%c2_96, %c0_97, %c0_98] : memref<4x8x1xf32, #tpu.memory_space<vmem>>, vector<1x8x1xf32>
    %139 = vector.shape_cast %138 : vector<1x8x1xf32> to vector<8x1xf32>
    %140 = vector.shape_cast %114 : vector<8x1xf32> to vector<1x8x1xf32>
    tpu.vector_store %arg8[%c2_96, %c0_97, %c0_98], %140 {strides = array<i32>} : memref<4x8x1xf32, #tpu.memory_space<vmem>>, vector<1x8x1xf32>,
    %c0_99 = arith.constant 0 : index
    %c0_100 = arith.constant 0 : index
    %c24 = arith.constant 24 : index
    %141 = vector.load %arg3[%c0_99, %c0_100, %c24] : memref<1x8x32xf32, #tpu.memory_space<vmem>>, vector<1x8x8xf32>
    %142 = vector.shape_cast %141 : vector<1x8x8xf32> to vector<8x8xf32>
    %c0_101 = arith.constant 0 : index
    %c0_102 = arith.constant 0 : index
    %c24_103 = arith.constant 24 : index
    %143 = vector.load %arg4[%c0_101, %c0_102, %c24_103] : memref<1x8x32xf32, #tpu.memory_space<vmem>>, vector<1x8x8xf32>
    %144 = vector.shape_cast %143 : vector<1x8x8xf32> to vector<8x8xf32>
    %c0_104 = arith.constant 0 : index
    %c0_105 = arith.constant 0 : index
    %c24_106 = arith.constant 24 : index
    %145 = vector.load %arg5[%c0_104, %c0_105, %c24_106] : memref<1x8x32xf32, #tpu.memory_space<vmem>>, vector<1x8x8xf32>
    %146 = vector.shape_cast %145 : vector<1x8x8xf32> to vector<8x8xf32>
    %cst_107 = arith.constant dense<0.000000e+00> : vector<8x8xf32>
    %147 = tpu.matmul %142, %144, %cst_107 {dimension_numbers = #tpu.dot_dimension_numbers<[1], [1], [0], [0], [0, 0, 1, 0], [], []>} : vector<8x8xf32>, vector<8x8xf32>, vector<8x8xf32> -> vector<8x8xf32>
    %cst_108 = arith.constant -1.000000e+20 : f32
    %148 = vector.broadcast %cst_108 : f32 to vector<8x8xf32>
    %149 = arith.select %14, %147, %148 : vector<8x8xi1>, vector<8x8xf32>
    %cst_109 = arith.constant 0.176776692 : f32
    %150 = vector.broadcast %cst_109 : f32 to vector<8x8xf32>
    %151 = arith.mulf %149, %150 : vector<8x8xf32>
    %c3 = arith.constant 3 : index
    %c0_110 = arith.constant 0 : index
    %c0_111 = arith.constant 0 : index
    %152 = vector.load %arg8[%c3, %c0_110, %c0_111] : memref<4x8x1xf32, #tpu.memory_space<vmem>>, vector<1x8x1xf32>
    %153 = vector.shape_cast %152 : vector<1x8x1xf32> to vector<8x1xf32>
    %cst_112 = arith.constant dense<0xFF800000> : vector<8xf32>
    %154 = vector.multi_reduction <maximumf>, %151, %cst_112 [1] : vector<8x8xf32> to vector<8xf32>
    %155 = vector.shape_cast %154 : vector<8xf32> to vector<8x1xf32>
    %156 = arith.maximumf %153, %155 : vector<8x1xf32>
    %157 = arith.subf %153, %156 : vector<8x1xf32>
    %158 = math.exp %157 : vector<8x1xf32>
    %159 = vector.broadcast %156 : vector<8x1xf32> to vector<8x8xf32>
    %160 = arith.subf %151, %159 : vector<8x8xf32>
    %161 = math.exp %160 : vector<8x8xf32>
    %c3_113 = arith.constant 3 : index
    %c0_114 = arith.constant 0 : index
    %c0_115 = arith.constant 0 : index
    %162 = vector.load %arg9[%c3_113, %c0_114, %c0_115] : memref<4x8x1xf32, #tpu.memory_space<vmem>>, vector<1x8x1xf32>
    %163 = vector.shape_cast %162 : vector<1x8x1xf32> to vector<8x1xf32>
    %164 = arith.mulf %158, %163 : vector<8x1xf32>
    %cst_116 = arith.constant dense<0.000000e+00> : vector<8xf32>
    %165 = vector.multi_reduction <add>, %161, %cst_116 [1] : vector<8x8xf32> to vector<8xf32>
    %166 = vector.shape_cast %165 : vector<8xf32> to vector<8x1xf32>
    %167 = arith.addf %164, %166 : vector<8x1xf32>
    %c3_117 = arith.constant 3 : index
    %c0_118 = arith.constant 0 : index
    %c0_119 = arith.constant 0 : index
    %168 = vector.load %arg9[%c3_117, %c0_118, %c0_119] : memref<4x8x1xf32, #tpu.memory_space<vmem>>, vector<1x8x1xf32>
    %169 = vector.shape_cast %168 : vector<1x8x1xf32> to vector<8x1xf32>
    %170 = vector.shape_cast %167 : vector<8x1xf32> to vector<1x8x1xf32>
    tpu.vector_store %arg9[%c3_117, %c0_118, %c0_119], %170 {strides = array<i32>} : memref<4x8x1xf32, #tpu.memory_space<vmem>>, vector<1x8x1xf32>,
    %c3_120 = arith.constant 3 : index
    %c0_121 = arith.constant 0 : index
    %c0_122 = arith.constant 0 : index
    %171 = vector.load %arg10[%c3_120, %c0_121, %c0_122] : memref<4x8x8xf32, #tpu.memory_space<vmem>>, vector<1x8x8xf32>
    %172 = vector.shape_cast %171 : vector<1x8x8xf32> to vector<8x8xf32>
    %173 = vector.broadcast %158 : vector<8x1xf32> to vector<8x8xf32>
    %174 = arith.mulf %173, %172 : vector<8x8xf32>
    %cst_123 = arith.constant dense<0.000000e+00> : vector<8x8xf32>
    %175 = tpu.matmul %161, %146, %cst_123 {dimension_numbers = #tpu.dot_dimension_numbers<[1], [0], [0], [1], [0, 0, 1, 1], [], []>} : vector<8x8xf32>, vector<8x8xf32>, vector<8x8xf32> -> vector<8x8xf32>
    %176 = arith.addf %174, %175 : vector<8x8xf32>
    %c3_124 = arith.constant 3 : index
    %c0_125 = arith.constant 0 : index
    %c0_126 = arith.constant 0 : index
    %177 = vector.load %arg10[%c3_124, %c0_125, %c0_126] : memref<4x8x8xf32, #tpu.memory_space<vmem>>, vector<1x8x8xf32>
    %178 = vector.shape_cast %177 : vector<1x8x8xf32> to vector<8x8xf32>
    %179 = vector.shape_cast %176 : vector<8x8xf32> to vector<1x8x8xf32>
    tpu.vector_store %arg10[%c3_124, %c0_125, %c0_126], %179 {strides = array<i32>} : memref<4x8x8xf32, #tpu.memory_space<vmem>>, vector<1x8x8xf32>,
    %c3_127 = arith.constant 3 : index
    %c0_128 = arith.constant 0 : index
    %c0_129 = arith.constant 0 : index
    %180 = vector.load %arg8[%c3_127, %c0_128, %c0_129] : memref<4x8x1xf32, #tpu.memory_space<vmem>>, vector<1x8x1xf32>
    %181 = vector.shape_cast %180 : vector<1x8x1xf32> to vector<8x1xf32>
    %182 = vector.shape_cast %156 : vector<8x1xf32> to vector<1x8x1xf32>
    tpu.vector_store %arg8[%c3_127, %c0_128, %c0_129], %182 {strides = array<i32>} : memref<4x8x1xf32, #tpu.memory_space<vmem>>, vector<1x8x1xf32>,
    %c0_i32_130 = arith.constant 0 : i32
    %183 = arith.cmpi eq, %arg2, %c0_i32_130 : i32
    %184 = arith.extui %183 : i1 to i32
    %c0_i32_131 = arith.constant 0 : i32
    %185 = arith.cmpi ne, %184, %c0_i32_131 : i32
    scf.if %185 {
      %c0_132 = arith.constant 0 : index
      %c0_133 = arith.constant 0 : index
      %c0_134 = arith.constant 0 : index
      %186 = vector.load %arg9[%c0_132, %c0_133, %c0_134] : memref<4x8x1xf32, #tpu.memory_space<vmem>>, vector<1x8x1xf32>
      %187 = vector.shape_cast %186 : vector<1x8x1xf32> to vector<8x1xf32>
      %188 = tpu.reciprocal %187 {approx = true} : vector<8x1xf32> -> vector<8x1xf32>
      %c0_135 = arith.constant 0 : index
      %c0_136 = arith.constant 0 : index
      %c0_137 = arith.constant 0 : index
      %189 = vector.load %arg10[%c0_135, %c0_136, %c0_137] : memref<4x8x8xf32, #tpu.memory_space<vmem>>, vector<1x8x8xf32>
      %190 = vector.shape_cast %189 : vector<1x8x8xf32> to vector<8x8xf32>
      %191 = vector.broadcast %188 : vector<8x1xf32> to vector<8x8xf32>
      %192 = arith.mulf %190, %191 : vector<8x8xf32>
      %c1_138 = arith.constant 1 : index
      %c0_139 = arith.constant 0 : index
      %c0_140 = arith.constant 0 : index
      %193 = vector.load %arg9[%c1_138, %c0_139, %c0_140] : memref<4x8x1xf32, #tpu.memory_space<vmem>>, vector<1x8x1xf32>
      %194 = vector.shape_cast %193 : vector<1x8x1xf32> to vector<8x1xf32>
      %195 = tpu.reciprocal %194 {approx = true} : vector<8x1xf32> -> vector<8x1xf32>
      %c1_141 = arith.constant 1 : index
      %c0_142 = arith.constant 0 : index
      %c0_143 = arith.constant 0 : index
      %196 = vector.load %arg10[%c1_141, %c0_142, %c0_143] : memref<4x8x8xf32, #tpu.memory_space<vmem>>, vector<1x8x8xf32>
      %197 = vector.shape_cast %196 : vector<1x8x8xf32> to vector<8x8xf32>
      %198 = vector.broadcast %195 : vector<8x1xf32> to vector<8x8xf32>
      %199 = arith.mulf %197, %198 : vector<8x8xf32>
      %c2_144 = arith.constant 2 : index
      %c0_145 = arith.constant 0 : index
      %c0_146 = arith.constant 0 : index
      %200 = vector.load %arg9[%c2_144, %c0_145, %c0_146] : memref<4x8x1xf32, #tpu.memory_space<vmem>>, vector<1x8x1xf32>
      %201 = vector.shape_cast %200 : vector<1x8x1xf32> to vector<8x1xf32>
      %202 = tpu.reciprocal %201 {approx = true} : vector<8x1xf32> -> vector<8x1xf32>
      %c2_147 = arith.constant 2 : index
      %c0_148 = arith.constant 0 : index
      %c0_149 = arith.constant 0 : index
      %203 = vector.load %arg10[%c2_147, %c0_148, %c0_149] : memref<4x8x8xf32, #tpu.memory_space<vmem>>, vector<1x8x8xf32>
      %204 = vector.shape_cast %203 : vector<1x8x8xf32> to vector<8x8xf32>
      %205 = vector.broadcast %202 : vector<8x1xf32> to vector<8x8xf32>
      %206 = arith.mulf %204, %205 : vector<8x8xf32>
      %c3_150 = arith.constant 3 : index
      %c0_151 = arith.constant 0 : index
      %c0_152 = arith.constant 0 : index
      %207 = vector.load %arg9[%c3_150, %c0_151, %c0_152] : memref<4x8x1xf32, #tpu.memory_space<vmem>>, vector<1x8x1xf32>
      %208 = vector.shape_cast %207 : vector<1x8x1xf32> to vector<8x1xf32>
      %209 = tpu.reciprocal %208 {approx = true} : vector<8x1xf32> -> vector<8x1xf32>
      %c3_153 = arith.constant 3 : index
      %c0_154 = arith.constant 0 : index
      %c0_155 = arith.constant 0 : index
      %210 = vector.load %arg10[%c3_153, %c0_154, %c0_155] : memref<4x8x8xf32, #tpu.memory_space<vmem>>, vector<1x8x8xf32>
      %211 = vector.shape_cast %210 : vector<1x8x8xf32> to vector<8x8xf32>
      %212 = vector.broadcast %209 : vector<8x1xf32> to vector<8x8xf32>
      %213 = arith.mulf %211, %212 : vector<8x8xf32>
      %214 = tpu.concatenate %192, %199, %206, %213 in 1 : vector<8x8xf32>, vector<8x8xf32>, vector<8x8xf32>, vector<8x8xf32> -> vector<8x32xf32>
      %c0_156 = arith.constant 0 : index
      %c0_157 = arith.constant 0 : index
      %c0_158 = arith.constant 0 : index
      %215 = vector.load %arg7[%c0_156, %c0_157, %c0_158] : memref<1x8x32xf32, #tpu.memory_space<vmem>>, vector<1x8x32xf32>
      %216 = vector.shape_cast %215 : vector<1x8x32xf32> to vector<8x32xf32>
      %217 = vector.shape_cast %214 : vector<8x32xf32> to vector<1x8x32xf32>
      tpu.vector_store %arg7[%c0_156, %c0_157, %c0_158], %217 {strides = array<i32>} : memref<1x8x32xf32, #tpu.memory_space<vmem>>, vector<1x8x32xf32>,
    } else {
    }
    return
  }
  func.func @transform_0(%arg0: i32, %arg1: i32, %arg2: i32) -> (i32, i32, i32) {
    %c0_i32 = arith.constant 0 : i32
    %c0_i32_0 = arith.constant 0 : i32
    return %arg0, %arg1, %c0_i32 : i32, i32, i32
  }
  func.func @transform_1(%arg0: i32, %arg1: i32, %arg2: i32) -> (i32, i32, i32) {
    %c0_i32 = arith.constant 0 : i32
    %c0_i32_0 = arith.constant 0 : i32
    return %arg0, %arg2, %c0_i32 : i32, i32, i32
  }
  func.func @transform_2(%arg0: i32, %arg1: i32, %arg2: i32) -> (i32, i32, i32) {
    %c0_i32 = arith.constant 0 : i32
    %c0_i32_0 = arith.constant 0 : i32
    return %arg0, %arg2, %c0_i32 : i32, i32, i32
  }
  func.func @transform_3(%arg0: i32, %arg1: i32, %arg2: i32) -> (i32, i32, i32) {
    %c0_i32 = arith.constant 0 : i32
    %c0_i32_0 = arith.constant 0 : i32
    return %arg0, %c0_i32, %arg2 : i32, i32, i32
  }
  func.func @transform_4(%arg0: i32, %arg1: i32, %arg2: i32) -> (i32, i32, i32) {
    %c0_i32 = arith.constant 0 : i32
    %c0_i32_0 = arith.constant 0 : i32
    return %arg0, %arg1, %c0_i32 : i32, i32, i32
  }
}

module attributes {stable_mosaic.version = 11 : i64} {
  func.func @_flash_attn_kernel(%arg0: i32, %arg1: i32, %arg2: i32, %arg3: memref<1x8x32xf32, #tpu.memory_space<vmem>>, %arg4: memref<1x8x32xf32, #tpu.memory_space<vmem>>, %arg5: memref<1x8x32xf32, #tpu.memory_space<vmem>>, %arg6: memref<1x1x8xf32, #tpu.memory_space<vmem>>, %arg7: memref<1x8x32xf32, #tpu.memory_space<vmem>>, %arg8: memref<4x8x1xf32, #tpu.memory_space<vmem>>, %arg9: memref<4x8x1xf32, #tpu.memory_space<vmem>>, %arg10: memref<4x8x8xf32, #tpu.memory_space<vmem>>) attributes {dimension_semantics = [#tpu.dimension_semantics<parallel>, #tpu.dimension_semantics<parallel>, #tpu.dimension_semantics<arbitrary>], iteration_bounds = array<i64: 2, 1, 1>, scalar_prefetch = 0 : i64, scratch_operands = 3 : i64, tpu.core_type = #tpu.core_type<tc>, window_params = [{transform_indices = @transform_0, window_bounds = array<i64: 1, 8, 32>}, {transform_indices = @transform_1, window_bounds = array<i64: 1, 8, 32>}, {transform_indices = @transform_2, window_bounds = array<i64: 1, 8, 32>}, {transform_indices = @transform_3, window_bounds = array<i64: 1, 1, 8>}, {transform_indices = @transform_4, window_bounds = array<i64: 1, 8, 32>}]} {
    %c0_i32 = arith.constant 0 : i32
    %0 = arith.cmpi eq, %arg2, %c0_i32 : i32
    %1 = arith.extui %0 : i1 to i32
    %c0_i32_0 = arith.constant 0 : i32
    %2 = arith.cmpi ne, %1, %c0_i32_0 : i32
    scf.if %2 {
      %cst = arith.constant 0xFF800000 : f32
      %12 = vector.broadcast %cst : f32 to vector<4x8x1xf32>
      %c0 = arith.constant 0 : index
      %c0_5 = arith.constant 0 : index
      %c0_6 = arith.constant 0 : index
      %13 = vector.load %arg8[%c0, %c0_5, %c0_6] : memref<4x8x1xf32, #tpu.memory_space<vmem>>, vector<4x8x1xf32>
      tpu.vector_store %arg8[%c0, %c0_5, %c0_6], %12 {strides = array<i32>} : memref<4x8x1xf32, #tpu.memory_space<vmem>>, vector<4x8x1xf32>,
      %cst_7 = arith.constant 0.000000e+00 : f32
      %14 = vector.broadcast %cst_7 : f32 to vector<4x8x1xf32>
      %c0_8 = arith.constant 0 : index
      %c0_9 = arith.constant 0 : index
      %c0_10 = arith.constant 0 : index
      %15 = vector.load %arg9[%c0_8, %c0_9, %c0_10] : memref<4x8x1xf32, #tpu.memory_space<vmem>>, vector<4x8x1xf32>
      tpu.vector_store %arg9[%c0_8, %c0_9, %c0_10], %14 {strides = array<i32>} : memref<4x8x1xf32, #tpu.memory_space<vmem>>, vector<4x8x1xf32>,
      %cst_11 = arith.constant 0.000000e+00 : f32
      %16 = vector.broadcast %cst_11 : f32 to vector<4x8x8xf32>
      %c0_12 = arith.constant 0 : index
      %c0_13 = arith.constant 0 : index
      %c0_14 = arith.constant 0 : index
      %17 = vector.load %arg10[%c0_12, %c0_13, %c0_14] : memref<4x8x8xf32, #tpu.memory_space<vmem>>, vector<4x8x8xf32>
      tpu.vector_store %arg10[%c0_12, %c0_13, %c0_14], %16 {strides = array<i32>} : memref<4x8x8xf32, #tpu.memory_space<vmem>>, vector<4x8x8xf32>,
    } else {
    }
    %c8_i32 = arith.constant 8 : i32
    %3 = arith.muli %arg2, %c8_i32 : i32
    %c8_i32_1 = arith.constant 8 : i32
    %4 = arith.muli %arg1, %c8_i32_1 : i32
    %c7_i32 = arith.constant 7 : i32
    %5 = arith.addi %4, %c7_i32 : i32
    %6 = arith.cmpi sle, %3, %5 : i32
    %7 = arith.extui %6 : i1 to i32
    %c0_i32_2 = arith.constant 0 : i32
    %8 = arith.cmpi ne, %7, %c0_i32_2 : i32
    scf.if %8 {
      %c8_i32_5 = arith.constant 8 : i32
      %12 = arith.muli %arg2, %c8_i32_5 : i32
      %13 = tpu.iota {dimensions = array<i32: 1>} : vector<8x8xi32>
      %14 = vector.broadcast %12 : i32 to vector<8x8xi32>
      %15 = arith.addi %14, %13 : vector<8x8xi32>
      %c8_i32_6 = arith.constant 8 : i32
      %16 = vector.broadcast %c8_i32_6 : i32 to vector<8x8xi32>
      %17 = arith.cmpi slt, %15, %16 : vector<8x8xi32>
      %c0 = arith.constant 0 : index
      %c0_7 = arith.constant 0 : index
      %c0_8 = arith.constant 0 : index
      %18 = vector.load %arg6[%c0, %c0_7, %c0_8] : memref<1x1x8xf32, #tpu.memory_space<vmem>>, vector<1x1x8xf32>
      %19 = vector.shape_cast %18 : vector<1x1x8xf32> to vector<1x8xf32>
      %cst = arith.constant 0.000000e+00 : f32
      %20 = vector.broadcast %cst : f32 to vector<1x8xf32>
      %21 = arith.cmpf one, %19, %20 : vector<1x8xf32>
      %22 = vector.broadcast %21 : vector<1x8xi1> to vector<8x8xi1>
      %23 = arith.andi %17, %22 : vector<8x8xi1>
      %c8_i32_9 = arith.constant 8 : i32
      %24 = arith.muli %arg1, %c8_i32_9 : i32
      %25 = tpu.iota {dimensions = array<i32: 0>} : vector<8x8xi32>
      %26 = vector.broadcast %24 : i32 to vector<8x8xi32>
      %27 = arith.addi %26, %25 : vector<8x8xi32>
      %28 = arith.cmpi sle, %15, %27 : vector<8x8xi32>
      %29 = arith.andi %23, %28 : vector<8x8xi1>
      %c0_10 = arith.constant 0 : index
      %c0_11 = arith.constant 0 : index
      %c0_12 = arith.constant 0 : index
      %30 = vector.load %arg3[%c0_10, %c0_11, %c0_12] : memref<1x8x32xf32, #tpu.memory_space<vmem>>, vector<1x8x8xf32>
      %31 = vector.shape_cast %30 : vector<1x8x8xf32> to vector<8x8xf32>
      %c0_13 = arith.constant 0 : index
      %c0_14 = arith.constant 0 : index
      %c0_15 = arith.constant 0 : index
      %32 = vector.load %arg4[%c0_13, %c0_14, %c0_15] : memref<1x8x32xf32, #tpu.memory_space<vmem>>, vector<1x8x8xf32>
      %33 = vector.shape_cast %32 : vector<1x8x8xf32> to vector<8x8xf32>
      %c0_16 = arith.constant 0 : index
      %c0_17 = arith.constant 0 : index
      %c0_18 = arith.constant 0 : index
      %34 = vector.load %arg5[%c0_16, %c0_17, %c0_18] : memref<1x8x32xf32, #tpu.memory_space<vmem>>, vector<1x8x8xf32>
      %35 = vector.shape_cast %34 : vector<1x8x8xf32> to vector<8x8xf32>
      %cst_19 = arith.constant dense<0.000000e+00> : vector<8x8xf32>
      %36 = tpu.matmul %31, %33, %cst_19 {dimension_numbers = #tpu.dot_dimension_numbers<[1], [1], [0], [0], [0, 0, 1, 0], [], []>} : vector<8x8xf32>, vector<8x8xf32>, vector<8x8xf32> -> vector<8x8xf32>
      %cst_20 = arith.constant -1.000000e+20 : f32
      %37 = vector.broadcast %cst_20 : f32 to vector<8x8xf32>
      %38 = arith.select %29, %36, %37 : vector<8x8xi1>, vector<8x8xf32>
      %cst_21 = arith.constant 0.176776692 : f32
      %39 = vector.broadcast %cst_21 : f32 to vector<8x8xf32>
      %40 = arith.mulf %38, %39 : vector<8x8xf32>
      %c0_22 = arith.constant 0 : index
      %c0_23 = arith.constant 0 : index
      %c0_24 = arith.constant 0 : index
      %41 = vector.load %arg8[%c0_22, %c0_23, %c0_24] : memref<4x8x1xf32, #tpu.memory_space<vmem>>, vector<1x8x1xf32>
      %42 = vector.shape_cast %41 : vector<1x8x1xf32> to vector<8x1xf32>
      %cst_25 = arith.constant dense<0xFF800000> : vector<8xf32>
      %43 = vector.multi_reduction <maximumf>, %40, %cst_25 [1] : vector<8x8xf32> to vector<8xf32>
      %44 = vector.shape_cast %43 : vector<8xf32> to vector<8x1xf32>
      %45 = arith.maximumf %42, %44 : vector<8x1xf32>
      %46 = arith.subf %42, %45 : vector<8x1xf32>
      %47 = math.exp %46 : vector<8x1xf32>
      %48 = vector.broadcast %45 : vector<8x1xf32> to vector<8x8xf32>
      %49 = arith.subf %40, %48 : vector<8x8xf32>
      %50 = math.exp %49 : vector<8x8xf32>
      %c0_26 = arith.constant 0 : index
      %c0_27 = arith.constant 0 : index
      %c0_28 = arith.constant 0 : index
      %51 = vector.load %arg9[%c0_26, %c0_27, %c0_28] : memref<4x8x1xf32, #tpu.memory_space<vmem>>, vector<1x8x1xf32>
      %52 = vector.shape_cast %51 : vector<1x8x1xf32> to vector<8x1xf32>
      %53 = arith.mulf %47, %52 : vector<8x1xf32>
      %cst_29 = arith.constant dense<0.000000e+00> : vector<8xf32>
      %54 = vector.multi_reduction <add>, %50, %cst_29 [1] : vector<8x8xf32> to vector<8xf32>
      %55 = vector.shape_cast %54 : vector<8xf32> to vector<8x1xf32>
      %56 = arith.addf %53, %55 : vector<8x1xf32>
      %c0_30 = arith.constant 0 : index
      %c0_31 = arith.constant 0 : index
      %c0_32 = arith.constant 0 : index
      %57 = vector.load %arg9[%c0_30, %c0_31, %c0_32] : memref<4x8x1xf32, #tpu.memory_space<vmem>>, vector<1x8x1xf32>
      %58 = vector.shape_cast %57 : vector<1x8x1xf32> to vector<8x1xf32>
      %59 = vector.shape_cast %56 : vector<8x1xf32> to vector<1x8x1xf32>
      tpu.vector_store %arg9[%c0_30, %c0_31, %c0_32], %59 {strides = array<i32>} : memref<4x8x1xf32, #tpu.memory_space<vmem>>, vector<1x8x1xf32>,
      %c0_33 = arith.constant 0 : index
      %c0_34 = arith.constant 0 : index
      %c0_35 = arith.constant 0 : index
      %60 = vector.load %arg10[%c0_33, %c0_34, %c0_35] : memref<4x8x8xf32, #tpu.memory_space<vmem>>, vector<1x8x8xf32>
      %61 = vector.shape_cast %60 : vector<1x8x8xf32> to vector<8x8xf32>
      %62 = vector.broadcast %47 : vector<8x1xf32> to vector<8x8xf32>
      %63 = arith.mulf %62, %61 : vector<8x8xf32>
      %cst_36 = arith.constant dense<0.000000e+00> : vector<8x8xf32>
      %64 = tpu.matmul %50, %35, %cst_36 {dimension_numbers = #tpu.dot_dimension_numbers<[1], [0], [0], [1], [0, 0, 1, 1], [], []>} : vector<8x8xf32>, vector<8x8xf32>, vector<8x8xf32> -> vector<8x8xf32>
      %65 = arith.addf %63, %64 : vector<8x8xf32>
      %c0_37 = arith.constant 0 : index
      %c0_38 = arith.constant 0 : index
      %c0_39 = arith.constant 0 : index
      %66 = vector.load %arg10[%c0_37, %c0_38, %c0_39] : memref<4x8x8xf32, #tpu.memory_space<vmem>>, vector<1x8x8xf32>
      %67 = vector.shape_cast %66 : vector<1x8x8xf32> to vector<8x8xf32>
      %68 = vector.shape_cast %65 : vector<8x8xf32> to vector<1x8x8xf32>
      tpu.vector_store %arg10[%c0_37, %c0_38, %c0_39], %68 {strides = array<i32>} : memref<4x8x8xf32, #tpu.memory_space<vmem>>, vector<1x8x8xf32>,
      %c0_40 = arith.constant 0 : index
      %c0_41 = arith.constant 0 : index
      %c0_42 = arith.constant 0 : index
      %69 = vector.load %arg8[%c0_40, %c0_41, %c0_42] : memref<4x8x1xf32, #tpu.memory_space<vmem>>, vector<1x8x1xf32>
      %70 = vector.shape_cast %69 : vector<1x8x1xf32> to vector<8x1xf32>
      %71 = vector.shape_cast %45 : vector<8x1xf32> to vector<1x8x1xf32>
      tpu.vector_store %arg8[%c0_40, %c0_41, %c0_42], %71 {strides = array<i32>} : memref<4x8x1xf32, #tpu.memory_space<vmem>>, vector<1x8x1xf32>,
      %c0_43 = arith.constant 0 : index
      %c0_44 = arith.constant 0 : index
      %c8 = arith.constant 8 : index
      %72 = vector.load %arg3[%c0_43, %c0_44, %c8] : memref<1x8x32xf32, #tpu.memory_space<vmem>>, vector<1x8x8xf32>
      %73 = vector.shape_cast %72 : vector<1x8x8xf32> to vector<8x8xf32>
      %c0_45 = arith.constant 0 : index
      %c0_46 = arith.constant 0 : index
      %c8_47 = arith.constant 8 : index
      %74 = vector.load %arg4[%c0_45, %c0_46, %c8_47] : memref<1x8x32xf32, #tpu.memory_space<vmem>>, vector<1x8x8xf32>
      %75 = vector.shape_cast %74 : vector<1x8x8xf32> to vector<8x8xf32>
      %c0_48 = arith.constant 0 : index
      %c0_49 = arith.constant 0 : index
      %c8_50 = arith.constant 8 : index
      %76 = vector.load %arg5[%c0_48, %c0_49, %c8_50] : memref<1x8x32xf32, #tpu.memory_space<vmem>>, vector<1x8x8xf32>
      %77 = vector.shape_cast %76 : vector<1x8x8xf32> to vector<8x8xf32>
      %cst_51 = arith.constant dense<0.000000e+00> : vector<8x8xf32>
      %78 = tpu.matmul %73, %75, %cst_51 {dimension_numbers = #tpu.dot_dimension_numbers<[1], [1], [0], [0], [0, 0, 1, 0], [], []>} : vector<8x8xf32>, vector<8x8xf32>, vector<8x8xf32> -> vector<8x8xf32>
      %cst_52 = arith.constant -1.000000e+20 : f32
      %79 = vector.broadcast %cst_52 : f32 to vector<8x8xf32>
      %80 = arith.select %29, %78, %79 : vector<8x8xi1>, vector<8x8xf32>
      %cst_53 = arith.constant 0.176776692 : f32
      %81 = vector.broadcast %cst_53 : f32 to vector<8x8xf32>
      %82 = arith.mulf %80, %81 : vector<8x8xf32>
      %c1 = arith.constant 1 : index
      %c0_54 = arith.constant 0 : index
      %c0_55 = arith.constant 0 : index
      %83 = vector.load %arg8[%c1, %c0_54, %c0_55] : memref<4x8x1xf32, #tpu.memory_space<vmem>>, vector<1x8x1xf32>
      %84 = vector.shape_cast %83 : vector<1x8x1xf32> to vector<8x1xf32>
      %cst_56 = arith.constant dense<0xFF800000> : vector<8xf32>
      %85 = vector.multi_reduction <maximumf>, %82, %cst_56 [1] : vector<8x8xf32> to vector<8xf32>
      %86 = vector.shape_cast %85 : vector<8xf32> to vector<8x1xf32>
      %87 = arith.maximumf %84, %86 : vector<8x1xf32>
      %88 = arith.subf %84, %87 : vector<8x1xf32>
      %89 = math.exp %88 : vector<8x1xf32>
      %90 = vector.broadcast %87 : vector<8x1xf32> to vector<8x8xf32>
      %91 = arith.subf %82, %90 : vector<8x8xf32>
      %92 = math.exp %91 : vector<8x8xf32>
      %c1_57 = arith.constant 1 : index
      %c0_58 = arith.constant 0 : index
      %c0_59 = arith.constant 0 : index
      %93 = vector.load %arg9[%c1_57, %c0_58, %c0_59] : memref<4x8x1xf32, #tpu.memory_space<vmem>>, vector<1x8x1xf32>
      %94 = vector.shape_cast %93 : vector<1x8x1xf32> to vector<8x1xf32>
      %95 = arith.mulf %89, %94 : vector<8x1xf32>
      %cst_60 = arith.constant dense<0.000000e+00> : vector<8xf32>
      %96 = vector.multi_reduction <add>, %92, %cst_60 [1] : vector<8x8xf32> to vector<8xf32>
      %97 = vector.shape_cast %96 : vector<8xf32> to vector<8x1xf32>
      %98 = arith.addf %95, %97 : vector<8x1xf32>
      %c1_61 = arith.constant 1 : index
      %c0_62 = arith.constant 0 : index
      %c0_63 = arith.constant 0 : index
      %99 = vector.load %arg9[%c1_61, %c0_62, %c0_63] : memref<4x8x1xf32, #tpu.memory_space<vmem>>, vector<1x8x1xf32>
      %100 = vector.shape_cast %99 : vector<1x8x1xf32> to vector<8x1xf32>
      %101 = vector.shape_cast %98 : vector<8x1xf32> to vector<1x8x1xf32>
      tpu.vector_store %arg9[%c1_61, %c0_62, %c0_63], %101 {strides = array<i32>} : memref<4x8x1xf32, #tpu.memory_space<vmem>>, vector<1x8x1xf32>,
      %c1_64 = arith.constant 1 : index
      %c0_65 = arith.constant 0 : index
      %c0_66 = arith.constant 0 : index
      %102 = vector.load %arg10[%c1_64, %c0_65, %c0_66] : memref<4x8x8xf32, #tpu.memory_space<vmem>>, vector<1x8x8xf32>
      %103 = vector.shape_cast %102 : vector<1x8x8xf32> to vector<8x8xf32>
      %104 = vector.broadcast %89 : vector<8x1xf32> to vector<8x8xf32>
      %105 = arith.mulf %104, %103 : vector<8x8xf32>
      %cst_67 = arith.constant dense<0.000000e+00> : vector<8x8xf32>
      %106 = tpu.matmul %92, %77, %cst_67 {dimension_numbers = #tpu.dot_dimension_numbers<[1], [0], [0], [1], [0, 0, 1, 1], [], []>} : vector<8x8xf32>, vector<8x8xf32>, vector<8x8xf32> -> vector<8x8xf32>
      %107 = arith.addf %105, %106 : vector<8x8xf32>
      %c1_68 = arith.constant 1 : index
      %c0_69 = arith.constant 0 : index
      %c0_70 = arith.constant 0 : index
      %108 = vector.load %arg10[%c1_68, %c0_69, %c0_70] : memref<4x8x8xf32, #tpu.memory_space<vmem>>, vector<1x8x8xf32>
      %109 = vector.shape_cast %108 : vector<1x8x8xf32> to vector<8x8xf32>
      %110 = vector.shape_cast %107 : vector<8x8xf32> to vector<1x8x8xf32>
      tpu.vector_store %arg10[%c1_68, %c0_69, %c0_70], %110 {strides = array<i32>} : memref<4x8x8xf32, #tpu.memory_space<vmem>>, vector<1x8x8xf32>,
      %c1_71 = arith.constant 1 : index
      %c0_72 = arith.constant 0 : index
      %c0_73 = arith.constant 0 : index
      %111 = vector.load %arg8[%c1_71, %c0_72, %c0_73] : memref<4x8x1xf32, #tpu.memory_space<vmem>>, vector<1x8x1xf32>
      %112 = vector.shape_cast %111 : vector<1x8x1xf32> to vector<8x1xf32>
      %113 = vector.shape_cast %87 : vector<8x1xf32> to vector<1x8x1xf32>
      tpu.vector_store %arg8[%c1_71, %c0_72, %c0_73], %113 {strides = array<i32>} : memref<4x8x1xf32, #tpu.memory_space<vmem>>, vector<1x8x1xf32>,
      %c0_74 = arith.constant 0 : index
      %c0_75 = arith.constant 0 : index
      %c16 = arith.constant 16 : index
      %114 = vector.load %arg3[%c0_74, %c0_75, %c16] : memref<1x8x32xf32, #tpu.memory_space<vmem>>, vector<1x8x8xf32>
      %115 = vector.shape_cast %114 : vector<1x8x8xf32> to vector<8x8xf32>
      %c0_76 = arith.constant 0 : index
      %c0_77 = arith.constant 0 : index
      %c16_78 = arith.constant 16 : index
      %116 = vector.load %arg4[%c0_76, %c0_77, %c16_78] : memref<1x8x32xf32, #tpu.memory_space<vmem>>, vector<1x8x8xf32>
      %117 = vector.shape_cast %116 : vector<1x8x8xf32> to vector<8x8xf32>
      %c0_79 = arith.constant 0 : index
      %c0_80 = arith.constant 0 : index
      %c16_81 = arith.constant 16 : index
      %118 = vector.load %arg5[%c0_79, %c0_80, %c16_81] : memref<1x8x32xf32, #tpu.memory_space<vmem>>, vector<1x8x8xf32>
      %119 = vector.shape_cast %118 : vector<1x8x8xf32> to vector<8x8xf32>
      %cst_82 = arith.constant dense<0.000000e+00> : vector<8x8xf32>
      %120 = tpu.matmul %115, %117, %cst_82 {dimension_numbers = #tpu.dot_dimension_numbers<[1], [1], [0], [0], [0, 0, 1, 0], [], []>} : vector<8x8xf32>, vector<8x8xf32>, vector<8x8xf32> -> vector<8x8xf32>
      %cst_83 = arith.constant -1.000000e+20 : f32
      %121 = vector.broadcast %cst_83 : f32 to vector<8x8xf32>
      %122 = arith.select %29, %120, %121 : vector<8x8xi1>, vector<8x8xf32>
      %cst_84 = arith.constant 0.176776692 : f32
      %123 = vector.broadcast %cst_84 : f32 to vector<8x8xf32>
      %124 = arith.mulf %122, %123 : vector<8x8xf32>
      %c2 = arith.constant 2 : index
      %c0_85 = arith.constant 0 : index
      %c0_86 = arith.constant 0 : index
      %125 = vector.load %arg8[%c2, %c0_85, %c0_86] : memref<4x8x1xf32, #tpu.memory_space<vmem>>, vector<1x8x1xf32>
      %126 = vector.shape_cast %125 : vector<1x8x1xf32> to vector<8x1xf32>
      %cst_87 = arith.constant dense<0xFF800000> : vector<8xf32>
      %127 = vector.multi_reduction <maximumf>, %124, %cst_87 [1] : vector<8x8xf32> to vector<8xf32>
      %128 = vector.shape_cast %127 : vector<8xf32> to vector<8x1xf32>
      %129 = arith.maximumf %126, %128 : vector<8x1xf32>
      %130 = arith.subf %126, %129 : vector<8x1xf32>
      %131 = math.exp %130 : vector<8x1xf32>
      %132 = vector.broadcast %129 : vector<8x1xf32> to vector<8x8xf32>
      %133 = arith.subf %124, %132 : vector<8x8xf32>
      %134 = math.exp %133 : vector<8x8xf32>
      %c2_88 = arith.constant 2 : index
      %c0_89 = arith.constant 0 : index
      %c0_90 = arith.constant 0 : index
      %135 = vector.load %arg9[%c2_88, %c0_89, %c0_90] : memref<4x8x1xf32, #tpu.memory_space<vmem>>, vector<1x8x1xf32>
      %136 = vector.shape_cast %135 : vector<1x8x1xf32> to vector<8x1xf32>
      %137 = arith.mulf %131, %136 : vector<8x1xf32>
      %cst_91 = arith.constant dense<0.000000e+00> : vector<8xf32>
      %138 = vector.multi_reduction <add>, %134, %cst_91 [1] : vector<8x8xf32> to vector<8xf32>
      %139 = vector.shape_cast %138 : vector<8xf32> to vector<8x1xf32>
      %140 = arith.addf %137, %139 : vector<8x1xf32>
      %c2_92 = arith.constant 2 : index
      %c0_93 = arith.constant 0 : index
      %c0_94 = arith.constant 0 : index
      %141 = vector.load %arg9[%c2_92, %c0_93, %c0_94] : memref<4x8x1xf32, #tpu.memory_space<vmem>>, vector<1x8x1xf32>
      %142 = vector.shape_cast %141 : vector<1x8x1xf32> to vector<8x1xf32>
      %143 = vector.shape_cast %140 : vector<8x1xf32> to vector<1x8x1xf32>
      tpu.vector_store %arg9[%c2_92, %c0_93, %c0_94], %143 {strides = array<i32>} : memref<4x8x1xf32, #tpu.memory_space<vmem>>, vector<1x8x1xf32>,
      %c2_95 = arith.constant 2 : index
      %c0_96 = arith.constant 0 : index
      %c0_97 = arith.constant 0 : index
      %144 = vector.load %arg10[%c2_95, %c0_96, %c0_97] : memref<4x8x8xf32, #tpu.memory_space<vmem>>, vector<1x8x8xf32>
      %145 = vector.shape_cast %144 : vector<1x8x8xf32> to vector<8x8xf32>
      %146 = vector.broadcast %131 : vector<8x1xf32> to vector<8x8xf32>
      %147 = arith.mulf %146, %145 : vector<8x8xf32>
      %cst_98 = arith.constant dense<0.000000e+00> : vector<8x8xf32>
      %148 = tpu.matmul %134, %119, %cst_98 {dimension_numbers = #tpu.dot_dimension_numbers<[1], [0], [0], [1], [0, 0, 1, 1], [], []>} : vector<8x8xf32>, vector<8x8xf32>, vector<8x8xf32> -> vector<8x8xf32>
      %149 = arith.addf %147, %148 : vector<8x8xf32>
      %c2_99 = arith.constant 2 : index
      %c0_100 = arith.constant 0 : index
      %c0_101 = arith.constant 0 : index
      %150 = vector.load %arg10[%c2_99, %c0_100, %c0_101] : memref<4x8x8xf32, #tpu.memory_space<vmem>>, vector<1x8x8xf32>
      %151 = vector.shape_cast %150 : vector<1x8x8xf32> to vector<8x8xf32>
      %152 = vector.shape_cast %149 : vector<8x8xf32> to vector<1x8x8xf32>
      tpu.vector_store %arg10[%c2_99, %c0_100, %c0_101], %152 {strides = array<i32>} : memref<4x8x8xf32, #tpu.memory_space<vmem>>, vector<1x8x8xf32>,
      %c2_102 = arith.constant 2 : index
      %c0_103 = arith.constant 0 : index
      %c0_104 = arith.constant 0 : index
      %153 = vector.load %arg8[%c2_102, %c0_103, %c0_104] : memref<4x8x1xf32, #tpu.memory_space<vmem>>, vector<1x8x1xf32>
      %154 = vector.shape_cast %153 : vector<1x8x1xf32> to vector<8x1xf32>
      %155 = vector.shape_cast %129 : vector<8x1xf32> to vector<1x8x1xf32>
      tpu.vector_store %arg8[%c2_102, %c0_103, %c0_104], %155 {strides = array<i32>} : memref<4x8x1xf32, #tpu.memory_space<vmem>>, vector<1x8x1xf32>,
      %c0_105 = arith.constant 0 : index
      %c0_106 = arith.constant 0 : index
      %c24 = arith.constant 24 : index
      %156 = vector.load %arg3[%c0_105, %c0_106, %c24] : memref<1x8x32xf32, #tpu.memory_space<vmem>>, vector<1x8x8xf32>
      %157 = vector.shape_cast %156 : vector<1x8x8xf32> to vector<8x8xf32>
      %c0_107 = arith.constant 0 : index
      %c0_108 = arith.constant 0 : index
      %c24_109 = arith.constant 24 : index
      %158 = vector.load %arg4[%c0_107, %c0_108, %c24_109] : memref<1x8x32xf32, #tpu.memory_space<vmem>>, vector<1x8x8xf32>
      %159 = vector.shape_cast %158 : vector<1x8x8xf32> to vector<8x8xf32>
      %c0_110 = arith.constant 0 : index
      %c0_111 = arith.constant 0 : index
      %c24_112 = arith.constant 24 : index
      %160 = vector.load %arg5[%c0_110, %c0_111, %c24_112] : memref<1x8x32xf32, #tpu.memory_space<vmem>>, vector<1x8x8xf32>
      %161 = vector.shape_cast %160 : vector<1x8x8xf32> to vector<8x8xf32>
      %cst_113 = arith.constant dense<0.000000e+00> : vector<8x8xf32>
      %162 = tpu.matmul %157, %159, %cst_113 {dimension_numbers = #tpu.dot_dimension_numbers<[1], [1], [0], [0], [0, 0, 1, 0], [], []>} : vector<8x8xf32>, vector<8x8xf32>, vector<8x8xf32> -> vector<8x8xf32>
      %cst_114 = arith.constant -1.000000e+20 : f32
      %163 = vector.broadcast %cst_114 : f32 to vector<8x8xf32>
      %164 = arith.select %29, %162, %163 : vector<8x8xi1>, vector<8x8xf32>
      %cst_115 = arith.constant 0.176776692 : f32
      %165 = vector.broadcast %cst_115 : f32 to vector<8x8xf32>
      %166 = arith.mulf %164, %165 : vector<8x8xf32>
      %c3 = arith.constant 3 : index
      %c0_116 = arith.constant 0 : index
      %c0_117 = arith.constant 0 : index
      %167 = vector.load %arg8[%c3, %c0_116, %c0_117] : memref<4x8x1xf32, #tpu.memory_space<vmem>>, vector<1x8x1xf32>
      %168 = vector.shape_cast %167 : vector<1x8x1xf32> to vector<8x1xf32>
      %cst_118 = arith.constant dense<0xFF800000> : vector<8xf32>
      %169 = vector.multi_reduction <maximumf>, %166, %cst_118 [1] : vector<8x8xf32> to vector<8xf32>
      %170 = vector.shape_cast %169 : vector<8xf32> to vector<8x1xf32>
      %171 = arith.maximumf %168, %170 : vector<8x1xf32>
      %172 = arith.subf %168, %171 : vector<8x1xf32>
      %173 = math.exp %172 : vector<8x1xf32>
      %174 = vector.broadcast %171 : vector<8x1xf32> to vector<8x8xf32>
      %175 = arith.subf %166, %174 : vector<8x8xf32>
      %176 = math.exp %175 : vector<8x8xf32>
      %c3_119 = arith.constant 3 : index
      %c0_120 = arith.constant 0 : index
      %c0_121 = arith.constant 0 : index
      %177 = vector.load %arg9[%c3_119, %c0_120, %c0_121] : memref<4x8x1xf32, #tpu.memory_space<vmem>>, vector<1x8x1xf32>
      %178 = vector.shape_cast %177 : vector<1x8x1xf32> to vector<8x1xf32>
      %179 = arith.mulf %173, %178 : vector<8x1xf32>
      %cst_122 = arith.constant dense<0.000000e+00> : vector<8xf32>
      %180 = vector.multi_reduction <add>, %176, %cst_122 [1] : vector<8x8xf32> to vector<8xf32>
      %181 = vector.shape_cast %180 : vector<8xf32> to vector<8x1xf32>
      %182 = arith.addf %179, %181 : vector<8x1xf32>
      %c3_123 = arith.constant 3 : index
      %c0_124 = arith.constant 0 : index
      %c0_125 = arith.constant 0 : index
      %183 = vector.load %arg9[%c3_123, %c0_124, %c0_125] : memref<4x8x1xf32, #tpu.memory_space<vmem>>, vector<1x8x1xf32>
      %184 = vector.shape_cast %183 : vector<1x8x1xf32> to vector<8x1xf32>
      %185 = vector.shape_cast %182 : vector<8x1xf32> to vector<1x8x1xf32>
      tpu.vector_store %arg9[%c3_123, %c0_124, %c0_125], %185 {strides = array<i32>} : memref<4x8x1xf32, #tpu.memory_space<vmem>>, vector<1x8x1xf32>,
      %c3_126 = arith.constant 3 : index
      %c0_127 = arith.constant 0 : index
      %c0_128 = arith.constant 0 : index
      %186 = vector.load %arg10[%c3_126, %c0_127, %c0_128] : memref<4x8x8xf32, #tpu.memory_space<vmem>>, vector<1x8x8xf32>
      %187 = vector.shape_cast %186 : vector<1x8x8xf32> to vector<8x8xf32>
      %188 = vector.broadcast %173 : vector<8x1xf32> to vector<8x8xf32>
      %189 = arith.mulf %188, %187 : vector<8x8xf32>
      %cst_129 = arith.constant dense<0.000000e+00> : vector<8x8xf32>
      %190 = tpu.matmul %176, %161, %cst_129 {dimension_numbers = #tpu.dot_dimension_numbers<[1], [0], [0], [1], [0, 0, 1, 1], [], []>} : vector<8x8xf32>, vector<8x8xf32>, vector<8x8xf32> -> vector<8x8xf32>
      %191 = arith.addf %189, %190 : vector<8x8xf32>
      %c3_130 = arith.constant 3 : index
      %c0_131 = arith.constant 0 : index
      %c0_132 = arith.constant 0 : index
      %192 = vector.load %arg10[%c3_130, %c0_131, %c0_132] : memref<4x8x8xf32, #tpu.memory_space<vmem>>, vector<1x8x8xf32>
      %193 = vector.shape_cast %192 : vector<1x8x8xf32> to vector<8x8xf32>
      %194 = vector.shape_cast %191 : vector<8x8xf32> to vector<1x8x8xf32>
      tpu.vector_store %arg10[%c3_130, %c0_131, %c0_132], %194 {strides = array<i32>} : memref<4x8x8xf32, #tpu.memory_space<vmem>>, vector<1x8x8xf32>,
      %c3_133 = arith.constant 3 : index
      %c0_134 = arith.constant 0 : index
      %c0_135 = arith.constant 0 : index
      %195 = vector.load %arg8[%c3_133, %c0_134, %c0_135] : memref<4x8x1xf32, #tpu.memory_space<vmem>>, vector<1x8x1xf32>
      %196 = vector.shape_cast %195 : vector<1x8x1xf32> to vector<8x1xf32>
      %197 = vector.shape_cast %171 : vector<8x1xf32> to vector<1x8x1xf32>
      tpu.vector_store %arg8[%c3_133, %c0_134, %c0_135], %197 {strides = array<i32>} : memref<4x8x1xf32, #tpu.memory_space<vmem>>, vector<1x8x1xf32>,
    } else {
    }
    %c0_i32_3 = arith.constant 0 : i32
    %9 = arith.cmpi eq, %arg2, %c0_i32_3 : i32
    %10 = arith.extui %9 : i1 to i32
    %c0_i32_4 = arith.constant 0 : i32
    %11 = arith.cmpi ne, %10, %c0_i32_4 : i32
    scf.if %11 {
      %c0 = arith.constant 0 : index
      %c0_5 = arith.constant 0 : index
      %c0_6 = arith.constant 0 : index
      %12 = vector.load %arg9[%c0, %c0_5, %c0_6] : memref<4x8x1xf32, #tpu.memory_space<vmem>>, vector<1x8x1xf32>
      %13 = vector.shape_cast %12 : vector<1x8x1xf32> to vector<8x1xf32>
      %14 = tpu.reciprocal %13 {approx = true} : vector<8x1xf32> -> vector<8x1xf32>
      %c0_7 = arith.constant 0 : index
      %c0_8 = arith.constant 0 : index
      %c0_9 = arith.constant 0 : index
      %15 = vector.load %arg10[%c0_7, %c0_8, %c0_9] : memref<4x8x8xf32, #tpu.memory_space<vmem>>, vector<1x8x8xf32>
      %16 = vector.shape_cast %15 : vector<1x8x8xf32> to vector<8x8xf32>
      %17 = vector.broadcast %14 : vector<8x1xf32> to vector<8x8xf32>
      %18 = arith.mulf %16, %17 : vector<8x8xf32>
      %c1 = arith.constant 1 : index
      %c0_10 = arith.constant 0 : index
      %c0_11 = arith.constant 0 : index
      %19 = vector.load %arg9[%c1, %c0_10, %c0_11] : memref<4x8x1xf32, #tpu.memory_space<vmem>>, vector<1x8x1xf32>
      %20 = vector.shape_cast %19 : vector<1x8x1xf32> to vector<8x1xf32>
      %21 = tpu.reciprocal %20 {approx = true} : vector<8x1xf32> -> vector<8x1xf32>
      %c1_12 = arith.constant 1 : index
      %c0_13 = arith.constant 0 : index
      %c0_14 = arith.constant 0 : index
      %22 = vector.load %arg10[%c1_12, %c0_13, %c0_14] : memref<4x8x8xf32, #tpu.memory_space<vmem>>, vector<1x8x8xf32>
      %23 = vector.shape_cast %22 : vector<1x8x8xf32> to vector<8x8xf32>
      %24 = vector.broadcast %21 : vector<8x1xf32> to vector<8x8xf32>
      %25 = arith.mulf %23, %24 : vector<8x8xf32>
      %c2 = arith.constant 2 : index
      %c0_15 = arith.constant 0 : index
      %c0_16 = arith.constant 0 : index
      %26 = vector.load %arg9[%c2, %c0_15, %c0_16] : memref<4x8x1xf32, #tpu.memory_space<vmem>>, vector<1x8x1xf32>
      %27 = vector.shape_cast %26 : vector<1x8x1xf32> to vector<8x1xf32>
      %28 = tpu.reciprocal %27 {approx = true} : vector<8x1xf32> -> vector<8x1xf32>
      %c2_17 = arith.constant 2 : index
      %c0_18 = arith.constant 0 : index
      %c0_19 = arith.constant 0 : index
      %29 = vector.load %arg10[%c2_17, %c0_18, %c0_19] : memref<4x8x8xf32, #tpu.memory_space<vmem>>, vector<1x8x8xf32>
      %30 = vector.shape_cast %29 : vector<1x8x8xf32> to vector<8x8xf32>
      %31 = vector.broadcast %28 : vector<8x1xf32> to vector<8x8xf32>
      %32 = arith.mulf %30, %31 : vector<8x8xf32>
      %c3 = arith.constant 3 : index
      %c0_20 = arith.constant 0 : index
      %c0_21 = arith.constant 0 : index
      %33 = vector.load %arg9[%c3, %c0_20, %c0_21] : memref<4x8x1xf32, #tpu.memory_space<vmem>>, vector<1x8x1xf32>
      %34 = vector.shape_cast %33 : vector<1x8x1xf32> to vector<8x1xf32>
      %35 = tpu.reciprocal %34 {approx = true} : vector<8x1xf32> -> vector<8x1xf32>
      %c3_22 = arith.constant 3 : index
      %c0_23 = arith.constant 0 : index
      %c0_24 = arith.constant 0 : index
      %36 = vector.load %arg10[%c3_22, %c0_23, %c0_24] : memref<4x8x8xf32, #tpu.memory_space<vmem>>, vector<1x8x8xf32>
      %37 = vector.shape_cast %36 : vector<1x8x8xf32> to vector<8x8xf32>
      %38 = vector.broadcast %35 : vector<8x1xf32> to vector<8x8xf32>
      %39 = arith.mulf %37, %38 : vector<8x8xf32>
      %40 = tpu.concatenate %18, %25, %32, %39 in 1 : vector<8x8xf32>, vector<8x8xf32>, vector<8x8xf32>, vector<8x8xf32> -> vector<8x32xf32>
      %c0_25 = arith.constant 0 : index
      %c0_26 = arith.constant 0 : index
      %c0_27 = arith.constant 0 : index
      %41 = vector.load %arg7[%c0_25, %c0_26, %c0_27] : memref<1x8x32xf32, #tpu.memory_space<vmem>>, vector<1x8x32xf32>
      %42 = vector.shape_cast %41 : vector<1x8x32xf32> to vector<8x32xf32>
      %43 = vector.shape_cast %40 : vector<8x32xf32> to vector<1x8x32xf32>
      tpu.vector_store %arg7[%c0_25, %c0_26, %c0_27], %43 {strides = array<i32>} : memref<1x8x32xf32, #tpu.memory_space<vmem>>, vector<1x8x32xf32>,
    } else {
    }
    return
  }
  func.func @transform_0(%arg0: i32, %arg1: i32, %arg2: i32) -> (i32, i32, i32) {
    %c0_i32 = arith.constant 0 : i32
    %c0_i32_0 = arith.constant 0 : i32
    return %arg0, %arg1, %c0_i32 : i32, i32, i32
  }
  func.func @transform_1(%arg0: i32, %arg1: i32, %arg2: i32) -> (i32, i32, i32) {
    %c0_i32 = arith.constant 0 : i32
    %c0_i32_0 = arith.constant 0 : i32
    return %arg0, %arg2, %c0_i32 : i32, i32, i32
  }
  func.func @transform_2(%arg0: i32, %arg1: i32, %arg2: i32) -> (i32, i32, i32) {
    %c0_i32 = arith.constant 0 : i32
    %c0_i32_0 = arith.constant 0 : i32
    return %arg0, %arg2, %c0_i32 : i32, i32, i32
  }
  func.func @transform_3(%arg0: i32, %arg1: i32, %arg2: i32) -> (i32, i32, i32) {
    %c0_i32 = arith.constant 0 : i32
    %c0_i32_0 = arith.constant 0 : i32
    return %arg0, %c0_i32, %arg2 : i32, i32, i32
  }
  func.func @transform_4(%arg0: i32, %arg1: i32, %arg2: i32) -> (i32, i32, i32) {
    %c0_i32 = arith.constant 0 : i32
    %c0_i32_0 = arith.constant 0 : i32
    return %arg0, %arg1, %c0_i32 : i32, i32, i32
  }
}

</mosaic_0001>

<llo_original>
// kernel: transformer_fwd.27
$region0: #{transformer_fwd.27}
  #allocation0 [shape = 'u32[]', space=smem, size = 0x4, offset = 0x4, fixed_abs, tag = 'smem constant byte address 0x4 - core index']
  #allocation1 [shape = 'u32[144,128]{1,0:T(1,128)}', space=vmem, size = 0x12000, scoped, tag = 'internal scratch']
  %s0 = inlined_call_operand.vmem [shape: f32[16,32], index: 0, kind: input, shape index: {}]
  %s1 = inlined_call_operand.vmem [shape: f32[32,32], index: 1, kind: input, shape index: {}]
  %s2 = inlined_call_operand.vmem [shape: f32[1,32], index: 2, kind: input, shape index: {}]
  %s3 = inlined_call_operand.vmem [shape: f32[16,32], index: 3, kind: input, shape index: {}]
  %s4 = inlined_call_operand.vmem [shape: f32[1,32], index: 4, kind: input, shape index: {}]
  %s5 = inlined_call_operand.vmem [shape: f32[1,32], index: 5, kind: input, shape index: {}]
  %s6 = inlined_call_operand.vmem [shape: f32[16,32], index: 6, kind: output, shape index: {}]
  %s7 = sld [smem:[#allocation0]]
  $region34: #{transformer_fwd.27} parent=0
    _
  %s9 = ssub.s32 1, %s7
  %s10 = scalar_select 0, %s9, %s7
  // Predicated region
  $region2: #{transformer_fwd.27} parent=0 // pred_check
    _
  $region3: #{transformer_fwd.27} parent=0 // pred_check_branch
    %12 = sbr.rel (0) target = $region5
  $region4: #{transformer_fwd.27} parent=0 // pred_region
    _
  $region5: #{transformer_fwd.27} parent=0 // pred_fallthru
    _
  // Predicated region
  $region6: #{transformer_fwd.27} parent=0 // pred_check
    _
  $region7: #{transformer_fwd.27} parent=0 // pred_check_branch
    %14 = sbr.rel (0) target = $region9
  $region8: #{transformer_fwd.27} parent=0 // pred_region
    _
  $region9: #{transformer_fwd.27} parent=0 // pred_fallthru
    _
  // Predicated region
  $region10: #{transformer_fwd.27} parent=0 // pred_check
    _
  $region11: #{transformer_fwd.27} parent=0 // pred_check_branch
    %16 = sbr.rel (0) target = $region13
  $region12: #{transformer_fwd.27} parent=0 // pred_region
    _
  $region13: #{transformer_fwd.27} parent=0 // pred_fallthru
    _
  // Predicated region
  $region14: #{transformer_fwd.27} parent=0 // pred_check
    _
  $region15: #{transformer_fwd.27} parent=0 // pred_check_branch
    %18 = sbr.rel (0) target = $region17
  $region16: #{transformer_fwd.27} parent=0 // pred_region
    _
  $region17: #{transformer_fwd.27} parent=0 // pred_fallthru
    _
  // Predicated region
  $region18: #{transformer_fwd.27} parent=0 // pred_check
    _
  $region19: #{transformer_fwd.27} parent=0 // pred_check_branch
    %20 = sbr.rel (0) target = $region21
  $region20: #{transformer_fwd.27} parent=0 // pred_region
    _
  $region21: #{transformer_fwd.27} parent=0 // pred_fallthru
    _
  // Predicated region
  $region22: #{transformer_fwd.27} parent=0 // pred_check
    _
  $region23: #{transformer_fwd.27} parent=0 // pred_check_branch
    %22 = sbr.rel (0) target = $region25
  $region24: #{transformer_fwd.27} parent=0 // pred_region
    _
  $region25: #{transformer_fwd.27} parent=0 // pred_fallthru
    _
  %v23 = vld [vmem:[%s0] sm:$0xff]
  %v24 = vld [vmem:[%s0 + $0x8] sm:$0xff]
  %v25 = vld [vmem:[%s1] sm:$0xff]
  %v26 = vld [vmem:[%s1 + $0x8] sm:$0xff]
  %v27 = vld [vmem:[%s1 + $0x10] sm:$0xff]
  %v28 = vld [vmem:[%s1 + $0x18] sm:$0xff]
  %v29 = vld [vmem:[%s2] sm:$0x1]
  %v31 = vlaneseq
  %v32 = vshrl.u32 %v31, 7
  %v33 = vsub.s32 0, %v32
  %v34 = vrot.slane %v29, %v33
  %vm36 = vcmask 261120
  %v38 = vsel %vm36, %v23, 0
  %v41 = vsel %vm36, %v24, 0
  %43 = vmatprep.subr.mxu0 0.0
  %44 = vmatpush1.msra.mxu0 %v25
  %45 = vmatprep.subr.mxu0 0.0
  %46 = vmatpush1.msra.mxu0 %v26
  %47 = vmatprep.subr.mxu0 0.0
  %48 = vmatpush1.msra.mxu0 %v27
  %49 = vmatprep.subr.mxu0 0.0
  %50 = vmatpush1.msra.mxu0 %v28
  %51 = vmatprep.subr.mxu0 0.0
  %52 = vmatpush1.msra.mxu0 0.0
  %53 = vmatprep.subr.mxu0 0.0
  %54 = vmatpush1.msra.mxu0 0.0
  %55 = vmatprep.subr.mxu0 0.0
  %56 = vmatpush1.msra.mxu0 0.0
  %57 = vmatprep.subr.mxu0 0.0
  %58 = vmatpush1.msra.mxu0 0.0
  %59 = vmatprep.subr.mxu0 0.0
  %60 = vmatpush1.msra.mxu0 0.0
  %61 = vmatprep.subr.mxu0 0.0
  %62 = vmatpush1.msra.mxu0 0.0
  %63 = vmatprep.subr.mxu0 0.0
  %64 = vmatpush1.msra.mxu0 0.0
  %65 = vmatprep.subr.mxu0 0.0
  %66 = vmatpush1.msra.mxu0 0.0
  %67 = vmatprep.subr.mxu0 0.0
  %68 = vmatpush1.msra.mxu0 0.0
  %69 = vmatprep.subr.mxu0 0.0
  %70 = vmatpush1.msra.mxu0 0.0
  %71 = vmatprep.subr.mxu0 0.0
  %72 = vmatpush1.msra.mxu0 0.0
  %73 = vmatprep.subr.mxu0 0.0
  %74 = vmatpush1.msra.mxu0 0.0
  %75 = vmatprep.subr.mxu0 0.0
  %76 = vmatpush1.msra.mxu0 0.0
  %77 = vmatprep.subr.mxu0 0.0
  %78 = vmatpush1.msra.mxu0 0.0
  %79 = vmatprep.subr.mxu0 0.0
  %80 = vmatpush1.msra.mxu0 0.0
  %81 = vmatprep.subr.mxu0 0.0
  %82 = vmatpush1.msra.mxu0 0.0
  %83 = vmatprep.subr.mxu0 0.0
  %84 = vmatpush1.msra.mxu0 0.0
  %85 = vmatprep.subr.mxu0 0.0
  %86 = vmatpush1.msra.mxu0 0.0
  %87 = vmatprep.subr.mxu0 0.0
  %88 = vmatpush1.msra.mxu0 0.0
  %89 = vmatprep.subr.mxu0 0.0
  %90 = vmatpush1.msra.mxu0 0.0
  %91 = vmatprep.subr.mxu0 0.0
  %92 = vmatpush1.msra.mxu0 0.0
  %93 = vmatprep.subr.mxu0 0.0
  %94 = vmatpush1.msra.mxu0 0.0
  %95 = vmatprep.subr.mxu0 0.0
  %96 = vmatpush1.msra.mxu0 0.0
  %97 = vmatprep.subr.mxu0 0.0
  %98 = vmatpush1.msra.mxu0 0.0
  %99 = vmatprep.subr.mxu0 0.0
  %100 = vmatpush1.msra.mxu0 0.0
  %101 = vmatprep.subr.mxu0 0.0
  %102 = vmatpush1.msra.mxu0 0.0
  %103 = vmatprep.subr.mxu0 0.0
  %104 = vmatpush1.msra.mxu0 0.0
  %105 = vmatprep.subr.mxu0 0.0
  %106 = vmatpush1.msra.mxu0 0.0
  %107 = vmatprep.mubr.f32.mxu0 0.0
  %108 = vmatmul.mubr.f32.gmra.mrb[0].mxu0 %v38
  %v109 = vpop.f32.mrb[0].mxu0
  %v110 = vadd.f32 %v34, %v109
  %v111 = vpop.f32.mrb[0].mxu0
  %112 = vmatprep.mubr.f32.mxu0 0.0
  %113 = vmatmul.mubr.f32.gmra.mrb[0].mxu0 %v41
  %v114 = vpop.f32.mrb[0].mxu0
  %v115 = vadd.f32 %v34, %v114
  %v116 = vpop.f32.mrb[0].mxu0
  %117 = vdwg.mxu0
  %v118 = vld [vmem:[%s3] sm:$0xff]
  %v119 = vld [vmem:[%s3 + $0x8] sm:$0xff]
  %v120 = vadd.f32 %v110, %v118
  %v121 = vadd.f32 %v115, %v119
  %v122 = vsel %vm36, %v120, 0.0
  %123 = vadd.xlane.f32.xlu0 %v122
  %v124 = vpop.xlane.xlu0 %123
  %v125 = vsel %vm36, %v121, 0.0
  %126 = vadd.xlane.f32.xlu0 %v125
  %v127 = vpop.xlane.xlu0 %126
  %v128 = vrcp.pop 32.0
  %v129 = vmul.f32 %v124, %v128
  %v130 = vmul.f32 %v127, %v128
  %v131 = vsub.f32 %v120, %v129
  %v132 = vsub.f32 %v121, %v130
  %v133 = vmul.f32 %v131, %v131
  %v134 = vmul.f32 %v132, %v132
  %v135 = vsel %vm36, %v133, 0.0
  %136 = vadd.xlane.f32.xlu0 %v135
  %v137 = vpop.xlane.xlu0 %136
  %v138 = vsel %vm36, %v134, 0.0
  %139 = vadd.xlane.f32.xlu0 %v138
  %v140 = vpop.xlane.xlu0 %139
  %v141 = vmul.f32 %v137, %v128
  %v142 = vmul.f32 %v140, %v128
  %v143 = vadd.f32 %v141, 1e-05
  %v144 = vadd.f32 %v142, 1e-05
  %v145 = vrsqrt.pop %v143
  %v146 = vrsqrt.pop %v144
  %v147 = vmul.f32 %v131, %v145
  %v148 = vmul.f32 %v132, %v146
  %v149 = vld [vmem:[%s4] sm:$0x1]
  %v151 = vlaneseq
  %v152 = vshrl.u32 %v151, 7
  %v153 = vsub.s32 0, %v152
  %v154 = vrot.slane %v149, %v153
  %v156 = vmul.f32 %v147, %v154
  %v157 = vmul.f32 %v148, %v154
  %v158 = vld [vmem:[%s5] sm:$0x1]
  %v160 = vlaneseq
  %v161 = vshrl.u32 %v160, 7
  %v162 = vsub.s32 0, %v161
  %v163 = vrot.slane %v158, %v162
  %v165 = vadd.f32 %v156, %v163
  %v166 = vadd.f32 %v157, %v163
  %167 = vst.msk [vmem:[%s6] sm:$0xff] %vm36, %v165
  %168 = vst.msk [vmem:[%s6 + $0x8] sm:$0xff] %vm36, %v166
  // Predicated region
  $region26: #{transformer_fwd.27} parent=0 // pred_check
    _
  $region27: #{transformer_fwd.27} parent=0 // pred_check_branch
    %170 = sbr.rel (0) target = $region29
  $region28: #{transformer_fwd.27} parent=0 // pred_region
    _
  $region29: #{transformer_fwd.27} parent=0 // pred_fallthru
    _
  // Predicated region
  $region30: #{transformer_fwd.27} parent=0 // pred_check
    _
  $region31: #{transformer_fwd.27} parent=0 // pred_check_branch
    %172 = sbr.rel (0) target = $region33
  $region32: #{transformer_fwd.27} parent=0 // pred_region
    _
  $region33: #{transformer_fwd.27} parent=0 // pred_fallthru
    _

// kernel: transformer_fwd.25
$region0: #{transformer_fwd.25}
  #allocation0 [shape = 'u32[]', space=smem, size = 0x4, offset = 0x4, fixed_abs, tag = 'smem constant byte address 0x4 - core index']
  #allocation1 [shape = 'u32[144,128]{1,0:T(1,128)}', space=vmem, size = 0x12000, scoped, tag = 'internal scratch']
  #allocation2 [shape = 'f32[16,128]{1,0:T(8,128)}', space=vmem, size = 0x2000, scoped, tag = 'scratch operand']
  %s0 = inlined_call_operand.vmem [shape: f32[16,128], index: 0, kind: input, shape index: {}]
  %s1 = inlined_call_operand.vmem [shape: f32[128,128], index: 1, kind: input, shape index: {}]
  %s2 = inlined_call_operand.vmem [shape: f32[1,128], index: 2, kind: input, shape index: {}]
  %s3 = inlined_call_operand.vmem [shape: f32[16,128], index: 3, kind: output, shape index: {}]
  %s4 = sld [smem:[#allocation0]]
  $region30: #{transformer_fwd.25} parent=0
    _
  %s6 = ssub.s32 1, %s4
  %s7 = scalar_select 0, %s6, %s4
  // Predicated region
  $region2: #{transformer_fwd.25} parent=0 // pred_check
    _
  $region3: #{transformer_fwd.25} parent=0 // pred_check_branch
    %9 = sbr.rel (0) target = $region5
  $region4: #{transformer_fwd.25} parent=0 // pred_region
    _
  $region5: #{transformer_fwd.25} parent=0 // pred_fallthru
    _
  // Predicated region
  $region6: #{transformer_fwd.25} parent=0 // pred_check
    _
  $region7: #{transformer_fwd.25} parent=0 // pred_check_branch
    %11 = sbr.rel (0) target = $region9
  $region8: #{transformer_fwd.25} parent=0 // pred_region
    _
  $region9: #{transformer_fwd.25} parent=0 // pred_fallthru
    _
  // Predicated region
  $region10: #{transformer_fwd.25} parent=0 // pred_check
    _
  $region11: #{transformer_fwd.25} parent=0 // pred_check_branch
    %13 = sbr.rel (0) target = $region13
  $region12: #{transformer_fwd.25} parent=0 // pred_region
    _
  $region13: #{transformer_fwd.25} parent=0 // pred_fallthru
    _
  %p14 = scmp.eq.s32.totalorder 0, 0
  // Predicated region
  $region14: #{transformer_fwd.25} parent=0 // pred_check
    %p15 = pneg %p14
  $region15: #{transformer_fwd.25} parent=0 // pred_check_branch
    %17 = sbr.rel (%p15) target = $region17
  $region16: #{transformer_fwd.25} parent=0 // pred_region
    %18 = vst [vmem:[#allocation2] sm:$0xff] 0.0
    %19 = vst [vmem:[#allocation2 + $0x8] sm:$0xff] 0.0
  $region17: #{transformer_fwd.25} parent=0 // pred_fallthru
    _
  %v20 = vld [vmem:[#allocation2] sm:$0xff]
  %v21 = vld [vmem:[#allocation2 + $0x8] sm:$0xff]
  %v22 = vld [vmem:[%s0] sm:$0xff]
  %v23 = vld [vmem:[%s0 + $0x8] sm:$0xff]
  %v24 = vld [vmem:[%s1] sm:$0xff]
  %v25 = vld [vmem:[%s1 + $0x8] sm:$0xff]
  %v26 = vld [vmem:[%s1 + $0x10] sm:$0xff]
  %v27 = vld [vmem:[%s1 + $0x18] sm:$0xff]
  %v28 = vld [vmem:[%s1 + $0x20] sm:$0xff]
  %v29 = vld [vmem:[%s1 + $0x28] sm:$0xff]
  %v30 = vld [vmem:[%s1 + $0x30] sm:$0xff]
  %v31 = vld [vmem:[%s1 + $0x38] sm:$0xff]
  %v32 = vld [vmem:[%s1 + $0x40] sm:$0xff]
  %v33 = vld [vmem:[%s1 + $0x48] sm:$0xff]
  %v34 = vld [vmem:[%s1 + $0x50] sm:$0xff]
  %v35 = vld [vmem:[%s1 + $0x58] sm:$0xff]
  %v36 = vld [vmem:[%s1 + $0x60] sm:$0xff]
  %v37 = vld [vmem:[%s1 + $0x68] sm:$0xff]
  %v38 = vld [vmem:[%s1 + $0x70] sm:$0xff]
  %v39 = vld [vmem:[%s1 + $0x78] sm:$0xff]
  %40 = vmatprep.subr.mxu0 0.0
  %41 = vmatpush1.msra.mxu0 %v24
  %42 = vmatprep.subr.mxu0 0.0
  %43 = vmatpush1.msra.mxu0 %v25
  %44 = vmatprep.subr.mxu0 0.0
  %45 = vmatpush1.msra.mxu0 %v26
  %46 = vmatprep.subr.mxu0 0.0
  %47 = vmatpush1.msra.mxu0 %v27
  %48 = vmatprep.subr.mxu0 0.0
  %49 = vmatpush1.msra.mxu0 %v28
  %50 = vmatprep.subr.mxu0 0.0
  %51 = vmatpush1.msra.mxu0 %v29
  %52 = vmatprep.subr.mxu0 0.0
  %53 = vmatpush1.msra.mxu0 %v30
  %54 = vmatprep.subr.mxu0 0.0
  %55 = vmatpush1.msra.mxu0 %v31
  %56 = vmatprep.subr.mxu0 0.0
  %57 = vmatpush1.msra.mxu0 %v32
  %58 = vmatprep.subr.mxu0 0.0
  %59 = vmatpush1.msra.mxu0 %v33
  %60 = vmatprep.subr.mxu0 0.0
  %61 = vmatpush1.msra.mxu0 %v34
  %62 = vmatprep.subr.mxu0 0.0
  %63 = vmatpush1.msra.mxu0 %v35
  %64 = vmatprep.subr.mxu0 0.0
  %65 = vmatpush1.msra.mxu0 %v36
  %66 = vmatprep.subr.mxu0 0.0
  %67 = vmatpush1.msra.mxu0 %v37
  %68 = vmatprep.subr.mxu0 0.0
  %69 = vmatpush1.msra.mxu0 %v38
  %70 = vmatprep.subr.mxu0 0.0
  %71 = vmatpush1.msra.mxu0 %v39
  %72 = vmatprep.subr.mxu0 0.0
  %73 = vmatpush1.msra.mxu0 0.0
  %74 = vmatprep.subr.mxu0 0.0
  %75 = vmatpush1.msra.mxu0 0.0
  %76 = vmatprep.subr.mxu0 0.0
  %77 = vmatpush1.msra.mxu0 0.0
  %78 = vmatprep.subr.mxu0 0.0
  %79 = vmatpush1.msra.mxu0 0.0
  %80 = vmatprep.subr.mxu0 0.0
  %81 = vmatpush1.msra.mxu0 0.0
  %82 = vmatprep.subr.mxu0 0.0
  %83 = vmatpush1.msra.mxu0 0.0
  %84 = vmatprep.subr.mxu0 0.0
  %85 = vmatpush1.msra.mxu0 0.0
  %86 = vmatprep.subr.mxu0 0.0
  %87 = vmatpush1.msra.mxu0 0.0
  %88 = vmatprep.subr.mxu0 0.0
  %89 = vmatpush1.msra.mxu0 0.0
  %90 = vmatprep.subr.mxu0 0.0
  %91 = vmatpush1.msra.mxu0 0.0
  %92 = vmatprep.subr.mxu0 0.0
  %93 = vmatpush1.msra.mxu0 0.0
  %94 = vmatprep.subr.mxu0 0.0
  %95 = vmatpush1.msra.mxu0 0.0
  %96 = vmatprep.subr.mxu0 0.0
  %97 = vmatpush1.msra.mxu0 0.0
  %98 = vmatprep.subr.mxu0 0.0
  %99 = vmatpush1.msra.mxu0 0.0
  %100 = vmatprep.subr.mxu0 0.0
  %101 = vmatpush1.msra.mxu0 0.0
  %102 = vmatprep.subr.mxu0 0.0
  %103 = vmatpush1.msra.mxu0 0.0
  %104 = vmatprep.mubr.f32.mxu0 0.0
  %105 = vmatmul.mubr.f32.gmra.mrb[0].mxu0 %v22
  %v106 = vpop.f32.mrb[0].mxu0
  %v107 = vadd.f32 0.0, %v106
  %v108 = vpop.f32.mrb[0].mxu0
  %109 = vmatprep.mubr.f32.mxu0 0.0
  %110 = vmatmul.mubr.f32.gmra.mrb[0].mxu0 %v23
  %v111 = vpop.f32.mrb[0].mxu0
  %v112 = vadd.f32 0.0, %v111
  %v113 = vpop.f32.mrb[0].mxu0
  %114 = vdwg.mxu0
  %v115 = vadd.f32 %v20, %v107
  %v116 = vadd.f32 %v21, %v112
  %117 = vst [vmem:[#allocation2] sm:$0xff] %v115
  %118 = vst [vmem:[#allocation2 + $0x8] sm:$0xff] %v116
  // Predicated region
  $region18: #{transformer_fwd.25} parent=0 // pred_check
    %p119 = pneg %p14
  $region19: #{transformer_fwd.25} parent=0 // pred_check_branch
    %121 = sbr.rel (%p119) target = $region21
  $region20: #{transformer_fwd.25} parent=0 // pred_region
    %v122 = vld [vmem:[#allocation2] sm:$0xff]
    %v123 = vld [vmem:[#allocation2 + $0x8] sm:$0xff]
    %v124 = vld [vmem:[%s2] sm:$0x1]
    %v126 = vlaneseq
    %v127 = vshrl.u32 %v126, 7
    %v128 = vsub.s32 0, %v127
    %v129 = vrot.slane %v124, %v128
    %v131 = vadd.f32 %v122, %v129
    %v132 = vadd.f32 %v123, %v129
    %133 = vst [vmem:[%s3] sm:$0xff] %v131
    %134 = vst [vmem:[%s3 + $0x8] sm:$0xff] %v132
  $region21: #{transformer_fwd.25} parent=0 // pred_fallthru
    _
  // Predicated region
  $region22: #{transformer_fwd.25} parent=0 // pred_check
    _
  $region23: #{transformer_fwd.25} parent=0 // pred_check_branch
    %136 = sbr.rel (0) target = $region25
  $region24: #{transformer_fwd.25} parent=0 // pred_region
    _
  $region25: #{transformer_fwd.25} parent=0 // pred_fallthru
    _
  // Predicated region
  $region26: #{transformer_fwd.25} parent=0 // pred_check
    _
  $region27: #{transformer_fwd.25} parent=0 // pred_check_branch
    %138 = sbr.rel (0) target = $region29
  $region28: #{transformer_fwd.25} parent=0 // pred_region
    _
  $region29: #{transformer_fwd.25} parent=0 // pred_fallthru
    _

// kernel: transformer_fwd.28
$region0: #{transformer_fwd.28}
  #allocation0 [shape = 'u32[]', space=smem, size = 0x4, offset = 0x4, fixed_abs, tag = 'smem constant byte address 0x4 - core index']
  #allocation1 [shape = 'u32[144,128]{1,0:T(1,128)}', space=vmem, size = 0x12000, scoped, tag = 'internal scratch']
  %s0 = inlined_call_operand.vmem [shape: f32[16,32], index: 0, kind: input, shape index: {}]
  %s1 = inlined_call_operand.vmem [shape: f32[32,128], index: 1, kind: input, shape index: {}]
  %s2 = inlined_call_operand.vmem [shape: f32[1,128], index: 2, kind: input, shape index: {}]
  %s3 = inlined_call_operand.vmem [shape: f32[128,32], index: 3, kind: input, shape index: {}]
  %s4 = inlined_call_operand.vmem [shape: f32[1,32], index: 4, kind: input, shape index: {}]
  %s5 = inlined_call_operand.vmem [shape: f32[1,32], index: 5, kind: input, shape index: {}]
  %s6 = inlined_call_operand.vmem [shape: f32[1,32], index: 6, kind: input, shape index: {}]
  %s7 = inlined_call_operand.vmem [shape: f32[16,32], index: 7, kind: output, shape index: {}]
  %s8 = sld [smem:[#allocation0]]
  $region38: #{transformer_fwd.28} parent=0
    _
  %s10 = ssub.s32 1, %s8
  %s11 = scalar_select 0, %s10, %s8
  // Predicated region
  $region2: #{transformer_fwd.28} parent=0 // pred_check
    _
  $region3: #{transformer_fwd.28} parent=0 // pred_check_branch
    %13 = sbr.rel (0) target = $region5
  $region4: #{transformer_fwd.28} parent=0 // pred_region
    _
  $region5: #{transformer_fwd.28} parent=0 // pred_fallthru
    _
  // Predicated region
  $region6: #{transformer_fwd.28} parent=0 // pred_check
    _
  $region7: #{transformer_fwd.28} parent=0 // pred_check_branch
    %15 = sbr.rel (0) target = $region9
  $region8: #{transformer_fwd.28} parent=0 // pred_region
    _
  $region9: #{transformer_fwd.28} parent=0 // pred_fallthru
    _
  // Predicated region
  $region10: #{transformer_fwd.28} parent=0 // pred_check
    _
  $region11: #{transformer_fwd.28} parent=0 // pred_check_branch
    %17 = sbr.rel (0) target = $region13
  $region12: #{transformer_fwd.28} parent=0 // pred_region
    _
  $region13: #{transformer_fwd.28} parent=0 // pred_fallthru
    _
  // Predicated region
  $region14: #{transformer_fwd.28} parent=0 // pred_check
    _
  $region15: #{transformer_fwd.28} parent=0 // pred_check_branch
    %19 = sbr.rel (0) target = $region17
  $region16: #{transformer_fwd.28} parent=0 // pred_region
    _
  $region17: #{transformer_fwd.28} parent=0 // pred_fallthru
    _
  // Predicated region
  $region18: #{transformer_fwd.28} parent=0 // pred_check
    _
  $region19: #{transformer_fwd.28} parent=0 // pred_check_branch
    %21 = sbr.rel (0) target = $region21
  $region20: #{transformer_fwd.28} parent=0 // pred_region
    _
  $region21: #{transformer_fwd.28} parent=0 // pred_fallthru
    _
  // Predicated region
  $region22: #{transformer_fwd.28} parent=0 // pred_check
    _
  $region23: #{transformer_fwd.28} parent=0 // pred_check_branch
    %23 = sbr.rel (0) target = $region25
  $region24: #{transformer_fwd.28} parent=0 // pred_region
    _
  $region25: #{transformer_fwd.28} parent=0 // pred_fallthru
    _
  // Predicated region
  $region26: #{transformer_fwd.28} parent=0 // pred_check
    _
  $region27: #{transformer_fwd.28} parent=0 // pred_check_branch
    %25 = sbr.rel (0) target = $region29
  $region28: #{transformer_fwd.28} parent=0 // pred_region
    _
  $region29: #{transformer_fwd.28} parent=0 // pred_fallthru
    _
  %v26 = vld [vmem:[%s0] sm:$0xff]
  %v27 = vld [vmem:[%s0 + $0x8] sm:$0xff]
  %v28 = vld [vmem:[%s1] sm:$0xff]
  %v29 = vld [vmem:[%s1 + $0x8] sm:$0xff]
  %v30 = vld [vmem:[%s1 + $0x10] sm:$0xff]
  %v31 = vld [vmem:[%s1 + $0x18] sm:$0xff]
  %v32 = vld [vmem:[%s2] sm:$0x1]
  %v34 = vlaneseq
  %v35 = vshrl.u32 %v34, 7
  %v36 = vsub.s32 0, %v35
  %v37 = vrot.slane %v32, %v36
  %vm39 = vcmask 261120
  %v41 = vsel %vm39, %v26, 0
  %v44 = vsel %vm39, %v27, 0
  %46 = vmatprep.subr.mxu0 0.0
  %47 = vmatpush1.msra.mxu0 %v28
  %48 = vmatprep.subr.mxu0 0.0
  %49 = vmatpush1.msra.mxu0 %v29
  %50 = vmatprep.subr.mxu0 0.0
  %51 = vmatpush1.msra.mxu0 %v30
  %52 = vmatprep.subr.mxu0 0.0
  %53 = vmatpush1.msra.mxu0 %v31
  %54 = vmatprep.subr.mxu0 0.0
  %55 = vmatpush1.msra.mxu0 0.0
  %56 = vmatprep.subr.mxu0 0.0
  %57 = vmatpush1.msra.mxu0 0.0
  %58 = vmatprep.subr.mxu0 0.0
  %59 = vmatpush1.msra.mxu0 0.0
  %60 = vmatprep.subr.mxu0 0.0
  %61 = vmatpush1.msra.mxu0 0.0
  %62 = vmatprep.subr.mxu0 0.0
  %63 = vmatpush1.msra.mxu0 0.0
  %64 = vmatprep.subr.mxu0 0.0
  %65 = vmatpush1.msra.mxu0 0.0
  %66 = vmatprep.subr.mxu0 0.0
  %67 = vmatpush1.msra.mxu0 0.0
  %68 = vmatprep.subr.mxu0 0.0
  %69 = vmatpush1.msra.mxu0 0.0
  %70 = vmatprep.subr.mxu0 0.0
  %71 = vmatpush1.msra.mxu0 0.0
  %72 = vmatprep.subr.mxu0 0.0
  %73 = vmatpush1.msra.mxu0 0.0
  %74 = vmatprep.subr.mxu0 0.0
  %75 = vmatpush1.msra.mxu0 0.0
  %76 = vmatprep.subr.mxu0 0.0
  %77 = vmatpush1.msra.mxu0 0.0
  %78 = vmatprep.subr.mxu0 0.0
  %79 = vmatpush1.msra.mxu0 0.0
  %80 = vmatprep.subr.mxu0 0.0
  %81 = vmatpush1.msra.mxu0 0.0
  %82 = vmatprep.subr.mxu0 0.0
  %83 = vmatpush1.msra.mxu0 0.0
  %84 = vmatprep.subr.mxu0 0.0
  %85 = vmatpush1.msra.mxu0 0.0
  %86 = vmatprep.subr.mxu0 0.0
  %87 = vmatpush1.msra.mxu0 0.0
  %88 = vmatprep.subr.mxu0 0.0
  %89 = vmatpush1.msra.mxu0 0.0
  %90 = vmatprep.subr.mxu0 0.0
  %91 = vmatpush1.msra.mxu0 0.0
  %92 = vmatprep.subr.mxu0 0.0
  %93 = vmatpush1.msra.mxu0 0.0
  %94 = vmatprep.subr.mxu0 0.0
  %95 = vmatpush1.msra.mxu0 0.0
  %96 = vmatprep.subr.mxu0 0.0
  %97 = vmatpush1.msra.mxu0 0.0
  %98 = vmatprep.subr.mxu0 0.0
  %99 = vmatpush1.msra.mxu0 0.0
  %100 = vmatprep.subr.mxu0 0.0
  %101 = vmatpush1.msra.mxu0 0.0
  %102 = vmatprep.subr.mxu0 0.0
  %103 = vmatpush1.msra.mxu0 0.0
  %104 = vmatprep.subr.mxu0 0.0
  %105 = vmatpush1.msra.mxu0 0.0
  %106 = vmatprep.subr.mxu0 0.0
  %107 = vmatpush1.msra.mxu0 0.0
  %108 = vmatprep.subr.mxu0 0.0
  %109 = vmatpush1.msra.mxu0 0.0
  %110 = vmatprep.mubr.f32.mxu0 0.0
  %111 = vmatmul.mubr.f32.gmra.mrb[0].mxu0 %v41
  %v112 = vpop.f32.mrb[0].mxu0
  %v113 = vadd.f32 %v37, %v112
  %v114 = vpop.f32.mrb[0].mxu0
  %115 = vmatprep.mubr.f32.mxu0 0.0
  %116 = vmatmul.mubr.f32.gmra.mrb[0].mxu0 %v44
  %v117 = vpop.f32.mrb[0].mxu0
  %v118 = vadd.f32 %v37, %v117
  %v119 = vpop.f32.mrb[0].mxu0
  %120 = vdwg.mxu0
  %v121 = vmax.f32 %v113, 0.0
  %v122 = vmax.f32 %v118, 0.0
  %v123 = vld [vmem:[%s3] sm:$0xff]
  %v124 = vld [vmem:[%s3 + $0x8] sm:$0xff]
  %v125 = vld [vmem:[%s3 + $0x10] sm:$0xff]
  %v126 = vld [vmem:[%s3 + $0x18] sm:$0xff]
  %v127 = vld [vmem:[%s3 + $0x20] sm:$0xff]
  %v128 = vld [vmem:[%s3 + $0x28] sm:$0xff]
  %v129 = vld [vmem:[%s3 + $0x30] sm:$0xff]
  %v130 = vld [vmem:[%s3 + $0x38] sm:$0xff]
  %v131 = vld [vmem:[%s3 + $0x40] sm:$0xff]
  %v132 = vld [vmem:[%s3 + $0x48] sm:$0xff]
  %v133 = vld [vmem:[%s3 + $0x50] sm:$0xff]
  %v134 = vld [vmem:[%s3 + $0x58] sm:$0xff]
  %v135 = vld [vmem:[%s3 + $0x60] sm:$0xff]
  %v136 = vld [vmem:[%s3 + $0x68] sm:$0xff]
  %v137 = vld [vmem:[%s3 + $0x70] sm:$0xff]
  %v138 = vld [vmem:[%s3 + $0x78] sm:$0xff]
  %v139 = vld [vmem:[%s4] sm:$0x1]
  %v141 = vlaneseq
  %v142 = vshrl.u32 %v141, 7
  %v143 = vsub.s32 0, %v142
  %v144 = vrot.slane %v139, %v143
  %146 = vmatprep.subr.mxu0 0.0
  %147 = vmatpush1.msra.mxu0 %v123
  %148 = vmatprep.subr.mxu0 0.0
  %149 = vmatpush1.msra.mxu0 %v124
  %150 = vmatprep.subr.mxu0 0.0
  %151 = vmatpush1.msra.mxu0 %v125
  %152 = vmatprep.subr.mxu0 0.0
  %153 = vmatpush1.msra.mxu0 %v126
  %154 = vmatprep.subr.mxu0 0.0
  %155 = vmatpush1.msra.mxu0 %v127
  %156 = vmatprep.subr.mxu0 0.0
  %157 = vmatpush1.msra.mxu0 %v128
  %158 = vmatprep.subr.mxu0 0.0
  %159 = vmatpush1.msra.mxu0 %v129
  %160 = vmatprep.subr.mxu0 0.0
  %161 = vmatpush1.msra.mxu0 %v130
  %162 = vmatprep.subr.mxu0 0.0
  %163 = vmatpush1.msra.mxu0 %v131
  %164 = vmatprep.subr.mxu0 0.0
  %165 = vmatpush1.msra.mxu0 %v132
  %166 = vmatprep.subr.mxu0 0.0
  %167 = vmatpush1.msra.mxu0 %v133
  %168 = vmatprep.subr.mxu0 0.0
  %169 = vmatpush1.msra.mxu0 %v134
  %170 = vmatprep.subr.mxu0 0.0
  %171 = vmatpush1.msra.mxu0 %v135
  %172 = vmatprep.subr.mxu0 0.0
  %173 = vmatpush1.msra.mxu0 %v136
  %174 = vmatprep.subr.mxu0 0.0
  %175 = vmatpush1.msra.mxu0 %v137
  %176 = vmatprep.subr.mxu0 0.0
  %177 = vmatpush1.msra.mxu0 %v138
  %178 = vmatprep.subr.mxu0 0.0
  %179 = vmatpush1.msra.mxu0 0.0
  %180 = vmatprep.subr.mxu0 0.0
  %181 = vmatpush1.msra.mxu0 0.0
  %182 = vmatprep.subr.mxu0 0.0
  %183 = vmatpush1.msra.mxu0 0.0
  %184 = vmatprep.subr.mxu0 0.0
  %185 = vmatpush1.msra.mxu0 0.0
  %186 = vmatprep.subr.mxu0 0.0
  %187 = vmatpush1.msra.mxu0 0.0
  %188 = vmatprep.subr.mxu0 0.0
  %189 = vmatpush1.msra.mxu0 0.0
  %190 = vmatprep.subr.mxu0 0.0
  %191 = vmatpush1.msra.mxu0 0.0
  %192 = vmatprep.subr.mxu0 0.0
  %193 = vmatpush1.msra.mxu0 0.0
  %194 = vmatprep.subr.mxu0 0.0
  %195 = vmatpush1.msra.mxu0 0.0
  %196 = vmatprep.subr.mxu0 0.0
  %197 = vmatpush1.msra.mxu0 0.0
  %198 = vmatprep.subr.mxu0 0.0
  %199 = vmatpush1.msra.mxu0 0.0
  %200 = vmatprep.subr.mxu0 0.0
  %201 = vmatpush1.msra.mxu0 0.0
  %202 = vmatprep.subr.mxu0 0.0
  %203 = vmatpush1.msra.mxu0 0.0
  %204 = vmatprep.subr.mxu0 0.0
  %205 = vmatpush1.msra.mxu0 0.0
  %206 = vmatprep.subr.mxu0 0.0
  %207 = vmatpush1.msra.mxu0 0.0
  %208 = vmatprep.subr.mxu0 0.0
  %209 = vmatpush1.msra.mxu0 0.0
  %210 = vmatprep.mubr.f32.mxu0 0.0
  %211 = vmatmul.mubr.f32.gmra.mrb[0].mxu0 %v121
  %v212 = vpop.f32.mrb[0].mxu0
  %v213 = vadd.f32 %v144, %v212
  %v214 = vpop.f32.mrb[0].mxu0
  %215 = vmatprep.mubr.f32.mxu0 0.0
  %216 = vmatmul.mubr.f32.gmra.mrb[0].mxu0 %v122
  %v217 = vpop.f32.mrb[0].mxu0
  %v218 = vadd.f32 %v144, %v217
  %v219 = vpop.f32.mrb[0].mxu0
  %220 = vdwg.mxu0
  %v221 = vadd.f32 %v213, %v26
  %v222 = vadd.f32 %v218, %v27
  %v223 = vsel %vm39, %v221, 0.0
  %224 = vadd.xlane.f32.xlu0 %v223
  %v225 = vpop.xlane.xlu0 %224
  %v226 = vsel %vm39, %v222, 0.0
  %227 = vadd.xlane.f32.xlu0 %v226
  %v228 = vpop.xlane.xlu0 %227
  %v229 = vrcp.pop 32.0
  %v230 = vmul.f32 %v225, %v229
  %v231 = vmul.f32 %v228, %v229
  %v232 = vsub.f32 %v221, %v230
  %v233 = vsub.f32 %v222, %v231
  %v234 = vmul.f32 %v232, %v232
  %v235 = vmul.f32 %v233, %v233
  %v236 = vsel %vm39, %v234, 0.0
  %237 = vadd.xlane.f32.xlu0 %v236
  %v238 = vpop.xlane.xlu0 %237
  %v239 = vsel %vm39, %v235, 0.0
  %240 = vadd.xlane.f32.xlu0 %v239
  %v241 = vpop.xlane.xlu0 %240
  %v242 = vmul.f32 %v238, %v229
  %v243 = vmul.f32 %v241, %v229
  %v244 = vadd.f32 %v242, 1e-05
  %v245 = vadd.f32 %v243, 1e-05
  %v246 = vrsqrt.pop %v244
  %v247 = vrsqrt.pop %v245
  %v248 = vmul.f32 %v232, %v246
  %v249 = vmul.f32 %v233, %v247
  %v250 = vld [vmem:[%s5] sm:$0x1]
  %v252 = vlaneseq
  %v253 = vshrl.u32 %v252, 7
  %v254 = vsub.s32 0, %v253
  %v255 = vrot.slane %v250, %v254
  %v257 = vmul.f32 %v248, %v255
  %v258 = vmul.f32 %v249, %v255
  %v259 = vld [vmem:[%s6] sm:$0x1]
  %v261 = vlaneseq
  %v262 = vshrl.u32 %v261, 7
  %v263 = vsub.s32 0, %v262
  %v264 = vrot.slane %v259, %v263
  %v266 = vadd.f32 %v257, %v264
  %v267 = vadd.f32 %v258, %v264
  %268 = vst.msk [vmem:[%s7] sm:$0xff] %vm39, %v266
  %269 = vst.msk [vmem:[%s7 + $0x8] sm:$0xff] %vm39, %v267
  // Predicated region
  $region30: #{transformer_fwd.28} parent=0 // pred_check
    _
  $region31: #{transformer_fwd.28} parent=0 // pred_check_branch
    %271 = sbr.rel (0) target = $region33
  $region32: #{transformer_fwd.28} parent=0 // pred_region
    _
  $region33: #{transformer_fwd.28} parent=0 // pred_fallthru
    _
  // Predicated region
  $region34: #{transformer_fwd.28} parent=0 // pred_check
    _
  $region35: #{transformer_fwd.28} parent=0 // pred_check_branch
    %273 = sbr.rel (0) target = $region37
  $region36: #{transformer_fwd.28} parent=0 // pred_region
    _
  $region37: #{transformer_fwd.28} parent=0 // pred_fallthru
    _

// kernel: transformer_fwd.26
$region0: #{transformer_fwd.26}
  #allocation0 [shape = 'u32[]', space=smem, size = 0x4, offset = 0x4, fixed_abs, tag = 'smem constant byte address 0x4 - core index']
  #allocation1 [shape = 'u32[144,128]{1,0:T(1,128)}', space=vmem, size = 0x12000, scoped, tag = 'internal scratch']
  #allocation2 [shape = 'f32[4,8,1]{2,1,0:T(8,128)}', space=vmem, size = 0x4000, scoped, tag = 'scratch operand']
  #allocation3 [shape = 'f32[4,8,1]{2,1,0:T(8,128)}', space=vmem, size = 0x4000, scoped, tag = 'scratch operand']
  #allocation4 [shape = 'f32[4,8,8]{2,1,0:T(8,128)}', space=vmem, size = 0x4000, scoped, tag = 'scratch operand']
  %s0 = inlined_call_operand.vmem [shape: f32[2,8,32], index: 0, kind: input, shape index: {}]
  %s1 = inlined_call_operand.vmem [shape: f32[2,8,32], index: 1, kind: input, shape index: {}]
  %s2 = inlined_call_operand.vmem [shape: f32[2,8,32], index: 2, kind: input, shape index: {}]
  %s3 = inlined_call_operand.vmem [shape: f32[2,1,8], index: 3, kind: input, shape index: {}]
  %s4 = inlined_call_operand.vmem [shape: f32[2,8,32], index: 4, kind: output, shape index: {}]
  %s5 = sld [smem:[#allocation0]]
  $region57: #{transformer_fwd.26} parent=0
    _
  %s7 = ssub.s32 1, %s5
  %s8 = scalar_select 0, %s7, %s5
  loop: start=0, step=1, limit=4
  $region2: #{transformer_fwd.26} parent=0 // loop_pre_header
    _
  $region3: #{transformer_fwd.26} parent=0 // loop_header
    %s10 = sphi 0, %s14
    %p11 = scmp.ge.s32.totalorder %s10, 4
    %s17 = sphi 0, %s36
    %s18 = sphi 0, %s32
    %s19 = sphi 0, %s28
    %s20 = sphi 0, %s17
    %s21 = sphi 0, %s18
    %s22 = sphi 0, %s19
    %s23 = sphi 0, %s20
    %s24 = sphi 0, %s21
    %s25 = sphi 0, %s22
    %s41 = sphi 0, %s43
    %s44 = sphi 0, %s41
    %s45 = sphi 0, %s44
    %s61 = sphi 0, %s45
    %s69 = sphi 0, %s71
    %s72 = sphi 0, %s69
    %s73 = sphi 0, %s72
    %s89 = sphi 0, %s73
    %s97 = sphi 0, %s99
    %s100 = sphi 0, %s97
    %s101 = sphi 0, %s100
    %s117 = sphi 0, %s101
    %s125 = sphi 0, %s127
    %s128 = sphi 0, %s125
    %s129 = sphi 0, %s128
    %s145 = sphi 0, %s129
    %s153 = sphi 0, %s155
    %s156 = sphi 0, %s153
    %s157 = sphi 0, %s156
    %s173 = sphi 0, %s157
  $region4: #{transformer_fwd.26} parent=0 // loop_header_branch
    %13 = sbr.rel (%p11) target = $region8
  $region5: #{transformer_fwd.26} parent=0 // loop_body
    %s15 = ssub.s32 %s10, 1
    %s16 = ssub.s32 %s10, 2
    %s26 = sadd.s32 1, %s19
    %p27 = scmp.ge.s32.totalorder %s26, 1
    %s28 = scalar_select %p27, 0, %s26
    %s29 = sadd.s32 1, %s18
    %s30 = scalar_select %p27, %s29, %s18
    %p31 = scmp.ge.s32.totalorder %s30, 1
    %s32 = scalar_select %p31, 0, %s30
    %s33 = sadd.s32 1, %s17
    %s34 = scalar_select %p31, %s33, %s17
    %p35 = scmp.ge.s32.totalorder %s34, 2
    %s36 = scalar_select %p35, 0, %s34
    %s37 = ssub.s32 %s17, %s36
    %s38 = ssub.s32 %s18, %s32
    %s39 = sor.u32 %s37, %s38
    %p40 = scmp.eq.s32.totalorder %s39, 0
    %s42 = sadd.s32 %s41, 1
    %s43 = scalar_select %p40, %s41, %s42
    %p46 = pneg %p40
    %p47 = scmp.eq.s32.totalorder %s10, 1
    %p48 = por %p46, %p47
    %p49 = scmp.ne.s32.totalorder %s41, %s44
    %p50 = scmp.eq.s32.totalorder %s10, 0
    %p51 = por %p49, %p50
    %p52 = scmp.ne.s32.totalorder %s41, %s44
    %p53 = scmp.eq.s32.totalorder %s15, 1
    %p54 = por %p52, %p53
    %p55 = scmp.ne.s32.totalorder %s44, %s45
    %p56 = scmp.eq.s32.totalorder %s15, 0
    %p57 = por %p55, %p56
    %p58 = scmp.ne.s32.totalorder %s44, %s45
    %p59 = scmp.eq.s32.totalorder %s16, 1
    %p60 = por %p58, %p59
    %p62 = scmp.ne.s32.totalorder %s45, %s61
    %p63 = scmp.eq.s32.totalorder %s16, 0
    %p64 = por %p62, %p63
    %s65 = ssub.s32 %s17, %s36
    %s66 = ssub.s32 %s19, %s28
    %s67 = sor.u32 %s65, %s66
    %p68 = scmp.eq.s32.totalorder %s67, 0
    %s70 = sadd.s32 %s69, 1
    %s71 = scalar_select %p68, %s69, %s70
    %p74 = pneg %p68
    %p75 = scmp.eq.s32.totalorder %s10, 1
    %p76 = por %p74, %p75
    %p77 = scmp.ne.s32.totalorder %s69, %s72
    %p78 = scmp.eq.s32.totalorder %s10, 0
    %p79 = por %p77, %p78
    %p80 = scmp.ne.s32.totalorder %s69, %s72
    %p81 = scmp.eq.s32.totalorder %s15, 1
    %p82 = por %p80, %p81
    %p83 = scmp.ne.s32.totalorder %s72, %s73
    %p84 = scmp.eq.s32.totalorder %s15, 0
    %p85 = por %p83, %p84
    %p86 = scmp.ne.s32.totalorder %s72, %s73
    %p87 = scmp.eq.s32.totalorder %s16, 1
    %p88 = por %p86, %p87
    %p90 = scmp.ne.s32.totalorder %s73, %s89
    %p91 = scmp.eq.s32.totalorder %s16, 0
    %p92 = por %p90, %p91
    %s93 = ssub.s32 %s17, %s36
    %s94 = ssub.s32 %s19, %s28
    %s95 = sor.u32 %s93, %s94
    %p96 = scmp.eq.s32.totalorder %s95, 0
    %s98 = sadd.s32 %s97, 1
    %s99 = scalar_select %p96, %s97, %s98
    %p102 = pneg %p96
    %p103 = scmp.eq.s32.totalorder %s10, 1
    %p104 = por %p102, %p103
    %p105 = scmp.ne.s32.totalorder %s97, %s100
    %p106 = scmp.eq.s32.totalorder %s10, 0
    %p107 = por %p105, %p106
    %p108 = scmp.ne.s32.totalorder %s97, %s100
    %p109 = scmp.eq.s32.totalorder %s15, 1
    %p110 = por %p108, %p109
    %p111 = scmp.ne.s32.totalorder %s100, %s101
    %p112 = scmp.eq.s32.totalorder %s15, 0
    %p113 = por %p111, %p112
    %p114 = scmp.ne.s32.totalorder %s100, %s101
    %p115 = scmp.eq.s32.totalorder %s16, 1
    %p116 = por %p114, %p115
    %p118 = scmp.ne.s32.totalorder %s101, %s117
    %p119 = scmp.eq.s32.totalorder %s16, 0
    %p120 = por %p118, %p119
    %s121 = ssub.s32 %s17, %s36
    %s122 = ssub.s32 %s19, %s28
    %s123 = sor.u32 %s121, %s122
    %p124 = scmp.eq.s32.totalorder %s123, 0
    %s126 = sadd.s32 %s125, 1
    %s127 = scalar_select %p124, %s125, %s126
    %p130 = pneg %p124
    %p131 = scmp.eq.s32.totalorder %s10, 1
    %p132 = por %p130, %p131
    %p133 = scmp.ne.s32.totalorder %s125, %s128
    %p134 = scmp.eq.s32.totalorder %s10, 0
    %p135 = por %p133, %p134
    %p136 = scmp.ne.s32.totalorder %s125, %s128
    %p137 = scmp.eq.s32.totalorder %s15, 1
    %p138 = por %p136, %p137
    %p139 = scmp.ne.s32.totalorder %s128, %s129
    %p140 = scmp.eq.s32.totalorder %s15, 0
    %p141 = por %p139, %p140
    %p142 = scmp.ne.s32.totalorder %s128, %s129
    %p143 = scmp.eq.s32.totalorder %s16, 1
    %p144 = por %p142, %p143
    %p146 = scmp.ne.s32.totalorder %s129, %s145
    %p147 = scmp.eq.s32.totalorder %s16, 0
    %p148 = por %p146, %p147
    %s149 = ssub.s32 %s17, %s36
    %s150 = ssub.s32 %s18, %s32
    %s151 = sor.u32 %s149, %s150
    %p152 = scmp.eq.s32.totalorder %s151, 0
    %s154 = sadd.s32 %s153, 1
    %s155 = scalar_select %p152, %s153, %s154
    %p158 = pneg %p152
    %p159 = scmp.eq.s32.totalorder %s10, 1
    %p160 = por %p158, %p159
    %p161 = scmp.ne.s32.totalorder %s153, %s156
    %p162 = scmp.eq.s32.totalorder %s10, 0
    %p163 = por %p161, %p162
    %p164 = scmp.ne.s32.totalorder %s153, %s156
    %p165 = scmp.eq.s32.totalorder %s15, 1
    %p166 = por %p164, %p165
    %p167 = scmp.ne.s32.totalorder %s156, %s157
    %p168 = scmp.eq.s32.totalorder %s15, 0
    %p169 = por %p167, %p168
    %p170 = scmp.ne.s32.totalorder %s156, %s157
    %p171 = scmp.eq.s32.totalorder %s16, 1
    %p172 = por %p170, %p171
    %p174 = scmp.ne.s32.totalorder %s157, %s173
    %p175 = scmp.eq.s32.totalorder %s16, 0
    %p176 = por %p174, %p175
    %p177 = scmp.le.s32.totalorder 1, %s10
    %p178 = scmp.lt.s32.totalorder %s10, 3
    %p179 = pnand %p177, %p178
    %p180 = pneg %p179
    // Predicated region
    $region9: #{transformer_fwd.26} parent=5 // pred_check
      _
    $region10: #{transformer_fwd.26} parent=5 // pred_check_branch
      %182 = sbr.rel (%p179) target = $region12
    $region11: #{transformer_fwd.26} parent=5 // pred_region
      %s183 = ssub.s32 %s10, 1
    $region12: #{transformer_fwd.26} parent=5 // pred_fallthru
      _
    %p184 = scmp.lt.s32.totalorder %s10, 2
    // Predicated region
    $region13: #{transformer_fwd.26} parent=5 // pred_check
      %p185 = pneg %p184
    $region14: #{transformer_fwd.26} parent=5 // pred_check_branch
      %187 = sbr.rel (%p185) target = $region16
    $region15: #{transformer_fwd.26} parent=5 // pred_region
      // Predicated region
      $region17: #{transformer_fwd.26} parent=15 // pred_check
        %p188 = pneg %p51
      $region18: #{transformer_fwd.26} parent=15 // pred_check_branch
        %190 = sbr.rel (%p188) target = $region20
      $region19: #{transformer_fwd.26} parent=15 // pred_region
        %p191 = scmp.lt.s32.totalorder %s17, 1
        %s192 = scalar_select %p191, %s17, 1
        %p193 = scmp.lt.s32.totalorder %s18, 0
        %s194 = scalar_select %p193, %s18, 0
        %s195 = sadd.s32 %s194, %s192
        %s196 = smul.addr %s195, 8
        %s197 = scalar_lea.vmem %s0, %s196
      $region20: #{transformer_fwd.26} parent=15 // pred_fallthru
        _
      // Predicated region
      $region21: #{transformer_fwd.26} parent=15 // pred_check
        %p198 = pneg %p79
      $region22: #{transformer_fwd.26} parent=15 // pred_check_branch
        %200 = sbr.rel (%p198) target = $region24
      $region23: #{transformer_fwd.26} parent=15 // pred_region
        %p201 = scmp.lt.s32.totalorder %s17, 1
        %s202 = scalar_select %p201, %s17, 1
        %p203 = scmp.lt.s32.totalorder %s19, 0
        %s204 = scalar_select %p203, %s19, 0
        %s205 = sadd.s32 %s204, %s202
        %s206 = smul.addr %s205, 8
        %s207 = scalar_lea.vmem %s1, %s206
      $region24: #{transformer_fwd.26} parent=15 // pred_fallthru
        _
      // Predicated region
      $region25: #{transformer_fwd.26} parent=15 // pred_check
        %p208 = pneg %p107
      $region26: #{transformer_fwd.26} parent=15 // pred_check_branch
        %210 = sbr.rel (%p208) target = $region28
      $region27: #{transformer_fwd.26} parent=15 // pred_region
        %p211 = scmp.lt.s32.totalorder %s17, 1
        %s212 = scalar_select %p211, %s17, 1
        %p213 = scmp.lt.s32.totalorder %s19, 0
        %s214 = scalar_select %p213, %s19, 0
        %s215 = sadd.s32 %s214, %s212
        %s216 = smul.addr %s215, 8
        %s217 = scalar_lea.vmem %s2, %s216
      $region28: #{transformer_fwd.26} parent=15 // pred_fallthru
        _
      // Predicated region
      $region29: #{transformer_fwd.26} parent=15 // pred_check
        %p218 = pneg %p135
      $region30: #{transformer_fwd.26} parent=15 // pred_check_branch
        %220 = sbr.rel (%p218) target = $region32
      $region31: #{transformer_fwd.26} parent=15 // pred_region
        %p221 = scmp.lt.s32.totalorder %s17, 1
        %s222 = scalar_select %p221, %s17, 1
        %p223 = scmp.lt.s32.totalorder %s19, 0
        %s224 = scalar_select %p223, %s19, 0
        %s225 = sadd.s32 %s224, %s222
        %s226 = scalar_lea.vmem %s3, %s225
      $region32: #{transformer_fwd.26} parent=15 // pred_fallthru
        _
    $region16: #{transformer_fwd.26} parent=5 // pred_fallthru
      _
    %p227 = scmp.le.s32.totalorder 1, %s10
    %p228 = scmp.lt.s32.totalorder %s10, 3
    %p229 = pnand %p227, %p228
    %p230 = pneg %p229
    // Predicated region
    $region33: #{transformer_fwd.26} parent=5 // pred_check
      _
    $region34: #{transformer_fwd.26} parent=5 // pred_check_branch
      %232 = sbr.rel (%p229) target = $region36
    $region35: #{transformer_fwd.26} parent=5 // pred_region
      %s233 = ssub.s32 %s10, 1
      %p234 = scmp.lt.s32.totalorder %s20, 1
      %s235 = scalar_select %p234, %s20, 1
      %p236 = scmp.lt.s32.totalorder %s21, 0
      %s237 = scalar_select %p236, %s21, 0
      %s238 = sadd.s32 %s237, %s235
      %s239 = smul.addr %s238, 8
      %s240 = scalar_lea.vmem %s0, %s239
      %p241 = pneg %p57
      %p242 = pneg %p54
      %p243 = scmp.lt.s32.totalorder %s20, 1
      %s244 = scalar_select %p243, %s20, 1
      %p245 = scmp.lt.s32.totalorder %s22, 0
      %s246 = scalar_select %p245, %s22, 0
      %s247 = sadd.s32 %s246, %s244
      %s248 = smul.addr %s247, 8
      %s249 = scalar_lea.vmem %s1, %s248
      %p250 = pneg %p85
      %p251 = pneg %p82
      %p252 = scmp.lt.s32.totalorder %s20, 1
      %s253 = scalar_select %p252, %s20, 1
      %p254 = scmp.lt.s32.totalorder %s22, 0
      %s255 = scalar_select %p254, %s22, 0
      %s256 = sadd.s32 %s255, %s253
      %s257 = smul.addr %s256, 8
      %s258 = scalar_lea.vmem %s2, %s257
      %p259 = pneg %p113
      %p260 = pneg %p110
      %p261 = scmp.lt.s32.totalorder %s20, 1
      %s262 = scalar_select %p261, %s20, 1
      %p263 = scmp.lt.s32.totalorder %s22, 0
      %s264 = scalar_select %p263, %s22, 0
      %s265 = sadd.s32 %s264, %s262
      %s266 = scalar_lea.vmem %s3, %s265
      %p267 = pneg %p141
      %p268 = pneg %p138
      %p269 = pneg %p169
      %p270 = pneg %p166
      %p271 = scmp.lt.s32.totalorder %s20, 1
      %s272 = scalar_select %p271, %s20, 1
      %p273 = scmp.lt.s32.totalorder %s21, 0
      %s274 = scalar_select %p273, %s21, 0
      %s275 = sadd.s32 %s274, %s272
      %s276 = smul.addr %s275, 8
      %s277 = scalar_lea.vmem %s4, %s276
      %p278 = scmp.lt.s32.totalorder %s20, 1
      %s279 = scalar_select %p278, %s20, 1
      %p280 = scmp.lt.s32.totalorder %s21, 0
      %s281 = scalar_select %p280, %s21, 0
      %s282 = sadd.s32 %s281, %s279
      %s283 = smul.addr %s282, 8
      %s284 = scalar_lea.vmem %s0, %s283
      %p285 = scmp.lt.s32.totalorder %s20, 1
      %s286 = scalar_select %p285, %s20, 1
      %p287 = scmp.lt.s32.totalorder %s22, 0
      %s288 = scalar_select %p287, %s22, 0
      %s289 = sadd.s32 %s288, %s286
      %s290 = smul.addr %s289, 8
      %s291 = scalar_lea.vmem %s1, %s290
      %p292 = scmp.lt.s32.totalorder %s20, 1
      %s293 = scalar_select %p292, %s20, 1
      %p294 = scmp.lt.s32.totalorder %s22, 0
      %s295 = scalar_select %p294, %s22, 0
      %s296 = sadd.s32 %s295, %s293
      %s297 = smul.addr %s296, 8
      %s298 = scalar_lea.vmem %s2, %s297
      %p299 = scmp.lt.s32.totalorder %s20, 1
      %s300 = scalar_select %p299, %s20, 1
      %p301 = scmp.lt.s32.totalorder %s22, 0
      %s302 = scalar_select %p301, %s22, 0
      %s303 = sadd.s32 %s302, %s300
      %s304 = scalar_lea.vmem %s3, %s303
      %p305 = scmp.lt.s32.totalorder %s20, 1
      %s306 = scalar_select %p305, %s20, 1
      %p307 = scmp.lt.s32.totalorder %s21, 0
      %s308 = scalar_select %p307, %s21, 0
      %s309 = sadd.s32 %s308, %s306
      %s310 = smul.addr %s309, 8
      %s311 = scalar_lea.vmem %s4, %s310
      %p312 = scmp.eq.s32.totalorder %s22, 0
      // Predicated region
      $region37: #{transformer_fwd.26} parent=35 // pred_check
        %p313 = pneg %p312
      $region38: #{transformer_fwd.26} parent=35 // pred_check_branch
        %315 = sbr.rel (%p313) target = $region40
      $region39: #{transformer_fwd.26} parent=35 // pred_region
        %vm316 = vcmask 7168
        %317 = vst.msk [vmem:[#allocation2] sm:$0xff] %vm316, -inf
        %318 = vst.msk [vmem:[#allocation2 + $0x8] sm:$0xff] %vm316, -inf
        %319 = vst.msk [vmem:[#allocation2 + $0x10] sm:$0xff] %vm316, -inf
        %320 = vst.msk [vmem:[#allocation2 + $0x18] sm:$0xff] %vm316, -inf
        %321 = vst.msk [vmem:[#allocation3] sm:$0xff] %vm316, 0.0
        %322 = vst.msk [vmem:[#allocation3 + $0x8] sm:$0xff] %vm316, 0.0
        %323 = vst.msk [vmem:[#allocation3 + $0x10] sm:$0xff] %vm316, 0.0
        %324 = vst.msk [vmem:[#allocation3 + $0x18] sm:$0xff] %vm316, 0.0
        %vm325 = vcmask 64512
        %326 = vst.msk [vmem:[#allocation4] sm:$0xff] %vm325, 0.0
        %327 = vst.msk [vmem:[#allocation4 + $0x8] sm:$0xff] %vm325, 0.0
        %328 = vst.msk [vmem:[#allocation4 + $0x10] sm:$0xff] %vm325, 0.0
        %329 = vst.msk [vmem:[#allocation4 + $0x18] sm:$0xff] %vm325, 0.0
      $region40: #{transformer_fwd.26} parent=35 // pred_fallthru
        _
      %s330 = smul.u32 %s22, 8
      %v331 = vlaneseq
      %v332 = vand.u32 %v331, 127
      %v333 = vstv %s330
      %v334 = vadd.s32 %v333, %v332
      %vm335 = vcmp.lt.s32.totalorder %v334, 8
      %v336 = vld [vmem:[%s304] sm:$0x1]
      %vm337 = vcmp.ne.f32.partialorder %v336, 0.0
      %v338 = vsel %vm337, 1, 0
      %v339 = vlaneseq
      %v340 = vshrl.u32 %v339, 7
      %v341 = vsub.s32 0, %v340
      %v342 = vrot.slane %v338, %v341
      %vm343 = vcmp.eq.s32.totalorder %v342, 1
      %vm344 = vmand %vm335, %vm343
      %v345 = vld [vmem:[%s284] sm:$0xff]
      %v346 = vld [vmem:[%s291] sm:$0xff]
      %v347 = vld [vmem:[%s298] sm:$0xff]
      %vm348 = vcmask 64512
      %v350 = vsel %vm348, %v345, 0
      %v353 = vsel %vm348, %v346, 0
      %355 = vmatprep.subr.mxu0 0.0
      %356 = vmatpush1.xpose.msra.mxu0 %v353
      %357 = vmatprep.subr.mxu0 0.0
      %358 = vmatpush1.xpose.msra.mxu0 0.0
      %359 = vmatprep.subr.mxu0 0.0
      %360 = vmatpush1.xpose.msra.mxu0 0.0
      %361 = vmatprep.subr.mxu0 0.0
      %362 = vmatpush1.xpose.msra.mxu0 0.0
      %363 = vmatprep.subr.mxu0 0.0
      %364 = vmatpush1.xpose.msra.mxu0 0.0
      %365 = vmatprep.subr.mxu0 0.0
      %366 = vmatpush1.xpose.msra.mxu0 0.0
      %367 = vmatprep.subr.mxu0 0.0
      %368 = vmatpush1.xpose.msra.mxu0 0.0
      %369 = vmatprep.subr.mxu0 0.0
      %370 = vmatpush1.xpose.msra.mxu0 0.0
      %371 = vmatprep.subr.mxu0 0.0
      %372 = vmatpush1.xpose.msra.mxu0 0.0
      %373 = vmatprep.subr.mxu0 0.0
      %374 = vmatpush1.xpose.msra.mxu0 0.0
      %375 = vmatprep.subr.mxu0 0.0
      %376 = vmatpush1.xpose.msra.mxu0 0.0
      %377 = vmatprep.subr.mxu0 0.0
      %378 = vmatpush1.xpose.msra.mxu0 0.0
      %379 = vmatprep.subr.mxu0 0.0
      %380 = vmatpush1.xpose.msra.mxu0 0.0
      %381 = vmatprep.subr.mxu0 0.0
      %382 = vmatpush1.xpose.msra.mxu0 0.0
      %383 = vmatprep.subr.mxu0 0.0
      %384 = vmatpush1.xpose.msra.mxu0 0.0
      %385 = vmatprep.subr.mxu0 0.0
      %386 = vmatpush1.xpose.msra.mxu0 0.0
      %387 = vmatprep.subr.mxu0 0.0
      %388 = vmatpush1.xpose.msra.mxu0 0.0
      %389 = vmatprep.subr.mxu0 0.0
      %390 = vmatpush1.xpose.msra.mxu0 0.0
      %391 = vmatprep.subr.mxu0 0.0
      %392 = vmatpush1.xpose.msra.mxu0 0.0
      %393 = vmatprep.subr.mxu0 0.0
      %394 = vmatpush1.xpose.msra.mxu0 0.0
      %395 = vmatprep.subr.mxu0 0.0
      %396 = vmatpush1.xpose.msra.mxu0 0.0
      %397 = vmatprep.subr.mxu0 0.0
      %398 = vmatpush1.xpose.msra.mxu0 0.0
      %399 = vmatprep.subr.mxu0 0.0
      %400 = vmatpush1.xpose.msra.mxu0 0.0
      %401 = vmatprep.subr.mxu0 0.0
      %402 = vmatpush1.xpose.msra.mxu0 0.0
      %403 = vmatprep.subr.mxu0 0.0
      %404 = vmatpush1.xpose.msra.mxu0 0.0
      %405 = vmatprep.subr.mxu0 0.0
      %406 = vmatpush1.xpose.msra.mxu0 0.0
      %407 = vmatprep.subr.mxu0 0.0
      %408 = vmatpush1.xpose.msra.mxu0 0.0
      %409 = vmatprep.subr.mxu0 0.0
      %410 = vmatpush1.xpose.msra.mxu0 0.0
      %411 = vmatprep.subr.mxu0 0.0
      %412 = vmatpush1.xpose.msra.mxu0 0.0
      %413 = vmatprep.subr.mxu0 0.0
      %414 = vmatpush1.xpose.msra.mxu0 0.0
      %415 = vmatprep.subr.mxu0 0.0
      %416 = vmatpush1.xpose.msra.mxu0 0.0
      %417 = vmatprep.subr.mxu0 0.0
      %418 = vmatpush1.xpose.msra.mxu0 0.0
      %419 = vmatprep.mubr.f32.mxu0 0.0
      %420 = vmatmul.mubr.f32.gmra.mrb[0].mxu0 %v350
      %v421 = vpop.f32.mrb[0].mxu0
      %v422 = vadd.f32 0.0, %v421
      %v423 = vpop.f32.mrb[0].mxu0
      %424 = vdwg.mxu0
      %v425 = vsel %vm344, %v422, -1e+20
      %v426 = vmul.f32 %v425, 0.17677669
      %v427 = vld [vmem:[#allocation2] sm:$0xff]
      %v428 = vsel %vm348, %v426, -inf
      %429 = vmax.xlane.f32.xlu0 %v428
      %v430 = vpop.xlane.xlu0 %429
      %v431 = vmax.f32 %v427, %v430
      %v432 = vsub.f32 %v427, %v431
      %v433 = vmul.f32 %v432, 1.442695
      %v434 = vpow.pop %v433
      %436 = vset.pattern.permute.xlu0 0
      %437 = vperm.xlu0 %436, %v431
      %v438 = vpop.permute.xlu0 %437
      %v440 = vsub.f32 %v426, %v438
      %v441 = vmul.f32 %v440, 1.442695
      %v442 = vpow.pop %v441
      %v443 = vld [vmem:[#allocation3] sm:$0xff]
      %v444 = vmul.f32 %v434, %v443
      %v445 = vsel %vm348, %v442, 0.0
      %446 = vadd.xlane.f32.xlu0 %v445
      %v447 = vpop.xlane.xlu0 %446
      %v448 = vadd.f32 %v444, %v447
      %vm449 = vcmask 7168
      %450 = vst.msk [vmem:[#allocation3] sm:$0xff] %vm449, %v448
      %v451 = vld [vmem:[#allocation4] sm:$0xff]
      %453 = vset.pattern.permute.xlu0 0
      %454 = vperm.xlu0 %453, %v434
      %v455 = vpop.permute.xlu0 %454
      %v457 = vmul.f32 %v455, %v451
      %v459 = vsel %vm348, %v442, 0
      %461 = vmatprep.subr.mxu0 0.0
      %462 = vmatpush1.msra.mxu0 %v347
      %463 = vmatprep.subr.mxu0 0.0
      %464 = vmatpush1.msra.mxu0 0.0
      %465 = vmatprep.subr.mxu0 0.0
      %466 = vmatpush1.msra.mxu0 0.0
      %467 = vmatprep.subr.mxu0 0.0
      %468 = vmatpush1.msra.mxu0 0.0
      %469 = vmatprep.subr.mxu0 0.0
      %470 = vmatpush1.msra.mxu0 0.0
      %471 = vmatprep.subr.mxu0 0.0
      %472 = vmatpush1.msra.mxu0 0.0
      %473 = vmatprep.subr.mxu0 0.0
      %474 = vmatpush1.msra.mxu0 0.0
      %475 = vmatprep.subr.mxu0 0.0
      %476 = vmatpush1.msra.mxu0 0.0
      %477 = vmatprep.subr.mxu0 0.0
      %478 = vmatpush1.msra.mxu0 0.0
      %479 = vmatprep.subr.mxu0 0.0
      %480 = vmatpush1.msra.mxu0 0.0
      %481 = vmatprep.subr.mxu0 0.0
      %482 = vmatpush1.msra.mxu0 0.0
      %483 = vmatprep.subr.mxu0 0.0
      %484 = vmatpush1.msra.mxu0 0.0
      %485 = vmatprep.subr.mxu0 0.0
      %486 = vmatpush1.msra.mxu0 0.0
      %487 = vmatprep.subr.mxu0 0.0
      %488 = vmatpush1.msra.mxu0 0.0
      %489 = vmatprep.subr.mxu0 0.0
      %490 = vmatpush1.msra.mxu0 0.0
      %491 = vmatprep.subr.mxu0 0.0
      %492 = vmatpush1.msra.mxu0 0.0
      %493 = vmatprep.subr.mxu0 0.0
      %494 = vmatpush1.msra.mxu0 0.0
      %495 = vmatprep.subr.mxu0 0.0
      %496 = vmatpush1.msra.mxu0 0.0
      %497 = vmatprep.subr.mxu0 0.0
      %498 = vmatpush1.msra.mxu0 0.0
      %499 = vmatprep.subr.mxu0 0.0
      %500 = vmatpush1.msra.mxu0 0.0
      %501 = vmatprep.subr.mxu0 0.0
      %502 = vmatpush1.msra.mxu0 0.0
      %503 = vmatprep.subr.mxu0 0.0
      %504 = vmatpush1.msra.mxu0 0.0
      %505 = vmatprep.subr.mxu0 0.0
      %506 = vmatpush1.msra.mxu0 0.0
      %507 = vmatprep.subr.mxu0 0.0
      %508 = vmatpush1.msra.mxu0 0.0
      %509 = vmatprep.subr.mxu0 0.0
      %510 = vmatpush1.msra.mxu0 0.0
      %511 = vmatprep.subr.mxu0 0.0
      %512 = vmatpush1.msra.mxu0 0.0
      %513 = vmatprep.subr.mxu0 0.0
      %514 = vmatpush1.msra.mxu0 0.0
      %515 = vmatprep.subr.mxu0 0.0
      %516 = vmatpush1.msra.mxu0 0.0
      %517 = vmatprep.subr.mxu0 0.0
      %518 = vmatpush1.msra.mxu0 0.0
      %519 = vmatprep.subr.mxu0 0.0
      %520 = vmatpush1.msra.mxu0 0.0
      %521 = vmatprep.subr.mxu0 0.0
      %522 = vmatpush1.msra.mxu0 0.0
      %523 = vmatprep.subr.mxu0 0.0
      %524 = vmatpush1.msra.mxu0 0.0
      %525 = vmatprep.mubr.f32.mxu0 0.0
      %526 = vmatmul.mubr.f32.gmra.mrb[0].mxu0 %v459
      %v527 = vpop.f32.mrb[0].mxu0
      %v528 = vadd.f32 0.0, %v527
      %v529 = vpop.f32.mrb[0].mxu0
      %530 = vdwg.mxu0
      %v531 = vadd.f32 %v457, %v528
      %532 = vst.msk [vmem:[#allocation4] sm:$0xff] %vm348, %v531
      %533 = vst.msk [vmem:[#allocation2] sm:$0xff] %vm449, %v431
      %v534 = vld [vmem:[%s284] sm:$0xff]
      %v535 = vld [vmem:[%s291] sm:$0xff]
      %v536 = vld [vmem:[%s298] sm:$0xff]
      %538 = vrot.lane.b32.xlu0 %v534, 120
      %v539 = vpop.permute.xlu0 %538
      %541 = vrot.lane.b32.xlu0 %v535, 120
      %v542 = vpop.permute.xlu0 %541
      %v543 = vsel %vm348, %v539, 0
      %v545 = vsel %vm348, %v542, 0
      %547 = vmatprep.subr.mxu0 0.0
      %548 = vmatpush1.xpose.msra.mxu0 %v545
      %549 = vmatprep.subr.mxu0 0.0
      %550 = vmatpush1.xpose.msra.mxu0 0.0
      %551 = vmatprep.subr.mxu0 0.0
      %552 = vmatpush1.xpose.msra.mxu0 0.0
      %553 = vmatprep.subr.mxu0 0.0
      %554 = vmatpush1.xpose.msra.mxu0 0.0
      %555 = vmatprep.subr.mxu0 0.0
      %556 = vmatpush1.xpose.msra.mxu0 0.0
      %557 = vmatprep.subr.mxu0 0.0
      %558 = vmatpush1.xpose.msra.mxu0 0.0
      %559 = vmatprep.subr.mxu0 0.0
      %560 = vmatpush1.xpose.msra.mxu0 0.0
      %561 = vmatprep.subr.mxu0 0.0
      %562 = vmatpush1.xpose.msra.mxu0 0.0
      %563 = vmatprep.subr.mxu0 0.0
      %564 = vmatpush1.xpose.msra.mxu0 0.0
      %565 = vmatprep.subr.mxu0 0.0
      %566 = vmatpush1.xpose.msra.mxu0 0.0
      %567 = vmatprep.subr.mxu0 0.0
      %568 = vmatpush1.xpose.msra.mxu0 0.0
      %569 = vmatprep.subr.mxu0 0.0
      %570 = vmatpush1.xpose.msra.mxu0 0.0
      %571 = vmatprep.subr.mxu0 0.0
      %572 = vmatpush1.xpose.msra.mxu0 0.0
      %573 = vmatprep.subr.mxu0 0.0
      %574 = vmatpush1.xpose.msra.mxu0 0.0
      %575 = vmatprep.subr.mxu0 0.0
      %576 = vmatpush1.xpose.msra.mxu0 0.0
      %577 = vmatprep.subr.mxu0 0.0
      %578 = vmatpush1.xpose.msra.mxu0 0.0
      %579 = vmatprep.subr.mxu0 0.0
      %580 = vmatpush1.xpose.msra.mxu0 0.0
      %581 = vmatprep.subr.mxu0 0.0
      %582 = vmatpush1.xpose.msra.mxu0 0.0
      %583 = vmatprep.subr.mxu0 0.0
      %584 = vmatpush1.xpose.msra.mxu0 0.0
      %585 = vmatprep.subr.mxu0 0.0
      %586 = vmatpush1.xpose.msra.mxu0 0.0
      %587 = vmatprep.subr.mxu0 0.0
      %588 = vmatpush1.xpose.msra.mxu0 0.0
      %589 = vmatprep.subr.mxu0 0.0
      %590 = vmatpush1.xpose.msra.mxu0 0.0
      %591 = vmatprep.subr.mxu0 0.0
      %592 = vmatpush1.xpose.msra.mxu0 0.0
      %593 = vmatprep.subr.mxu0 0.0
      %594 = vmatpush1.xpose.msra.mxu0 0.0
      %595 = vmatprep.subr.mxu0 0.0
      %596 = vmatpush1.xpose.msra.mxu0 0.0
      %597 = vmatprep.subr.mxu0 0.0
      %598 = vmatpush1.xpose.msra.mxu0 0.0
      %599 = vmatprep.subr.mxu0 0.0
      %600 = vmatpush1.xpose.msra.mxu0 0.0
      %601 = vmatprep.subr.mxu0 0.0
      %602 = vmatpush1.xpose.msra.mxu0 0.0
      %603 = vmatprep.subr.mxu0 0.0
      %604 = vmatpush1.xpose.msra.mxu0 0.0
      %605 = vmatprep.subr.mxu0 0.0
      %606 = vmatpush1.xpose.msra.mxu0 0.0
      %607 = vmatprep.subr.mxu0 0.0
      %608 = vmatpush1.xpose.msra.mxu0 0.0
      %609 = vmatprep.subr.mxu0 0.0
      %610 = vmatpush1.xpose.msra.mxu0 0.0
      %611 = vmatprep.mubr.f32.mxu0 0.0
      %612 = vmatmul.mubr.f32.gmra.mrb[0].mxu0 %v543
      %v613 = vpop.f32.mrb[0].mxu0
      %v614 = vadd.f32 0.0, %v613
      %v615 = vpop.f32.mrb[0].mxu0
      %616 = vdwg.mxu0
      %v617 = vsel %vm344, %v614, -1e+20
      %v618 = vmul.f32 %v617, 0.17677669
      %s619 = scalar_lea.vmem [#allocation2], 8
      %v620 = vld [vmem:[%s619] sm:$0xff]
      %v621 = vsel %vm348, %v618, -inf
      %622 = vmax.xlane.f32.xlu0 %v621
      %v623 = vpop.xlane.xlu0 %622
      %v624 = vmax.f32 %v620, %v623
      %v625 = vsub.f32 %v620, %v624
      %v626 = vmul.f32 %v625, 1.442695
      %v627 = vpow.pop %v626
      %629 = vset.pattern.permute.xlu0 0
      %630 = vperm.xlu0 %629, %v624
      %v631 = vpop.permute.xlu0 %630
      %v633 = vsub.f32 %v618, %v631
      %v634 = vmul.f32 %v633, 1.442695
      %v635 = vpow.pop %v634
      %s636 = scalar_lea.vmem [#allocation3], 8
      %v637 = vld [vmem:[%s636] sm:$0xff]
      %v638 = vmul.f32 %v627, %v637
      %v639 = vsel %vm348, %v635, 0.0
      %640 = vadd.xlane.f32.xlu0 %v639
      %v641 = vpop.xlane.xlu0 %640
      %v642 = vadd.f32 %v638, %v641
      %643 = vst.msk [vmem:[%s636] sm:$0xff] %vm449, %v642
      %s644 = scalar_lea.vmem [#allocation4], 8
      %v645 = vld [vmem:[%s644] sm:$0xff]
      %647 = vset.pattern.permute.xlu0 0
      %648 = vperm.xlu0 %647, %v627
      %v649 = vpop.permute.xlu0 %648
      %v651 = vmul.f32 %v649, %v645
      %653 = vrot.lane.b32.xlu0 %v536, 120
      %v654 = vpop.permute.xlu0 %653
      %v657 = vsel %vm348, %v635, 0
      %659 = vmatprep.subr.mxu0 0.0
      %660 = vmatpush1.msra.mxu0 %v654
      %661 = vmatprep.subr.mxu0 0.0
      %662 = vmatpush1.msra.mxu0 0.0
      %663 = vmatprep.subr.mxu0 0.0
      %664 = vmatpush1.msra.mxu0 0.0
      %665 = vmatprep.subr.mxu0 0.0
      %666 = vmatpush1.msra.mxu0 0.0
      %667 = vmatprep.subr.mxu0 0.0
      %668 = vmatpush1.msra.mxu0 0.0
      %669 = vmatprep.subr.mxu0 0.0
      %670 = vmatpush1.msra.mxu0 0.0
      %671 = vmatprep.subr.mxu0 0.0
      %672 = vmatpush1.msra.mxu0 0.0
      %673 = vmatprep.subr.mxu0 0.0
      %674 = vmatpush1.msra.mxu0 0.0
      %675 = vmatprep.subr.mxu0 0.0
      %676 = vmatpush1.msra.mxu0 0.0
      %677 = vmatprep.subr.mxu0 0.0
      %678 = vmatpush1.msra.mxu0 0.0
      %679 = vmatprep.subr.mxu0 0.0
      %680 = vmatpush1.msra.mxu0 0.0
      %681 = vmatprep.subr.mxu0 0.0
      %682 = vmatpush1.msra.mxu0 0.0
      %683 = vmatprep.subr.mxu0 0.0
      %684 = vmatpush1.msra.mxu0 0.0
      %685 = vmatprep.subr.mxu0 0.0
      %686 = vmatpush1.msra.mxu0 0.0
      %687 = vmatprep.subr.mxu0 0.0
      %688 = vmatpush1.msra.mxu0 0.0
      %689 = vmatprep.subr.mxu0 0.0
      %690 = vmatpush1.msra.mxu0 0.0
      %691 = vmatprep.subr.mxu0 0.0
      %692 = vmatpush1.msra.mxu0 0.0
      %693 = vmatprep.subr.mxu0 0.0
      %694 = vmatpush1.msra.mxu0 0.0
      %695 = vmatprep.subr.mxu0 0.0
      %696 = vmatpush1.msra.mxu0 0.0
      %697 = vmatprep.subr.mxu0 0.0
      %698 = vmatpush1.msra.mxu0 0.0
      %699 = vmatprep.subr.mxu0 0.0
      %700 = vmatpush1.msra.mxu0 0.0
      %701 = vmatprep.subr.mxu0 0.0
      %702 = vmatpush1.msra.mxu0 0.0
      %703 = vmatprep.subr.mxu0 0.0
      %704 = vmatpush1.msra.mxu0 0.0
      %705 = vmatprep.subr.mxu0 0.0
      %706 = vmatpush1.msra.mxu0 0.0
      %707 = vmatprep.subr.mxu0 0.0
      %708 = vmatpush1.msra.mxu0 0.0
      %709 = vmatprep.subr.mxu0 0.0
      %710 = vmatpush1.msra.mxu0 0.0
      %711 = vmatprep.subr.mxu0 0.0
      %712 = vmatpush1.msra.mxu0 0.0
      %713 = vmatprep.subr.mxu0 0.0
      %714 = vmatpush1.msra.mxu0 0.0
      %715 = vmatprep.subr.mxu0 0.0
      %716 = vmatpush1.msra.mxu0 0.0
      %717 = vmatprep.subr.mxu0 0.0
      %718 = vmatpush1.msra.mxu0 0.0
      %719 = vmatprep.subr.mxu0 0.0
      %720 = vmatpush1.msra.mxu0 0.0
      %721 = vmatprep.subr.mxu0 0.0
      %722 = vmatpush1.msra.mxu0 0.0
      %723 = vmatprep.mubr.f32.mxu0 0.0
      %724 = vmatmul.mubr.f32.gmra.mrb[0].mxu0 %v657
      %v725 = vpop.f32.mrb[0].mxu0
      %v726 = vadd.f32 0.0, %v725
      %v727 = vpop.f32.mrb[0].mxu0
      %728 = vdwg.mxu0
      %v729 = vadd.f32 %v651, %v726
      %730 = vst.msk [vmem:[%s644] sm:$0xff] %vm348, %v729
      %731 = vst.msk [vmem:[%s619] sm:$0xff] %vm449, %v624
      %v732 = vld [vmem:[%s284] sm:$0xff]
      %v733 = vld [vmem:[%s291] sm:$0xff]
      %v734 = vld [vmem:[%s298] sm:$0xff]
      %736 = vrot.lane.b32.xlu0 %v732, 112
      %v737 = vpop.permute.xlu0 %736
      %739 = vrot.lane.b32.xlu0 %v733, 112
      %v740 = vpop.permute.xlu0 %739
      %v741 = vsel %vm348, %v737, 0
      %v743 = vsel %vm348, %v740, 0
      %745 = vmatprep.subr.mxu0 0.0
      %746 = vmatpush1.xpose.msra.mxu0 %v743
      %747 = vmatprep.subr.mxu0 0.0
      %748 = vmatpush1.xpose.msra.mxu0 0.0
      %749 = vmatprep.subr.mxu0 0.0
      %750 = vmatpush1.xpose.msra.mxu0 0.0
      %751 = vmatprep.subr.mxu0 0.0
      %752 = vmatpush1.xpose.msra.mxu0 0.0
      %753 = vmatprep.subr.mxu0 0.0
      %754 = vmatpush1.xpose.msra.mxu0 0.0
      %755 = vmatprep.subr.mxu0 0.0
      %756 = vmatpush1.xpose.msra.mxu0 0.0
      %757 = vmatprep.subr.mxu0 0.0
      %758 = vmatpush1.xpose.msra.mxu0 0.0
      %759 = vmatprep.subr.mxu0 0.0
      %760 = vmatpush1.xpose.msra.mxu0 0.0
      %761 = vmatprep.subr.mxu0 0.0
      %762 = vmatpush1.xpose.msra.mxu0 0.0
      %763 = vmatprep.subr.mxu0 0.0
      %764 = vmatpush1.xpose.msra.mxu0 0.0
      %765 = vmatprep.subr.mxu0 0.0
      %766 = vmatpush1.xpose.msra.mxu0 0.0
      %767 = vmatprep.subr.mxu0 0.0
      %768 = vmatpush1.xpose.msra.mxu0 0.0
      %769 = vmatprep.subr.mxu0 0.0
      %770 = vmatpush1.xpose.msra.mxu0 0.0
      %771 = vmatprep.subr.mxu0 0.0
      %772 = vmatpush1.xpose.msra.mxu0 0.0
      %773 = vmatprep.subr.mxu0 0.0
      %774 = vmatpush1.xpose.msra.mxu0 0.0
      %775 = vmatprep.subr.mxu0 0.0
      %776 = vmatpush1.xpose.msra.mxu0 0.0
      %777 = vmatprep.subr.mxu0 0.0
      %778 = vmatpush1.xpose.msra.mxu0 0.0
      %779 = vmatprep.subr.mxu0 0.0
      %780 = vmatpush1.xpose.msra.mxu0 0.0
      %781 = vmatprep.subr.mxu0 0.0
      %782 = vmatpush1.xpose.msra.mxu0 0.0
      %783 = vmatprep.subr.mxu0 0.0
      %784 = vmatpush1.xpose.msra.mxu0 0.0
      %785 = vmatprep.subr.mxu0 0.0
      %786 = vmatpush1.xpose.msra.mxu0 0.0
      %787 = vmatprep.subr.mxu0 0.0
      %788 = vmatpush1.xpose.msra.mxu0 0.0
      %789 = vmatprep.subr.mxu0 0.0
      %790 = vmatpush1.xpose.msra.mxu0 0.0
      %791 = vmatprep.subr.mxu0 0.0
      %792 = vmatpush1.xpose.msra.mxu0 0.0
      %793 = vmatprep.subr.mxu0 0.0
      %794 = vmatpush1.xpose.msra.mxu0 0.0
      %795 = vmatprep.subr.mxu0 0.0
      %796 = vmatpush1.xpose.msra.mxu0 0.0
      %797 = vmatprep.subr.mxu0 0.0
      %798 = vmatpush1.xpose.msra.mxu0 0.0
      %799 = vmatprep.subr.mxu0 0.0
      %800 = vmatpush1.xpose.msra.mxu0 0.0
      %801 = vmatprep.subr.mxu0 0.0
      %802 = vmatpush1.xpose.msra.mxu0 0.0
      %803 = vmatprep.subr.mxu0 0.0
      %804 = vmatpush1.xpose.msra.mxu0 0.0
      %805 = vmatprep.subr.mxu0 0.0
      %806 = vmatpush1.xpose.msra.mxu0 0.0
      %807 = vmatprep.subr.mxu0 0.0
      %808 = vmatpush1.xpose.msra.mxu0 0.0
      %809 = vmatprep.mubr.f32.mxu0 0.0
      %810 = vmatmul.mubr.f32.gmra.mrb[0].mxu0 %v741
      %v811 = vpop.f32.mrb[0].mxu0
      %v812 = vadd.f32 0.0, %v811
      %v813 = vpop.f32.mrb[0].mxu0
      %814 = vdwg.mxu0
      %v815 = vsel %vm344, %v812, -1e+20
      %v816 = vmul.f32 %v815, 0.17677669
      %s817 = scalar_lea.vmem [#allocation2], 16
      %v818 = vld [vmem:[%s817] sm:$0xff]
      %v819 = vsel %vm348, %v816, -inf
      %820 = vmax.xlane.f32.xlu0 %v819
      %v821 = vpop.xlane.xlu0 %820
      %v822 = vmax.f32 %v818, %v821
      %v823 = vsub.f32 %v818, %v822
      %v824 = vmul.f32 %v823, 1.442695
      %v825 = vpow.pop %v824
      %827 = vset.pattern.permute.xlu0 0
      %828 = vperm.xlu0 %827, %v822
      %v829 = vpop.permute.xlu0 %828
      %v831 = vsub.f32 %v816, %v829
      %v832 = vmul.f32 %v831, 1.442695
      %v833 = vpow.pop %v832
      %s834 = scalar_lea.vmem [#allocation3], 16
      %v835 = vld [vmem:[%s834] sm:$0xff]
      %v836 = vmul.f32 %v825, %v835
      %v837 = vsel %vm348, %v833, 0.0
      %838 = vadd.xlane.f32.xlu0 %v837
      %v839 = vpop.xlane.xlu0 %838
      %v840 = vadd.f32 %v836, %v839
      %841 = vst.msk [vmem:[%s834] sm:$0xff] %vm449, %v840
      %s842 = scalar_lea.vmem [#allocation4], 16
      %v843 = vld [vmem:[%s842] sm:$0xff]
      %845 = vset.pattern.permute.xlu0 0
      %846 = vperm.xlu0 %845, %v825
      %v847 = vpop.permute.xlu0 %846
      %v849 = vmul.f32 %v847, %v843
      %851 = vrot.lane.b32.xlu0 %v734, 112
      %v852 = vpop.permute.xlu0 %851
      %v855 = vsel %vm348, %v833, 0
      %857 = vmatprep.subr.mxu0 0.0
      %858 = vmatpush1.msra.mxu0 %v852
      %859 = vmatprep.subr.mxu0 0.0
      %860 = vmatpush1.msra.mxu0 0.0
      %861 = vmatprep.subr.mxu0 0.0
      %862 = vmatpush1.msra.mxu0 0.0
      %863 = vmatprep.subr.mxu0 0.0
      %864 = vmatpush1.msra.mxu0 0.0
      %865 = vmatprep.subr.mxu0 0.0
      %866 = vmatpush1.msra.mxu0 0.0
      %867 = vmatprep.subr.mxu0 0.0
      %868 = vmatpush1.msra.mxu0 0.0
      %869 = vmatprep.subr.mxu0 0.0
      %870 = vmatpush1.msra.mxu0 0.0
      %871 = vmatprep.subr.mxu0 0.0
      %872 = vmatpush1.msra.mxu0 0.0
      %873 = vmatprep.subr.mxu0 0.0
      %874 = vmatpush1.msra.mxu0 0.0
      %875 = vmatprep.subr.mxu0 0.0
      %876 = vmatpush1.msra.mxu0 0.0
      %877 = vmatprep.subr.mxu0 0.0
      %878 = vmatpush1.msra.mxu0 0.0
      %879 = vmatprep.subr.mxu0 0.0
      %880 = vmatpush1.msra.mxu0 0.0
      %881 = vmatprep.subr.mxu0 0.0
      %882 = vmatpush1.msra.mxu0 0.0
      %883 = vmatprep.subr.mxu0 0.0
      %884 = vmatpush1.msra.mxu0 0.0
      %885 = vmatprep.subr.mxu0 0.0
      %886 = vmatpush1.msra.mxu0 0.0
      %887 = vmatprep.subr.mxu0 0.0
      %888 = vmatpush1.msra.mxu0 0.0
      %889 = vmatprep.subr.mxu0 0.0
      %890 = vmatpush1.msra.mxu0 0.0
      %891 = vmatprep.subr.mxu0 0.0
      %892 = vmatpush1.msra.mxu0 0.0
      %893 = vmatprep.subr.mxu0 0.0
      %894 = vmatpush1.msra.mxu0 0.0
      %895 = vmatprep.subr.mxu0 0.0
      %896 = vmatpush1.msra.mxu0 0.0
      %897 = vmatprep.subr.mxu0 0.0
      %898 = vmatpush1.msra.mxu0 0.0
      %899 = vmatprep.subr.mxu0 0.0
      %900 = vmatpush1.msra.mxu0 0.0
      %901 = vmatprep.subr.mxu0 0.0
      %902 = vmatpush1.msra.mxu0 0.0
      %903 = vmatprep.subr.mxu0 0.0
      %904 = vmatpush1.msra.mxu0 0.0
      %905 = vmatprep.subr.mxu0 0.0
      %906 = vmatpush1.msra.mxu0 0.0
      %907 = vmatprep.subr.mxu0 0.0
      %908 = vmatpush1.msra.mxu0 0.0
      %909 = vmatprep.subr.mxu0 0.0
      %910 = vmatpush1.msra.mxu0 0.0
      %911 = vmatprep.subr.mxu0 0.0
      %912 = vmatpush1.msra.mxu0 0.0
      %913 = vmatprep.subr.mxu0 0.0
      %914 = vmatpush1.msra.mxu0 0.0
      %915 = vmatprep.subr.mxu0 0.0
      %916 = vmatpush1.msra.mxu0 0.0
      %917 = vmatprep.subr.mxu0 0.0
      %918 = vmatpush1.msra.mxu0 0.0
      %919 = vmatprep.subr.mxu0 0.0
      %920 = vmatpush1.msra.mxu0 0.0
      %921 = vmatprep.mubr.f32.mxu0 0.0
      %922 = vmatmul.mubr.f32.gmra.mrb[0].mxu0 %v855
      %v923 = vpop.f32.mrb[0].mxu0
      %v924 = vadd.f32 0.0, %v923
      %v925 = vpop.f32.mrb[0].mxu0
      %926 = vdwg.mxu0
      %v927 = vadd.f32 %v849, %v924
      %928 = vst.msk [vmem:[%s842] sm:$0xff] %vm348, %v927
      %929 = vst.msk [vmem:[%s817] sm:$0xff] %vm449, %v822
      %v930 = vld [vmem:[%s284] sm:$0xff]
      %v931 = vld [vmem:[%s291] sm:$0xff]
      %v932 = vld [vmem:[%s298] sm:$0xff]
      %934 = vrot.lane.b32.xlu0 %v930, 104
      %v935 = vpop.permute.xlu0 %934
      %937 = vrot.lane.b32.xlu0 %v931, 104
      %v938 = vpop.permute.xlu0 %937
      %v939 = vsel %vm348, %v935, 0
      %v941 = vsel %vm348, %v938, 0
      %943 = vmatprep.subr.mxu0 0.0
      %944 = vmatpush1.xpose.msra.mxu0 %v941
      %945 = vmatprep.subr.mxu0 0.0
      %946 = vmatpush1.xpose.msra.mxu0 0.0
      %947 = vmatprep.subr.mxu0 0.0
      %948 = vmatpush1.xpose.msra.mxu0 0.0
      %949 = vmatprep.subr.mxu0 0.0
      %950 = vmatpush1.xpose.msra.mxu0 0.0
      %951 = vmatprep.subr.mxu0 0.0
      %952 = vmatpush1.xpose.msra.mxu0 0.0
      %953 = vmatprep.subr.mxu0 0.0
      %954 = vmatpush1.xpose.msra.mxu0 0.0
      %955 = vmatprep.subr.mxu0 0.0
      %956 = vmatpush1.xpose.msra.mxu0 0.0
      %957 = vmatprep.subr.mxu0 0.0
      %958 = vmatpush1.xpose.msra.mxu0 0.0
      %959 = vmatprep.subr.mxu0 0.0
      %960 = vmatpush1.xpose.msra.mxu0 0.0
      %961 = vmatprep.subr.mxu0 0.0
      %962 = vmatpush1.xpose.msra.mxu0 0.0
      %963 = vmatprep.subr.mxu0 0.0
      %964 = vmatpush1.xpose.msra.mxu0 0.0
      %965 = vmatprep.subr.mxu0 0.0
      %966 = vmatpush1.xpose.msra.mxu0 0.0
      %967 = vmatprep.subr.mxu0 0.0
      %968 = vmatpush1.xpose.msra.mxu0 0.0
      %969 = vmatprep.subr.mxu0 0.0
      %970 = vmatpush1.xpose.msra.mxu0 0.0
      %971 = vmatprep.subr.mxu0 0.0
      %972 = vmatpush1.xpose.msra.mxu0 0.0
      %973 = vmatprep.subr.mxu0 0.0
      %974 = vmatpush1.xpose.msra.mxu0 0.0
      %975 = vmatprep.subr.mxu0 0.0
      %976 = vmatpush1.xpose.msra.mxu0 0.0
      %977 = vmatprep.subr.mxu0 0.0
      %978 = vmatpush1.xpose.msra.mxu0 0.0
      %979 = vmatprep.subr.mxu0 0.0
      %980 = vmatpush1.xpose.msra.mxu0 0.0
      %981 = vmatprep.subr.mxu0 0.0
      %982 = vmatpush1.xpose.msra.mxu0 0.0
      %983 = vmatprep.subr.mxu0 0.0
      %984 = vmatpush1.xpose.msra.mxu0 0.0
      %985 = vmatprep.subr.mxu0 0.0
      %986 = vmatpush1.xpose.msra.mxu0 0.0
      %987 = vmatprep.subr.mxu0 0.0
      %988 = vmatpush1.xpose.msra.mxu0 0.0
      %989 = vmatprep.subr.mxu0 0.0
      %990 = vmatpush1.xpose.msra.mxu0 0.0
      %991 = vmatprep.subr.mxu0 0.0
      %992 = vmatpush1.xpose.msra.mxu0 0.0
      %993 = vmatprep.subr.mxu0 0.0
      %994 = vmatpush1.xpose.msra.mxu0 0.0
      %995 = vmatprep.subr.mxu0 0.0
      %996 = vmatpush1.xpose.msra.mxu0 0.0
      %997 = vmatprep.subr.mxu0 0.0
      %998 = vmatpush1.xpose.msra.mxu0 0.0
      %999 = vmatprep.subr.mxu0 0.0
      %1000 = vmatpush1.xpose.msra.mxu0 0.0
      %1001 = vmatprep.subr.mxu0 0.0
      %1002 = vmatpush1.xpose.msra.mxu0 0.0
      %1003 = vmatprep.subr.mxu0 0.0
      %1004 = vmatpush1.xpose.msra.mxu0 0.0
      %1005 = vmatprep.subr.mxu0 0.0
      %1006 = vmatpush1.xpose.msra.mxu0 0.0
      %1007 = vmatprep.mubr.f32.mxu0 0.0
      %1008 = vmatmul.mubr.f32.gmra.mrb[0].mxu0 %v939
      %v1009 = vpop.f32.mrb[0].mxu0
      %v1010 = vadd.f32 0.0, %v1009
      %v1011 = vpop.f32.mrb[0].mxu0
      %1012 = vdwg.mxu0
      %v1013 = vsel %vm344, %v1010, -1e+20
      %v1014 = vmul.f32 %v1013, 0.17677669
      %s1015 = scalar_lea.vmem [#allocation2], 24
      %v1016 = vld [vmem:[%s1015] sm:$0xff]
      %v1017 = vsel %vm348, %v1014, -inf
      %1018 = vmax.xlane.f32.xlu0 %v1017
      %v1019 = vpop.xlane.xlu0 %1018
      %v1020 = vmax.f32 %v1016, %v1019
      %v1021 = vsub.f32 %v1016, %v1020
      %v1022 = vmul.f32 %v1021, 1.442695
      %v1023 = vpow.pop %v1022
      %1025 = vset.pattern.permute.xlu0 0
      %1026 = vperm.xlu0 %1025, %v1020
      %v1027 = vpop.permute.xlu0 %1026
      %v1029 = vsub.f32 %v1014, %v1027
      %v1030 = vmul.f32 %v1029, 1.442695
      %v1031 = vpow.pop %v1030
      %s1032 = scalar_lea.vmem [#allocation3], 24
      %v1033 = vld [vmem:[%s1032] sm:$0xff]
      %v1034 = vmul.f32 %v1023, %v1033
      %v1035 = vsel %vm348, %v1031, 0.0
      %1036 = vadd.xlane.f32.xlu0 %v1035
      %v1037 = vpop.xlane.xlu0 %1036
      %v1038 = vadd.f32 %v1034, %v1037
      %1039 = vst.msk [vmem:[%s1032] sm:$0xff] %vm449, %v1038
      %s1040 = scalar_lea.vmem [#allocation4], 24
      %v1041 = vld [vmem:[%s1040] sm:$0xff]
      %1043 = vset.pattern.permute.xlu0 0
      %1044 = vperm.xlu0 %1043, %v1023
      %v1045 = vpop.permute.xlu0 %1044
      %v1047 = vmul.f32 %v1045, %v1041
      %1049 = vrot.lane.b32.xlu0 %v932, 104
      %v1050 = vpop.permute.xlu0 %1049
      %v1053 = vsel %vm348, %v1031, 0
      %1055 = vmatprep.subr.mxu0 0.0
      %1056 = vmatpush1.msra.mxu0 %v1050
      %1057 = vmatprep.subr.mxu0 0.0
      %1058 = vmatpush1.msra.mxu0 0.0
      %1059 = vmatprep.subr.mxu0 0.0
      %1060 = vmatpush1.msra.mxu0 0.0
      %1061 = vmatprep.subr.mxu0 0.0
      %1062 = vmatpush1.msra.mxu0 0.0
      %1063 = vmatprep.subr.mxu0 0.0
      %1064 = vmatpush1.msra.mxu0 0.0
      %1065 = vmatprep.subr.mxu0 0.0
      %1066 = vmatpush1.msra.mxu0 0.0
      %1067 = vmatprep.subr.mxu0 0.0
      %1068 = vmatpush1.msra.mxu0 0.0
      %1069 = vmatprep.subr.mxu0 0.0
      %1070 = vmatpush1.msra.mxu0 0.0
      %1071 = vmatprep.subr.mxu0 0.0
      %1072 = vmatpush1.msra.mxu0 0.0
      %1073 = vmatprep.subr.mxu0 0.0
      %1074 = vmatpush1.msra.mxu0 0.0
      %1075 = vmatprep.subr.mxu0 0.0
      %1076 = vmatpush1.msra.mxu0 0.0
      %1077 = vmatprep.subr.mxu0 0.0
      %1078 = vmatpush1.msra.mxu0 0.0
      %1079 = vmatprep.subr.mxu0 0.0
      %1080 = vmatpush1.msra.mxu0 0.0
      %1081 = vmatprep.subr.mxu0 0.0
      %1082 = vmatpush1.msra.mxu0 0.0
      %1083 = vmatprep.subr.mxu0 0.0
      %1084 = vmatpush1.msra.mxu0 0.0
      %1085 = vmatprep.subr.mxu0 0.0
      %1086 = vmatpush1.msra.mxu0 0.0
      %1087 = vmatprep.subr.mxu0 0.0
      %1088 = vmatpush1.msra.mxu0 0.0
      %1089 = vmatprep.subr.mxu0 0.0
      %1090 = vmatpush1.msra.mxu0 0.0
      %1091 = vmatprep.subr.mxu0 0.0
      %1092 = vmatpush1.msra.mxu0 0.0
      %1093 = vmatprep.subr.mxu0 0.0
      %1094 = vmatpush1.msra.mxu0 0.0
      %1095 = vmatprep.subr.mxu0 0.0
      %1096 = vmatpush1.msra.mxu0 0.0
      %1097 = vmatprep.subr.mxu0 0.0
      %1098 = vmatpush1.msra.mxu0 0.0
      %1099 = vmatprep.subr.mxu0 0.0
      %1100 = vmatpush1.msra.mxu0 0.0
      %1101 = vmatprep.subr.mxu0 0.0
      %1102 = vmatpush1.msra.mxu0 0.0
      %1103 = vmatprep.subr.mxu0 0.0
      %1104 = vmatpush1.msra.mxu0 0.0
      %1105 = vmatprep.subr.mxu0 0.0
      %1106 = vmatpush1.msra.mxu0 0.0
      %1107 = vmatprep.subr.mxu0 0.0
      %1108 = vmatpush1.msra.mxu0 0.0
      %1109 = vmatprep.subr.mxu0 0.0
      %1110 = vmatpush1.msra.mxu0 0.0
      %1111 = vmatprep.subr.mxu0 0.0
      %1112 = vmatpush1.msra.mxu0 0.0
      %1113 = vmatprep.subr.mxu0 0.0
      %1114 = vmatpush1.msra.mxu0 0.0
      %1115 = vmatprep.subr.mxu0 0.0
      %1116 = vmatpush1.msra.mxu0 0.0
      %1117 = vmatprep.subr.mxu0 0.0
      %1118 = vmatpush1.msra.mxu0 0.0
      %1119 = vmatprep.mubr.f32.mxu0 0.0
      %1120 = vmatmul.mubr.f32.gmra.mrb[0].mxu0 %v1053
      %v1121 = vpop.f32.mrb[0].mxu0
      %v1122 = vadd.f32 0.0, %v1121
      %v1123 = vpop.f32.mrb[0].mxu0
      %1124 = vdwg.mxu0
      %v1125 = vadd.f32 %v1047, %v1122
      %1126 = vst.msk [vmem:[%s1040] sm:$0xff] %vm348, %v1125
      %1127 = vst.msk [vmem:[%s1015] sm:$0xff] %vm449, %v1020
      // Predicated region
      $region41: #{transformer_fwd.26} parent=35 // pred_check
        %p1128 = pneg %p312
      $region42: #{transformer_fwd.26} parent=35 // pred_check_branch
        %1130 = sbr.rel (%p1128) target = $region44
      $region43: #{transformer_fwd.26} parent=35 // pred_region
        %v1131 = vld [vmem:[#allocation3] sm:$0xff]
        %v1132 = vrcp.pop %v1131
        %v1133 = vld [vmem:[#allocation4] sm:$0xff]
        %1135 = vset.pattern.permute.xlu0 0
        %1136 = vperm.xlu0 %1135, %v1132
        %v1137 = vpop.permute.xlu0 %1136
        %v1139 = vmul.f32 %v1133, %v1137
        %v1140 = vld [vmem:[%s636] sm:$0xff]
        %v1141 = vrcp.pop %v1140
        %v1142 = vld [vmem:[%s644] sm:$0xff]
        %1144 = vset.pattern.permute.xlu0 0
        %1145 = vperm.xlu0 %1144, %v1141
        %v1146 = vpop.permute.xlu0 %1145
        %v1148 = vmul.f32 %v1142, %v1146
        %v1149 = vld [vmem:[%s834] sm:$0xff]
        %v1150 = vrcp.pop %v1149
        %v1151 = vld [vmem:[%s842] sm:$0xff]
        %1153 = vset.pattern.permute.xlu0 0
        %1154 = vperm.xlu0 %1153, %v1150
        %v1155 = vpop.permute.xlu0 %1154
        %v1157 = vmul.f32 %v1151, %v1155
        %v1158 = vld [vmem:[%s1032] sm:$0xff]
        %v1159 = vrcp.pop %v1158
        %v1160 = vld [vmem:[%s1040] sm:$0xff]
        %1162 = vset.pattern.permute.xlu0 0
        %1163 = vperm.xlu0 %1162, %v1159
        %v1164 = vpop.permute.xlu0 %1163
        %v1166 = vmul.f32 %v1160, %v1164
        %1168 = vrot.lane.b32.xlu0 %v1148, 8
        %v1169 = vpop.permute.xlu0 %1168
        %1172 = vrot.lane.b32.xlu0 %v1157, 16
        %v1173 = vpop.permute.xlu0 %1172
        %1176 = vrot.lane.b32.xlu0 %v1166, 24
        %v1177 = vpop.permute.xlu0 %1176
        %v1179 = vsel %vm348, %v1139, %v1169
        %vm1180 = vcmask 130048
        %v1181 = vsel %vm1180, %v1179, %v1173
        %vm1182 = vcmask 195584
        %v1183 = vsel %vm1182, %v1181, %v1177
        %vm1184 = vcmask 261120
        %1185 = vst.msk [vmem:[%s311] sm:$0xff] %vm1184, %v1183
      $region44: #{transformer_fwd.26} parent=35 // pred_fallthru
        _
      %p1186 = scmp.lt.s32.totalorder %s20, 1
      %s1187 = scalar_select %p1186, %s20, 1
      %p1188 = scmp.lt.s32.totalorder %s21, 0
      %s1189 = scalar_select %p1188, %s21, 0
      %s1190 = sadd.s32 %s1189, %s1187
      %s1191 = smul.addr %s1190, 8
      %s1192 = scalar_lea.vmem %s4, %s1191
      // Predicated region
      $region45: #{transformer_fwd.26} parent=35 // pred_check
        %p1193 = pneg %p166
      $region46: #{transformer_fwd.26} parent=35 // pred_check_branch
        %1195 = sbr.rel (%p1193) target = $region48
      $region47: #{transformer_fwd.26} parent=35 // pred_region
        _
      $region48: #{transformer_fwd.26} parent=35 // pred_fallthru
        _
    $region36: #{transformer_fwd.26} parent=5 // pred_fallthru
      _
    %p1196 = scmp.le.s32.totalorder 2, %s10
    // Predicated region
    $region49: #{transformer_fwd.26} parent=5 // pred_check
      %p1197 = pneg %p1196
    $region50: #{transformer_fwd.26} parent=5 // pred_check_branch
      %1199 = sbr.rel (%p1197) target = $region52
    $region51: #{transformer_fwd.26} parent=5 // pred_region
      %s1200 = ssub.s32 %s10, 2
      // Predicated region
      $region53: #{transformer_fwd.26} parent=51 // pred_check
        %p1201 = pneg %p172
      $region54: #{transformer_fwd.26} parent=51 // pred_check_branch
        %1203 = sbr.rel (%p1201) target = $region56
      $region55: #{transformer_fwd.26} parent=51 // pred_region
        %p1204 = scmp.lt.s32.totalorder %s23, 1
        %s1205 = scalar_select %p1204, %s23, 1
        %p1206 = scmp.lt.s32.totalorder %s24, 0
        %s1207 = scalar_select %p1206, %s24, 0
        %s1208 = sadd.s32 %s1207, %s1205
        %s1209 = smul.addr %s1208, 8
        %s1210 = scalar_lea.vmem %s4, %s1209
      $region56: #{transformer_fwd.26} parent=51 // pred_fallthru
        _
    $region52: #{transformer_fwd.26} parent=5 // pred_fallthru
      _
  $region6: #{transformer_fwd.26} parent=0 // loop_footer
    %s14 = sadd.s32 1, %s10
  $region7: #{transformer_fwd.26} parent=0 // loop_footer_branch
    %9 = sbr.rel target = $region3
  $region8: #{transformer_fwd.26} parent=0 // loop_exit
    _

// kernel: transformer_fwd.34
$region0: #{transformer_fwd.34}
  #allocation0 [shape = 'u32[]', space=smem, size = 0x4, offset = 0x4, fixed_abs, tag = 'smem constant byte address 0x4 - core index']
  #allocation1 [shape = 'u32[144,128]{1,0:T(1,128)}', space=vmem, size = 0x12000, scoped, tag = 'internal scratch']
  #allocation2 [shape = 'f32[4,8,1]{2,1,0:T(8,128)}', space=vmem, size = 0x4000, scoped, tag = 'scratch operand']
  #allocation3 [shape = 'f32[4,8,1]{2,1,0:T(8,128)}', space=vmem, size = 0x4000, scoped, tag = 'scratch operand']
  #allocation4 [shape = 'f32[4,8,8]{2,1,0:T(8,128)}', space=vmem, size = 0x4000, scoped, tag = 'scratch operand']
  %s0 = inlined_call_operand.vmem [shape: f32[2,8,32], index: 0, kind: input, shape index: {}]
  %s1 = inlined_call_operand.vmem [shape: f32[2,8,32], index: 1, kind: input, shape index: {}]
  %s2 = inlined_call_operand.vmem [shape: f32[2,8,32], index: 2, kind: input, shape index: {}]
  %s3 = inlined_call_operand.vmem [shape: f32[2,1,8], index: 3, kind: input, shape index: {}]
  %s4 = inlined_call_operand.vmem [shape: f32[2,8,32], index: 4, kind: output, shape index: {}]
  %s5 = sld [smem:[#allocation0]]
  $region61: #{transformer_fwd.34} parent=0
    _
  %s7 = ssub.s32 1, %s5
  %s8 = scalar_select 0, %s7, %s5
  loop: start=0, step=1, limit=4
  $region2: #{transformer_fwd.34} parent=0 // loop_pre_header
    _
  $region3: #{transformer_fwd.34} parent=0 // loop_header
    %s10 = sphi 0, %s14
    %p11 = scmp.ge.s32.totalorder %s10, 4
    %s17 = sphi 0, %s36
    %s18 = sphi 0, %s32
    %s19 = sphi 0, %s28
    %s20 = sphi 0, %s17
    %s21 = sphi 0, %s18
    %s22 = sphi 0, %s19
    %s23 = sphi 0, %s20
    %s24 = sphi 0, %s21
    %s25 = sphi 0, %s22
    %s41 = sphi 0, %s43
    %s44 = sphi 0, %s41
    %s45 = sphi 0, %s44
    %s61 = sphi 0, %s45
    %s69 = sphi 0, %s71
    %s72 = sphi 0, %s69
    %s73 = sphi 0, %s72
    %s89 = sphi 0, %s73
    %s97 = sphi 0, %s99
    %s100 = sphi 0, %s97
    %s101 = sphi 0, %s100
    %s117 = sphi 0, %s101
    %s125 = sphi 0, %s127
    %s128 = sphi 0, %s125
    %s129 = sphi 0, %s128
    %s145 = sphi 0, %s129
    %s153 = sphi 0, %s155
    %s156 = sphi 0, %s153
    %s157 = sphi 0, %s156
    %s173 = sphi 0, %s157
  $region4: #{transformer_fwd.34} parent=0 // loop_header_branch
    %13 = sbr.rel (%p11) target = $region8
  $region5: #{transformer_fwd.34} parent=0 // loop_body
    %s15 = ssub.s32 %s10, 1
    %s16 = ssub.s32 %s10, 2
    %s26 = sadd.s32 1, %s19
    %p27 = scmp.ge.s32.totalorder %s26, 1
    %s28 = scalar_select %p27, 0, %s26
    %s29 = sadd.s32 1, %s18
    %s30 = scalar_select %p27, %s29, %s18
    %p31 = scmp.ge.s32.totalorder %s30, 1
    %s32 = scalar_select %p31, 0, %s30
    %s33 = sadd.s32 1, %s17
    %s34 = scalar_select %p31, %s33, %s17
    %p35 = scmp.ge.s32.totalorder %s34, 2
    %s36 = scalar_select %p35, 0, %s34
    %s37 = ssub.s32 %s17, %s36
    %s38 = ssub.s32 %s18, %s32
    %s39 = sor.u32 %s37, %s38
    %p40 = scmp.eq.s32.totalorder %s39, 0
    %s42 = sadd.s32 %s41, 1
    %s43 = scalar_select %p40, %s41, %s42
    %p46 = pneg %p40
    %p47 = scmp.eq.s32.totalorder %s10, 1
    %p48 = por %p46, %p47
    %p49 = scmp.ne.s32.totalorder %s41, %s44
    %p50 = scmp.eq.s32.totalorder %s10, 0
    %p51 = por %p49, %p50
    %p52 = scmp.ne.s32.totalorder %s41, %s44
    %p53 = scmp.eq.s32.totalorder %s15, 1
    %p54 = por %p52, %p53
    %p55 = scmp.ne.s32.totalorder %s44, %s45
    %p56 = scmp.eq.s32.totalorder %s15, 0
    %p57 = por %p55, %p56
    %p58 = scmp.ne.s32.totalorder %s44, %s45
    %p59 = scmp.eq.s32.totalorder %s16, 1
    %p60 = por %p58, %p59
    %p62 = scmp.ne.s32.totalorder %s45, %s61
    %p63 = scmp.eq.s32.totalorder %s16, 0
    %p64 = por %p62, %p63
    %s65 = ssub.s32 %s17, %s36
    %s66 = ssub.s32 %s19, %s28
    %s67 = sor.u32 %s65, %s66
    %p68 = scmp.eq.s32.totalorder %s67, 0
    %s70 = sadd.s32 %s69, 1
    %s71 = scalar_select %p68, %s69, %s70
    %p74 = pneg %p68
    %p75 = scmp.eq.s32.totalorder %s10, 1
    %p76 = por %p74, %p75
    %p77 = scmp.ne.s32.totalorder %s69, %s72
    %p78 = scmp.eq.s32.totalorder %s10, 0
    %p79 = por %p77, %p78
    %p80 = scmp.ne.s32.totalorder %s69, %s72
    %p81 = scmp.eq.s32.totalorder %s15, 1
    %p82 = por %p80, %p81
    %p83 = scmp.ne.s32.totalorder %s72, %s73
    %p84 = scmp.eq.s32.totalorder %s15, 0
    %p85 = por %p83, %p84
    %p86 = scmp.ne.s32.totalorder %s72, %s73
    %p87 = scmp.eq.s32.totalorder %s16, 1
    %p88 = por %p86, %p87
    %p90 = scmp.ne.s32.totalorder %s73, %s89
    %p91 = scmp.eq.s32.totalorder %s16, 0
    %p92 = por %p90, %p91
    %s93 = ssub.s32 %s17, %s36
    %s94 = ssub.s32 %s19, %s28
    %s95 = sor.u32 %s93, %s94
    %p96 = scmp.eq.s32.totalorder %s95, 0
    %s98 = sadd.s32 %s97, 1
    %s99 = scalar_select %p96, %s97, %s98
    %p102 = pneg %p96
    %p103 = scmp.eq.s32.totalorder %s10, 1
    %p104 = por %p102, %p103
    %p105 = scmp.ne.s32.totalorder %s97, %s100
    %p106 = scmp.eq.s32.totalorder %s10, 0
    %p107 = por %p105, %p106
    %p108 = scmp.ne.s32.totalorder %s97, %s100
    %p109 = scmp.eq.s32.totalorder %s15, 1
    %p110 = por %p108, %p109
    %p111 = scmp.ne.s32.totalorder %s100, %s101
    %p112 = scmp.eq.s32.totalorder %s15, 0
    %p113 = por %p111, %p112
    %p114 = scmp.ne.s32.totalorder %s100, %s101
    %p115 = scmp.eq.s32.totalorder %s16, 1
    %p116 = por %p114, %p115
    %p118 = scmp.ne.s32.totalorder %s101, %s117
    %p119 = scmp.eq.s32.totalorder %s16, 0
    %p120 = por %p118, %p119
    %s121 = ssub.s32 %s17, %s36
    %s122 = ssub.s32 %s19, %s28
    %s123 = sor.u32 %s121, %s122
    %p124 = scmp.eq.s32.totalorder %s123, 0
    %s126 = sadd.s32 %s125, 1
    %s127 = scalar_select %p124, %s125, %s126
    %p130 = pneg %p124
    %p131 = scmp.eq.s32.totalorder %s10, 1
    %p132 = por %p130, %p131
    %p133 = scmp.ne.s32.totalorder %s125, %s128
    %p134 = scmp.eq.s32.totalorder %s10, 0
    %p135 = por %p133, %p134
    %p136 = scmp.ne.s32.totalorder %s125, %s128
    %p137 = scmp.eq.s32.totalorder %s15, 1
    %p138 = por %p136, %p137
    %p139 = scmp.ne.s32.totalorder %s128, %s129
    %p140 = scmp.eq.s32.totalorder %s15, 0
    %p141 = por %p139, %p140
    %p142 = scmp.ne.s32.totalorder %s128, %s129
    %p143 = scmp.eq.s32.totalorder %s16, 1
    %p144 = por %p142, %p143
    %p146 = scmp.ne.s32.totalorder %s129, %s145
    %p147 = scmp.eq.s32.totalorder %s16, 0
    %p148 = por %p146, %p147
    %s149 = ssub.s32 %s17, %s36
    %s150 = ssub.s32 %s18, %s32
    %s151 = sor.u32 %s149, %s150
    %p152 = scmp.eq.s32.totalorder %s151, 0
    %s154 = sadd.s32 %s153, 1
    %s155 = scalar_select %p152, %s153, %s154
    %p158 = pneg %p152
    %p159 = scmp.eq.s32.totalorder %s10, 1
    %p160 = por %p158, %p159
    %p161 = scmp.ne.s32.totalorder %s153, %s156
    %p162 = scmp.eq.s32.totalorder %s10, 0
    %p163 = por %p161, %p162
    %p164 = scmp.ne.s32.totalorder %s153, %s156
    %p165 = scmp.eq.s32.totalorder %s15, 1
    %p166 = por %p164, %p165
    %p167 = scmp.ne.s32.totalorder %s156, %s157
    %p168 = scmp.eq.s32.totalorder %s15, 0
    %p169 = por %p167, %p168
    %p170 = scmp.ne.s32.totalorder %s156, %s157
    %p171 = scmp.eq.s32.totalorder %s16, 1
    %p172 = por %p170, %p171
    %p174 = scmp.ne.s32.totalorder %s157, %s173
    %p175 = scmp.eq.s32.totalorder %s16, 0
    %p176 = por %p174, %p175
    %p177 = scmp.le.s32.totalorder 1, %s10
    %p178 = scmp.lt.s32.totalorder %s10, 3
    %p179 = pnand %p177, %p178
    %p180 = pneg %p179
    // Predicated region
    $region9: #{transformer_fwd.34} parent=5 // pred_check
      _
    $region10: #{transformer_fwd.34} parent=5 // pred_check_branch
      %182 = sbr.rel (%p179) target = $region12
    $region11: #{transformer_fwd.34} parent=5 // pred_region
      %s183 = ssub.s32 %s10, 1
    $region12: #{transformer_fwd.34} parent=5 // pred_fallthru
      _
    %p184 = scmp.lt.s32.totalorder %s10, 2
    // Predicated region
    $region13: #{transformer_fwd.34} parent=5 // pred_check
      %p185 = pneg %p184
    $region14: #{transformer_fwd.34} parent=5 // pred_check_branch
      %187 = sbr.rel (%p185) target = $region16
    $region15: #{transformer_fwd.34} parent=5 // pred_region
      // Predicated region
      $region17: #{transformer_fwd.34} parent=15 // pred_check
        %p188 = pneg %p51
      $region18: #{transformer_fwd.34} parent=15 // pred_check_branch
        %190 = sbr.rel (%p188) target = $region20
      $region19: #{transformer_fwd.34} parent=15 // pred_region
        %p191 = scmp.lt.s32.totalorder %s17, 1
        %s192 = scalar_select %p191, %s17, 1
        %p193 = scmp.lt.s32.totalorder %s18, 0
        %s194 = scalar_select %p193, %s18, 0
        %s195 = sadd.s32 %s194, %s192
        %s196 = smul.addr %s195, 8
        %s197 = scalar_lea.vmem %s0, %s196
      $region20: #{transformer_fwd.34} parent=15 // pred_fallthru
        _
      // Predicated region
      $region21: #{transformer_fwd.34} parent=15 // pred_check
        %p198 = pneg %p79
      $region22: #{transformer_fwd.34} parent=15 // pred_check_branch
        %200 = sbr.rel (%p198) target = $region24
      $region23: #{transformer_fwd.34} parent=15 // pred_region
        %p201 = scmp.lt.s32.totalorder %s17, 1
        %s202 = scalar_select %p201, %s17, 1
        %p203 = scmp.lt.s32.totalorder %s19, 0
        %s204 = scalar_select %p203, %s19, 0
        %s205 = sadd.s32 %s204, %s202
        %s206 = smul.addr %s205, 8
        %s207 = scalar_lea.vmem %s1, %s206
      $region24: #{transformer_fwd.34} parent=15 // pred_fallthru
        _
      // Predicated region
      $region25: #{transformer_fwd.34} parent=15 // pred_check
        %p208 = pneg %p107
      $region26: #{transformer_fwd.34} parent=15 // pred_check_branch
        %210 = sbr.rel (%p208) target = $region28
      $region27: #{transformer_fwd.34} parent=15 // pred_region
        %p211 = scmp.lt.s32.totalorder %s17, 1
        %s212 = scalar_select %p211, %s17, 1
        %p213 = scmp.lt.s32.totalorder %s19, 0
        %s214 = scalar_select %p213, %s19, 0
        %s215 = sadd.s32 %s214, %s212
        %s216 = smul.addr %s215, 8
        %s217 = scalar_lea.vmem %s2, %s216
      $region28: #{transformer_fwd.34} parent=15 // pred_fallthru
        _
      // Predicated region
      $region29: #{transformer_fwd.34} parent=15 // pred_check
        %p218 = pneg %p135
      $region30: #{transformer_fwd.34} parent=15 // pred_check_branch
        %220 = sbr.rel (%p218) target = $region32
      $region31: #{transformer_fwd.34} parent=15 // pred_region
        %p221 = scmp.lt.s32.totalorder %s17, 1
        %s222 = scalar_select %p221, %s17, 1
        %p223 = scmp.lt.s32.totalorder %s19, 0
        %s224 = scalar_select %p223, %s19, 0
        %s225 = sadd.s32 %s224, %s222
        %s226 = scalar_lea.vmem %s3, %s225
      $region32: #{transformer_fwd.34} parent=15 // pred_fallthru
        _
    $region16: #{transformer_fwd.34} parent=5 // pred_fallthru
      _
    %p227 = scmp.le.s32.totalorder 1, %s10
    %p228 = scmp.lt.s32.totalorder %s10, 3
    %p229 = pnand %p227, %p228
    %p230 = pneg %p229
    // Predicated region
    $region33: #{transformer_fwd.34} parent=5 // pred_check
      _
    $region34: #{transformer_fwd.34} parent=5 // pred_check_branch
      %232 = sbr.rel (%p229) target = $region36
    $region35: #{transformer_fwd.34} parent=5 // pred_region
      %s233 = ssub.s32 %s10, 1
      %p234 = scmp.lt.s32.totalorder %s20, 1
      %s235 = scalar_select %p234, %s20, 1
      %p236 = scmp.lt.s32.totalorder %s21, 0
      %s237 = scalar_select %p236, %s21, 0
      %s238 = sadd.s32 %s237, %s235
      %s239 = smul.addr %s238, 8
      %s240 = scalar_lea.vmem %s0, %s239
      %p241 = pneg %p57
      %p242 = pneg %p54
      %p243 = scmp.lt.s32.totalorder %s20, 1
      %s244 = scalar_select %p243, %s20, 1
      %p245 = scmp.lt.s32.totalorder %s22, 0
      %s246 = scalar_select %p245, %s22, 0
      %s247 = sadd.s32 %s246, %s244
      %s248 = smul.addr %s247, 8
      %s249 = scalar_lea.vmem %s1, %s248
      %p250 = pneg %p85
      %p251 = pneg %p82
      %p252 = scmp.lt.s32.totalorder %s20, 1
      %s253 = scalar_select %p252, %s20, 1
      %p254 = scmp.lt.s32.totalorder %s22, 0
      %s255 = scalar_select %p254, %s22, 0
      %s256 = sadd.s32 %s255, %s253
      %s257 = smul.addr %s256, 8
      %s258 = scalar_lea.vmem %s2, %s257
      %p259 = pneg %p113
      %p260 = pneg %p110
      %p261 = scmp.lt.s32.totalorder %s20, 1
      %s262 = scalar_select %p261, %s20, 1
      %p263 = scmp.lt.s32.totalorder %s22, 0
      %s264 = scalar_select %p263, %s22, 0
      %s265 = sadd.s32 %s264, %s262
      %s266 = scalar_lea.vmem %s3, %s265
      %p267 = pneg %p141
      %p268 = pneg %p138
      %p269 = pneg %p169
      %p270 = pneg %p166
      %p271 = scmp.lt.s32.totalorder %s20, 1
      %s272 = scalar_select %p271, %s20, 1
      %p273 = scmp.lt.s32.totalorder %s21, 0
      %s274 = scalar_select %p273, %s21, 0
      %s275 = sadd.s32 %s274, %s272
      %s276 = smul.addr %s275, 8
      %s277 = scalar_lea.vmem %s4, %s276
      %p278 = scmp.lt.s32.totalorder %s20, 1
      %s279 = scalar_select %p278, %s20, 1
      %p280 = scmp.lt.s32.totalorder %s21, 0
      %s281 = scalar_select %p280, %s21, 0
      %s282 = sadd.s32 %s281, %s279
      %s283 = smul.addr %s282, 8
      %s284 = scalar_lea.vmem %s0, %s283
      %p285 = scmp.lt.s32.totalorder %s20, 1
      %s286 = scalar_select %p285, %s20, 1
      %p287 = scmp.lt.s32.totalorder %s22, 0
      %s288 = scalar_select %p287, %s22, 0
      %s289 = sadd.s32 %s288, %s286
      %s290 = smul.addr %s289, 8
      %s291 = scalar_lea.vmem %s1, %s290
      %p292 = scmp.lt.s32.totalorder %s20, 1
      %s293 = scalar_select %p292, %s20, 1
      %p294 = scmp.lt.s32.totalorder %s22, 0
      %s295 = scalar_select %p294, %s22, 0
      %s296 = sadd.s32 %s295, %s293
      %s297 = smul.addr %s296, 8
      %s298 = scalar_lea.vmem %s2, %s297
      %p299 = scmp.lt.s32.totalorder %s20, 1
      %s300 = scalar_select %p299, %s20, 1
      %p301 = scmp.lt.s32.totalorder %s22, 0
      %s302 = scalar_select %p301, %s22, 0
      %s303 = sadd.s32 %s302, %s300
      %s304 = scalar_lea.vmem %s3, %s303
      %p305 = scmp.lt.s32.totalorder %s20, 1
      %s306 = scalar_select %p305, %s20, 1
      %p307 = scmp.lt.s32.totalorder %s21, 0
      %s308 = scalar_select %p307, %s21, 0
      %s309 = sadd.s32 %s308, %s306
      %s310 = smul.addr %s309, 8
      %s311 = scalar_lea.vmem %s4, %s310
      %p312 = scmp.eq.s32.totalorder %s22, 0
      // Predicated region
      $region37: #{transformer_fwd.34} parent=35 // pred_check
        %p313 = pneg %p312
      $region38: #{transformer_fwd.34} parent=35 // pred_check_branch
        %315 = sbr.rel (%p313) target = $region40
      $region39: #{transformer_fwd.34} parent=35 // pred_region
        %vm316 = vcmask 7168
        %317 = vst.msk [vmem:[#allocation2] sm:$0xff] %vm316, -inf
        %318 = vst.msk [vmem:[#allocation2 + $0x8] sm:$0xff] %vm316, -inf
        %319 = vst.msk [vmem:[#allocation2 + $0x10] sm:$0xff] %vm316, -inf
        %320 = vst.msk [vmem:[#allocation2 + $0x18] sm:$0xff] %vm316, -inf
        %321 = vst.msk [vmem:[#allocation3] sm:$0xff] %vm316, 0.0
        %322 = vst.msk [vmem:[#allocation3 + $0x8] sm:$0xff] %vm316, 0.0
        %323 = vst.msk [vmem:[#allocation3 + $0x10] sm:$0xff] %vm316, 0.0
        %324 = vst.msk [vmem:[#allocation3 + $0x18] sm:$0xff] %vm316, 0.0
        %vm325 = vcmask 64512
        %326 = vst.msk [vmem:[#allocation4] sm:$0xff] %vm325, 0.0
        %327 = vst.msk [vmem:[#allocation4 + $0x8] sm:$0xff] %vm325, 0.0
        %328 = vst.msk [vmem:[#allocation4 + $0x10] sm:$0xff] %vm325, 0.0
        %329 = vst.msk [vmem:[#allocation4 + $0x18] sm:$0xff] %vm325, 0.0
      $region40: #{transformer_fwd.34} parent=35 // pred_fallthru
        _
      %s330 = smul.u32 %s22, 8
      %s331 = smul.u32 %s21, 8
      %s332 = sadd.s32 %s331, 7
      %p333 = scmp.le.s32.totalorder %s330, %s332
      // Predicated region
      $region41: #{transformer_fwd.34} parent=35 // pred_check
        %p334 = pneg %p333
      $region42: #{transformer_fwd.34} parent=35 // pred_check_branch
        %336 = sbr.rel (%p334) target = $region44
      $region43: #{transformer_fwd.34} parent=35 // pred_region
        %v337 = vlaneseq
        %v338 = vand.u32 %v337, 127
        %v339 = vstv %s330
        %v340 = vadd.s32 %v339, %v338
        %vm341 = vcmp.lt.s32.totalorder %v340, 8
        %v342 = vld [vmem:[%s304] sm:$0x1]
        %vm343 = vcmp.ne.f32.partialorder %v342, 0.0
        %v344 = vsel %vm343, 1, 0
        %v345 = vlaneseq
        %v346 = vshrl.u32 %v345, 7
        %v347 = vsub.s32 0, %v346
        %v348 = vrot.slane %v344, %v347
        %vm349 = vcmp.eq.s32.totalorder %v348, 1
        %vm350 = vmand %vm341, %vm349
        %v351 = vlaneseq
        %v352 = vshrl.u32 %v351, 7
        %v353 = vstv %s331
        %v354 = vadd.s32 %v353, %v352
        %vm355 = vcmp.le.s32.totalorder %v340, %v354
        %vm356 = vmand %vm350, %vm355
        %v357 = vld [vmem:[%s284] sm:$0xff]
        %v358 = vld [vmem:[%s291] sm:$0xff]
        %v359 = vld [vmem:[%s298] sm:$0xff]
        %vm360 = vcmask 64512
        %v362 = vsel %vm360, %v357, 0
        %v365 = vsel %vm360, %v358, 0
        %367 = vmatprep.subr.mxu0 0.0
        %368 = vmatpush1.xpose.msra.mxu0 %v365
        %369 = vmatprep.subr.mxu0 0.0
        %370 = vmatpush1.xpose.msra.mxu0 0.0
        %371 = vmatprep.subr.mxu0 0.0
        %372 = vmatpush1.xpose.msra.mxu0 0.0
        %373 = vmatprep.subr.mxu0 0.0
        %374 = vmatpush1.xpose.msra.mxu0 0.0
        %375 = vmatprep.subr.mxu0 0.0
        %376 = vmatpush1.xpose.msra.mxu0 0.0
        %377 = vmatprep.subr.mxu0 0.0
        %378 = vmatpush1.xpose.msra.mxu0 0.0
        %379 = vmatprep.subr.mxu0 0.0
        %380 = vmatpush1.xpose.msra.mxu0 0.0
        %381 = vmatprep.subr.mxu0 0.0
        %382 = vmatpush1.xpose.msra.mxu0 0.0
        %383 = vmatprep.subr.mxu0 0.0
        %384 = vmatpush1.xpose.msra.mxu0 0.0
        %385 = vmatprep.subr.mxu0 0.0
        %386 = vmatpush1.xpose.msra.mxu0 0.0
        %387 = vmatprep.subr.mxu0 0.0
        %388 = vmatpush1.xpose.msra.mxu0 0.0
        %389 = vmatprep.subr.mxu0 0.0
        %390 = vmatpush1.xpose.msra.mxu0 0.0
        %391 = vmatprep.subr.mxu0 0.0
        %392 = vmatpush1.xpose.msra.mxu0 0.0
        %393 = vmatprep.subr.mxu0 0.0
        %394 = vmatpush1.xpose.msra.mxu0 0.0
        %395 = vmatprep.subr.mxu0 0.0
        %396 = vmatpush1.xpose.msra.mxu0 0.0
        %397 = vmatprep.subr.mxu0 0.0
        %398 = vmatpush1.xpose.msra.mxu0 0.0
        %399 = vmatprep.subr.mxu0 0.0
        %400 = vmatpush1.xpose.msra.mxu0 0.0
        %401 = vmatprep.subr.mxu0 0.0
        %402 = vmatpush1.xpose.msra.mxu0 0.0
        %403 = vmatprep.subr.mxu0 0.0
        %404 = vmatpush1.xpose.msra.mxu0 0.0
        %405 = vmatprep.subr.mxu0 0.0
        %406 = vmatpush1.xpose.msra.mxu0 0.0
        %407 = vmatprep.subr.mxu0 0.0
        %408 = vmatpush1.xpose.msra.mxu0 0.0
        %409 = vmatprep.subr.mxu0 0.0
        %410 = vmatpush1.xpose.msra.mxu0 0.0
        %411 = vmatprep.subr.mxu0 0.0
        %412 = vmatpush1.xpose.msra.mxu0 0.0
        %413 = vmatprep.subr.mxu0 0.0
        %414 = vmatpush1.xpose.msra.mxu0 0.0
        %415 = vmatprep.subr.mxu0 0.0
        %416 = vmatpush1.xpose.msra.mxu0 0.0
        %417 = vmatprep.subr.mxu0 0.0
        %418 = vmatpush1.xpose.msra.mxu0 0.0
        %419 = vmatprep.subr.mxu0 0.0
        %420 = vmatpush1.xpose.msra.mxu0 0.0
        %421 = vmatprep.subr.mxu0 0.0
        %422 = vmatpush1.xpose.msra.mxu0 0.0
        %423 = vmatprep.subr.mxu0 0.0
        %424 = vmatpush1.xpose.msra.mxu0 0.0
        %425 = vmatprep.subr.mxu0 0.0
        %426 = vmatpush1.xpose.msra.mxu0 0.0
        %427 = vmatprep.subr.mxu0 0.0
        %428 = vmatpush1.xpose.msra.mxu0 0.0
        %429 = vmatprep.subr.mxu0 0.0
        %430 = vmatpush1.xpose.msra.mxu0 0.0
        %431 = vmatprep.mubr.f32.mxu0 0.0
        %432 = vmatmul.mubr.f32.gmra.mrb[0].mxu0 %v362
        %v433 = vpop.f32.mrb[0].mxu0
        %v434 = vadd.f32 0.0, %v433
        %v435 = vpop.f32.mrb[0].mxu0
        %436 = vdwg.mxu0
        %v437 = vsel %vm356, %v434, -1e+20
        %v438 = vmul.f32 %v437, 0.17677669
        %v439 = vld [vmem:[#allocation2] sm:$0xff]
        %v440 = vsel %vm360, %v438, -inf
        %441 = vmax.xlane.f32.xlu0 %v440
        %v442 = vpop.xlane.xlu0 %441
        %v443 = vmax.f32 %v439, %v442
        %v444 = vsub.f32 %v439, %v443
        %v445 = vmul.f32 %v444, 1.442695
        %v446 = vpow.pop %v445
        %448 = vset.pattern.permute.xlu0 0
        %449 = vperm.xlu0 %448, %v443
        %v450 = vpop.permute.xlu0 %449
        %v452 = vsub.f32 %v438, %v450
        %v453 = vmul.f32 %v452, 1.442695
        %v454 = vpow.pop %v453
        %v455 = vld [vmem:[#allocation3] sm:$0xff]
        %v456 = vmul.f32 %v446, %v455
        %v457 = vsel %vm360, %v454, 0.0
        %458 = vadd.xlane.f32.xlu0 %v457
        %v459 = vpop.xlane.xlu0 %458
        %v460 = vadd.f32 %v456, %v459
        %vm461 = vcmask 7168
        %462 = vst.msk [vmem:[#allocation3] sm:$0xff] %vm461, %v460
        %v463 = vld [vmem:[#allocation4] sm:$0xff]
        %465 = vset.pattern.permute.xlu0 0
        %466 = vperm.xlu0 %465, %v446
        %v467 = vpop.permute.xlu0 %466
        %v469 = vmul.f32 %v467, %v463
        %v471 = vsel %vm360, %v454, 0
        %473 = vmatprep.subr.mxu0 0.0
        %474 = vmatpush1.msra.mxu0 %v359
        %475 = vmatprep.subr.mxu0 0.0
        %476 = vmatpush1.msra.mxu0 0.0
        %477 = vmatprep.subr.mxu0 0.0
        %478 = vmatpush1.msra.mxu0 0.0
        %479 = vmatprep.subr.mxu0 0.0
        %480 = vmatpush1.msra.mxu0 0.0
        %481 = vmatprep.subr.mxu0 0.0
        %482 = vmatpush1.msra.mxu0 0.0
        %483 = vmatprep.subr.mxu0 0.0
        %484 = vmatpush1.msra.mxu0 0.0
        %485 = vmatprep.subr.mxu0 0.0
        %486 = vmatpush1.msra.mxu0 0.0
        %487 = vmatprep.subr.mxu0 0.0
        %488 = vmatpush1.msra.mxu0 0.0
        %489 = vmatprep.subr.mxu0 0.0
        %490 = vmatpush1.msra.mxu0 0.0
        %491 = vmatprep.subr.mxu0 0.0
        %492 = vmatpush1.msra.mxu0 0.0
        %493 = vmatprep.subr.mxu0 0.0
        %494 = vmatpush1.msra.mxu0 0.0
        %495 = vmatprep.subr.mxu0 0.0
        %496 = vmatpush1.msra.mxu0 0.0
        %497 = vmatprep.subr.mxu0 0.0
        %498 = vmatpush1.msra.mxu0 0.0
        %499 = vmatprep.subr.mxu0 0.0
        %500 = vmatpush1.msra.mxu0 0.0
        %501 = vmatprep.subr.mxu0 0.0
        %502 = vmatpush1.msra.mxu0 0.0
        %503 = vmatprep.subr.mxu0 0.0
        %504 = vmatpush1.msra.mxu0 0.0
        %505 = vmatprep.subr.mxu0 0.0
        %506 = vmatpush1.msra.mxu0 0.0
        %507 = vmatprep.subr.mxu0 0.0
        %508 = vmatpush1.msra.mxu0 0.0
        %509 = vmatprep.subr.mxu0 0.0
        %510 = vmatpush1.msra.mxu0 0.0
        %511 = vmatprep.subr.mxu0 0.0
        %512 = vmatpush1.msra.mxu0 0.0
        %513 = vmatprep.subr.mxu0 0.0
        %514 = vmatpush1.msra.mxu0 0.0
        %515 = vmatprep.subr.mxu0 0.0
        %516 = vmatpush1.msra.mxu0 0.0
        %517 = vmatprep.subr.mxu0 0.0
        %518 = vmatpush1.msra.mxu0 0.0
        %519 = vmatprep.subr.mxu0 0.0
        %520 = vmatpush1.msra.mxu0 0.0
        %521 = vmatprep.subr.mxu0 0.0
        %522 = vmatpush1.msra.mxu0 0.0
        %523 = vmatprep.subr.mxu0 0.0
        %524 = vmatpush1.msra.mxu0 0.0
        %525 = vmatprep.subr.mxu0 0.0
        %526 = vmatpush1.msra.mxu0 0.0
        %527 = vmatprep.subr.mxu0 0.0
        %528 = vmatpush1.msra.mxu0 0.0
        %529 = vmatprep.subr.mxu0 0.0
        %530 = vmatpush1.msra.mxu0 0.0
        %531 = vmatprep.subr.mxu0 0.0
        %532 = vmatpush1.msra.mxu0 0.0
        %533 = vmatprep.subr.mxu0 0.0
        %534 = vmatpush1.msra.mxu0 0.0
        %535 = vmatprep.subr.mxu0 0.0
        %536 = vmatpush1.msra.mxu0 0.0
        %537 = vmatprep.mubr.f32.mxu0 0.0
        %538 = vmatmul.mubr.f32.gmra.mrb[0].mxu0 %v471
        %v539 = vpop.f32.mrb[0].mxu0
        %v540 = vadd.f32 0.0, %v539
        %v541 = vpop.f32.mrb[0].mxu0
        %542 = vdwg.mxu0
        %v543 = vadd.f32 %v469, %v540
        %544 = vst.msk [vmem:[#allocation4] sm:$0xff] %vm360, %v543
        %545 = vst.msk [vmem:[#allocation2] sm:$0xff] %vm461, %v443
        %v546 = vld [vmem:[%s284] sm:$0xff]
        %v547 = vld [vmem:[%s291] sm:$0xff]
        %v548 = vld [vmem:[%s298] sm:$0xff]
        %550 = vrot.lane.b32.xlu0 %v546, 120
        %v551 = vpop.permute.xlu0 %550
        %553 = vrot.lane.b32.xlu0 %v547, 120
        %v554 = vpop.permute.xlu0 %553
        %v555 = vsel %vm360, %v551, 0
        %v557 = vsel %vm360, %v554, 0
        %559 = vmatprep.subr.mxu0 0.0
        %560 = vmatpush1.xpose.msra.mxu0 %v557
        %561 = vmatprep.subr.mxu0 0.0
        %562 = vmatpush1.xpose.msra.mxu0 0.0
        %563 = vmatprep.subr.mxu0 0.0
        %564 = vmatpush1.xpose.msra.mxu0 0.0
        %565 = vmatprep.subr.mxu0 0.0
        %566 = vmatpush1.xpose.msra.mxu0 0.0
        %567 = vmatprep.subr.mxu0 0.0
        %568 = vmatpush1.xpose.msra.mxu0 0.0
        %569 = vmatprep.subr.mxu0 0.0
        %570 = vmatpush1.xpose.msra.mxu0 0.0
        %571 = vmatprep.subr.mxu0 0.0
        %572 = vmatpush1.xpose.msra.mxu0 0.0
        %573 = vmatprep.subr.mxu0 0.0
        %574 = vmatpush1.xpose.msra.mxu0 0.0
        %575 = vmatprep.subr.mxu0 0.0
        %576 = vmatpush1.xpose.msra.mxu0 0.0
        %577 = vmatprep.subr.mxu0 0.0
        %578 = vmatpush1.xpose.msra.mxu0 0.0
        %579 = vmatprep.subr.mxu0 0.0
        %580 = vmatpush1.xpose.msra.mxu0 0.0
        %581 = vmatprep.subr.mxu0 0.0
        %582 = vmatpush1.xpose.msra.mxu0 0.0
        %583 = vmatprep.subr.mxu0 0.0
        %584 = vmatpush1.xpose.msra.mxu0 0.0
        %585 = vmatprep.subr.mxu0 0.0
        %586 = vmatpush1.xpose.msra.mxu0 0.0
        %587 = vmatprep.subr.mxu0 0.0
        %588 = vmatpush1.xpose.msra.mxu0 0.0
        %589 = vmatprep.subr.mxu0 0.0
        %590 = vmatpush1.xpose.msra.mxu0 0.0
        %591 = vmatprep.subr.mxu0 0.0
        %592 = vmatpush1.xpose.msra.mxu0 0.0
        %593 = vmatprep.subr.mxu0 0.0
        %594 = vmatpush1.xpose.msra.mxu0 0.0
        %595 = vmatprep.subr.mxu0 0.0
        %596 = vmatpush1.xpose.msra.mxu0 0.0
        %597 = vmatprep.subr.mxu0 0.0
        %598 = vmatpush1.xpose.msra.mxu0 0.0
        %599 = vmatprep.subr.mxu0 0.0
        %600 = vmatpush1.xpose.msra.mxu0 0.0
        %601 = vmatprep.subr.mxu0 0.0
        %602 = vmatpush1.xpose.msra.mxu0 0.0
        %603 = vmatprep.subr.mxu0 0.0
        %604 = vmatpush1.xpose.msra.mxu0 0.0
        %605 = vmatprep.subr.mxu0 0.0
        %606 = vmatpush1.xpose.msra.mxu0 0.0
        %607 = vmatprep.subr.mxu0 0.0
        %608 = vmatpush1.xpose.msra.mxu0 0.0
        %609 = vmatprep.subr.mxu0 0.0
        %610 = vmatpush1.xpose.msra.mxu0 0.0
        %611 = vmatprep.subr.mxu0 0.0
        %612 = vmatpush1.xpose.msra.mxu0 0.0
        %613 = vmatprep.subr.mxu0 0.0
        %614 = vmatpush1.xpose.msra.mxu0 0.0
        %615 = vmatprep.subr.mxu0 0.0
        %616 = vmatpush1.xpose.msra.mxu0 0.0
        %617 = vmatprep.subr.mxu0 0.0
        %618 = vmatpush1.xpose.msra.mxu0 0.0
        %619 = vmatprep.subr.mxu0 0.0
        %620 = vmatpush1.xpose.msra.mxu0 0.0
        %621 = vmatprep.subr.mxu0 0.0
        %622 = vmatpush1.xpose.msra.mxu0 0.0
        %623 = vmatprep.mubr.f32.mxu0 0.0
        %624 = vmatmul.mubr.f32.gmra.mrb[0].mxu0 %v555
        %v625 = vpop.f32.mrb[0].mxu0
        %v626 = vadd.f32 0.0, %v625
        %v627 = vpop.f32.mrb[0].mxu0
        %628 = vdwg.mxu0
        %v629 = vsel %vm356, %v626, -1e+20
        %v630 = vmul.f32 %v629, 0.17677669
        %s631 = scalar_lea.vmem [#allocation2], 8
        %v632 = vld [vmem:[%s631] sm:$0xff]
        %v633 = vsel %vm360, %v630, -inf
        %634 = vmax.xlane.f32.xlu0 %v633
        %v635 = vpop.xlane.xlu0 %634
        %v636 = vmax.f32 %v632, %v635
        %v637 = vsub.f32 %v632, %v636
        %v638 = vmul.f32 %v637, 1.442695
        %v639 = vpow.pop %v638
        %641 = vset.pattern.permute.xlu0 0
        %642 = vperm.xlu0 %641, %v636
        %v643 = vpop.permute.xlu0 %642
        %v645 = vsub.f32 %v630, %v643
        %v646 = vmul.f32 %v645, 1.442695
        %v647 = vpow.pop %v646
        %s648 = scalar_lea.vmem [#allocation3], 8
        %v649 = vld [vmem:[%s648] sm:$0xff]
        %v650 = vmul.f32 %v639, %v649
        %v651 = vsel %vm360, %v647, 0.0
        %652 = vadd.xlane.f32.xlu0 %v651
        %v653 = vpop.xlane.xlu0 %652
        %v654 = vadd.f32 %v650, %v653
        %655 = vst.msk [vmem:[%s648] sm:$0xff] %vm461, %v654
        %s656 = scalar_lea.vmem [#allocation4], 8
        %v657 = vld [vmem:[%s656] sm:$0xff]
        %659 = vset.pattern.permute.xlu0 0
        %660 = vperm.xlu0 %659, %v639
        %v661 = vpop.permute.xlu0 %660
        %v663 = vmul.f32 %v661, %v657
        %665 = vrot.lane.b32.xlu0 %v548, 120
        %v666 = vpop.permute.xlu0 %665
        %v669 = vsel %vm360, %v647, 0
        %671 = vmatprep.subr.mxu0 0.0
        %672 = vmatpush1.msra.mxu0 %v666
        %673 = vmatprep.subr.mxu0 0.0
        %674 = vmatpush1.msra.mxu0 0.0
        %675 = vmatprep.subr.mxu0 0.0
        %676 = vmatpush1.msra.mxu0 0.0
        %677 = vmatprep.subr.mxu0 0.0
        %678 = vmatpush1.msra.mxu0 0.0
        %679 = vmatprep.subr.mxu0 0.0
        %680 = vmatpush1.msra.mxu0 0.0
        %681 = vmatprep.subr.mxu0 0.0
        %682 = vmatpush1.msra.mxu0 0.0
        %683 = vmatprep.subr.mxu0 0.0
        %684 = vmatpush1.msra.mxu0 0.0
        %685 = vmatprep.subr.mxu0 0.0
        %686 = vmatpush1.msra.mxu0 0.0
        %687 = vmatprep.subr.mxu0 0.0
        %688 = vmatpush1.msra.mxu0 0.0
        %689 = vmatprep.subr.mxu0 0.0
        %690 = vmatpush1.msra.mxu0 0.0
        %691 = vmatprep.subr.mxu0 0.0
        %692 = vmatpush1.msra.mxu0 0.0
        %693 = vmatprep.subr.mxu0 0.0
        %694 = vmatpush1.msra.mxu0 0.0
        %695 = vmatprep.subr.mxu0 0.0
        %696 = vmatpush1.msra.mxu0 0.0
        %697 = vmatprep.subr.mxu0 0.0
        %698 = vmatpush1.msra.mxu0 0.0
        %699 = vmatprep.subr.mxu0 0.0
        %700 = vmatpush1.msra.mxu0 0.0
        %701 = vmatprep.subr.mxu0 0.0
        %702 = vmatpush1.msra.mxu0 0.0
        %703 = vmatprep.subr.mxu0 0.0
        %704 = vmatpush1.msra.mxu0 0.0
        %705 = vmatprep.subr.mxu0 0.0
        %706 = vmatpush1.msra.mxu0 0.0
        %707 = vmatprep.subr.mxu0 0.0
        %708 = vmatpush1.msra.mxu0 0.0
        %709 = vmatprep.subr.mxu0 0.0
        %710 = vmatpush1.msra.mxu0 0.0
        %711 = vmatprep.subr.mxu0 0.0
        %712 = vmatpush1.msra.mxu0 0.0
        %713 = vmatprep.subr.mxu0 0.0
        %714 = vmatpush1.msra.mxu0 0.0
        %715 = vmatprep.subr.mxu0 0.0
        %716 = vmatpush1.msra.mxu0 0.0
        %717 = vmatprep.subr.mxu0 0.0
        %718 = vmatpush1.msra.mxu0 0.0
        %719 = vmatprep.subr.mxu0 0.0
        %720 = vmatpush1.msra.mxu0 0.0
        %721 = vmatprep.subr.mxu0 0.0
        %722 = vmatpush1.msra.mxu0 0.0
        %723 = vmatprep.subr.mxu0 0.0
        %724 = vmatpush1.msra.mxu0 0.0
        %725 = vmatprep.subr.mxu0 0.0
        %726 = vmatpush1.msra.mxu0 0.0
        %727 = vmatprep.subr.mxu0 0.0
        %728 = vmatpush1.msra.mxu0 0.0
        %729 = vmatprep.subr.mxu0 0.0
        %730 = vmatpush1.msra.mxu0 0.0
        %731 = vmatprep.subr.mxu0 0.0
        %732 = vmatpush1.msra.mxu0 0.0
        %733 = vmatprep.subr.mxu0 0.0
        %734 = vmatpush1.msra.mxu0 0.0
        %735 = vmatprep.mubr.f32.mxu0 0.0
        %736 = vmatmul.mubr.f32.gmra.mrb[0].mxu0 %v669
        %v737 = vpop.f32.mrb[0].mxu0
        %v738 = vadd.f32 0.0, %v737
        %v739 = vpop.f32.mrb[0].mxu0
        %740 = vdwg.mxu0
        %v741 = vadd.f32 %v663, %v738
        %742 = vst.msk [vmem:[%s656] sm:$0xff] %vm360, %v741
        %743 = vst.msk [vmem:[%s631] sm:$0xff] %vm461, %v636
        %v744 = vld [vmem:[%s284] sm:$0xff]
        %v745 = vld [vmem:[%s291] sm:$0xff]
        %v746 = vld [vmem:[%s298] sm:$0xff]
        %748 = vrot.lane.b32.xlu0 %v744, 112
        %v749 = vpop.permute.xlu0 %748
        %751 = vrot.lane.b32.xlu0 %v745, 112
        %v752 = vpop.permute.xlu0 %751
        %v753 = vsel %vm360, %v749, 0
        %v755 = vsel %vm360, %v752, 0
        %757 = vmatprep.subr.mxu0 0.0
        %758 = vmatpush1.xpose.msra.mxu0 %v755
        %759 = vmatprep.subr.mxu0 0.0
        %760 = vmatpush1.xpose.msra.mxu0 0.0
        %761 = vmatprep.subr.mxu0 0.0
        %762 = vmatpush1.xpose.msra.mxu0 0.0
        %763 = vmatprep.subr.mxu0 0.0
        %764 = vmatpush1.xpose.msra.mxu0 0.0
        %765 = vmatprep.subr.mxu0 0.0
        %766 = vmatpush1.xpose.msra.mxu0 0.0
        %767 = vmatprep.subr.mxu0 0.0
        %768 = vmatpush1.xpose.msra.mxu0 0.0
        %769 = vmatprep.subr.mxu0 0.0
        %770 = vmatpush1.xpose.msra.mxu0 0.0
        %771 = vmatprep.subr.mxu0 0.0
        %772 = vmatpush1.xpose.msra.mxu0 0.0
        %773 = vmatprep.subr.mxu0 0.0
        %774 = vmatpush1.xpose.msra.mxu0 0.0
        %775 = vmatprep.subr.mxu0 0.0
        %776 = vmatpush1.xpose.msra.mxu0 0.0
        %777 = vmatprep.subr.mxu0 0.0
        %778 = vmatpush1.xpose.msra.mxu0 0.0
        %779 = vmatprep.subr.mxu0 0.0
        %780 = vmatpush1.xpose.msra.mxu0 0.0
        %781 = vmatprep.subr.mxu0 0.0
        %782 = vmatpush1.xpose.msra.mxu0 0.0
        %783 = vmatprep.subr.mxu0 0.0
        %784 = vmatpush1.xpose.msra.mxu0 0.0
        %785 = vmatprep.subr.mxu0 0.0
        %786 = vmatpush1.xpose.msra.mxu0 0.0
        %787 = vmatprep.subr.mxu0 0.0
        %788 = vmatpush1.xpose.msra.mxu0 0.0
        %789 = vmatprep.subr.mxu0 0.0
        %790 = vmatpush1.xpose.msra.mxu0 0.0
        %791 = vmatprep.subr.mxu0 0.0
        %792 = vmatpush1.xpose.msra.mxu0 0.0
        %793 = vmatprep.subr.mxu0 0.0
        %794 = vmatpush1.xpose.msra.mxu0 0.0
        %795 = vmatprep.subr.mxu0 0.0
        %796 = vmatpush1.xpose.msra.mxu0 0.0
        %797 = vmatprep.subr.mxu0 0.0
        %798 = vmatpush1.xpose.msra.mxu0 0.0
        %799 = vmatprep.subr.mxu0 0.0
        %800 = vmatpush1.xpose.msra.mxu0 0.0
        %801 = vmatprep.subr.mxu0 0.0
        %802 = vmatpush1.xpose.msra.mxu0 0.0
        %803 = vmatprep.subr.mxu0 0.0
        %804 = vmatpush1.xpose.msra.mxu0 0.0
        %805 = vmatprep.subr.mxu0 0.0
        %806 = vmatpush1.xpose.msra.mxu0 0.0
        %807 = vmatprep.subr.mxu0 0.0
        %808 = vmatpush1.xpose.msra.mxu0 0.0
        %809 = vmatprep.subr.mxu0 0.0
        %810 = vmatpush1.xpose.msra.mxu0 0.0
        %811 = vmatprep.subr.mxu0 0.0
        %812 = vmatpush1.xpose.msra.mxu0 0.0
        %813 = vmatprep.subr.mxu0 0.0
        %814 = vmatpush1.xpose.msra.mxu0 0.0
        %815 = vmatprep.subr.mxu0 0.0
        %816 = vmatpush1.xpose.msra.mxu0 0.0
        %817 = vmatprep.subr.mxu0 0.0
        %818 = vmatpush1.xpose.msra.mxu0 0.0
        %819 = vmatprep.subr.mxu0 0.0
        %820 = vmatpush1.xpose.msra.mxu0 0.0
        %821 = vmatprep.mubr.f32.mxu0 0.0
        %822 = vmatmul.mubr.f32.gmra.mrb[0].mxu0 %v753
        %v823 = vpop.f32.mrb[0].mxu0
        %v824 = vadd.f32 0.0, %v823
        %v825 = vpop.f32.mrb[0].mxu0
        %826 = vdwg.mxu0
        %v827 = vsel %vm356, %v824, -1e+20
        %v828 = vmul.f32 %v827, 0.17677669
        %s829 = scalar_lea.vmem [#allocation2], 16
        %v830 = vld [vmem:[%s829] sm:$0xff]
        %v831 = vsel %vm360, %v828, -inf
        %832 = vmax.xlane.f32.xlu0 %v831
        %v833 = vpop.xlane.xlu0 %832
        %v834 = vmax.f32 %v830, %v833
        %v835 = vsub.f32 %v830, %v834
        %v836 = vmul.f32 %v835, 1.442695
        %v837 = vpow.pop %v836
        %839 = vset.pattern.permute.xlu0 0
        %840 = vperm.xlu0 %839, %v834
        %v841 = vpop.permute.xlu0 %840
        %v843 = vsub.f32 %v828, %v841
        %v844 = vmul.f32 %v843, 1.442695
        %v845 = vpow.pop %v844
        %s846 = scalar_lea.vmem [#allocation3], 16
        %v847 = vld [vmem:[%s846] sm:$0xff]
        %v848 = vmul.f32 %v837, %v847
        %v849 = vsel %vm360, %v845, 0.0
        %850 = vadd.xlane.f32.xlu0 %v849
        %v851 = vpop.xlane.xlu0 %850
        %v852 = vadd.f32 %v848, %v851
        %853 = vst.msk [vmem:[%s846] sm:$0xff] %vm461, %v852
        %s854 = scalar_lea.vmem [#allocation4], 16
        %v855 = vld [vmem:[%s854] sm:$0xff]
        %857 = vset.pattern.permute.xlu0 0
        %858 = vperm.xlu0 %857, %v837
        %v859 = vpop.permute.xlu0 %858
        %v861 = vmul.f32 %v859, %v855
        %863 = vrot.lane.b32.xlu0 %v746, 112
        %v864 = vpop.permute.xlu0 %863
        %v867 = vsel %vm360, %v845, 0
        %869 = vmatprep.subr.mxu0 0.0
        %870 = vmatpush1.msra.mxu0 %v864
        %871 = vmatprep.subr.mxu0 0.0
        %872 = vmatpush1.msra.mxu0 0.0
        %873 = vmatprep.subr.mxu0 0.0
        %874 = vmatpush1.msra.mxu0 0.0
        %875 = vmatprep.subr.mxu0 0.0
        %876 = vmatpush1.msra.mxu0 0.0
        %877 = vmatprep.subr.mxu0 0.0
        %878 = vmatpush1.msra.mxu0 0.0
        %879 = vmatprep.subr.mxu0 0.0
        %880 = vmatpush1.msra.mxu0 0.0
        %881 = vmatprep.subr.mxu0 0.0
        %882 = vmatpush1.msra.mxu0 0.0
        %883 = vmatprep.subr.mxu0 0.0
        %884 = vmatpush1.msra.mxu0 0.0
        %885 = vmatprep.subr.mxu0 0.0
        %886 = vmatpush1.msra.mxu0 0.0
        %887 = vmatprep.subr.mxu0 0.0
        %888 = vmatpush1.msra.mxu0 0.0
        %889 = vmatprep.subr.mxu0 0.0
        %890 = vmatpush1.msra.mxu0 0.0
        %891 = vmatprep.subr.mxu0 0.0
        %892 = vmatpush1.msra.mxu0 0.0
        %893 = vmatprep.subr.mxu0 0.0
        %894 = vmatpush1.msra.mxu0 0.0
        %895 = vmatprep.subr.mxu0 0.0
        %896 = vmatpush1.msra.mxu0 0.0
        %897 = vmatprep.subr.mxu0 0.0
        %898 = vmatpush1.msra.mxu0 0.0
        %899 = vmatprep.subr.mxu0 0.0
        %900 = vmatpush1.msra.mxu0 0.0
        %901 = vmatprep.subr.mxu0 0.0
        %902 = vmatpush1.msra.mxu0 0.0
        %903 = vmatprep.subr.mxu0 0.0
        %904 = vmatpush1.msra.mxu0 0.0
        %905 = vmatprep.subr.mxu0 0.0
        %906 = vmatpush1.msra.mxu0 0.0
        %907 = vmatprep.subr.mxu0 0.0
        %908 = vmatpush1.msra.mxu0 0.0
        %909 = vmatprep.subr.mxu0 0.0
        %910 = vmatpush1.msra.mxu0 0.0
        %911 = vmatprep.subr.mxu0 0.0
        %912 = vmatpush1.msra.mxu0 0.0
        %913 = vmatprep.subr.mxu0 0.0
        %914 = vmatpush1.msra.mxu0 0.0
        %915 = vmatprep.subr.mxu0 0.0
        %916 = vmatpush1.msra.mxu0 0.0
        %917 = vmatprep.subr.mxu0 0.0
        %918 = vmatpush1.msra.mxu0 0.0
        %919 = vmatprep.subr.mxu0 0.0
        %920 = vmatpush1.msra.mxu0 0.0
        %921 = vmatprep.subr.mxu0 0.0
        %922 = vmatpush1.msra.mxu0 0.0
        %923 = vmatprep.subr.mxu0 0.0
        %924 = vmatpush1.msra.mxu0 0.0
        %925 = vmatprep.subr.mxu0 0.0
        %926 = vmatpush1.msra.mxu0 0.0
        %927 = vmatprep.subr.mxu0 0.0
        %928 = vmatpush1.msra.mxu0 0.0
        %929 = vmatprep.subr.mxu0 0.0
        %930 = vmatpush1.msra.mxu0 0.0
        %931 = vmatprep.subr.mxu0 0.0
        %932 = vmatpush1.msra.mxu0 0.0
        %933 = vmatprep.mubr.f32.mxu0 0.0
        %934 = vmatmul.mubr.f32.gmra.mrb[0].mxu0 %v867
        %v935 = vpop.f32.mrb[0].mxu0
        %v936 = vadd.f32 0.0, %v935
        %v937 = vpop.f32.mrb[0].mxu0
        %938 = vdwg.mxu0
        %v939 = vadd.f32 %v861, %v936
        %940 = vst.msk [vmem:[%s854] sm:$0xff] %vm360, %v939
        %941 = vst.msk [vmem:[%s829] sm:$0xff] %vm461, %v834
        %v942 = vld [vmem:[%s284] sm:$0xff]
        %v943 = vld [vmem:[%s291] sm:$0xff]
        %v944 = vld [vmem:[%s298] sm:$0xff]
        %946 = vrot.lane.b32.xlu0 %v942, 104
        %v947 = vpop.permute.xlu0 %946
        %949 = vrot.lane.b32.xlu0 %v943, 104
        %v950 = vpop.permute.xlu0 %949
        %v951 = vsel %vm360, %v947, 0
        %v953 = vsel %vm360, %v950, 0
        %955 = vmatprep.subr.mxu0 0.0
        %956 = vmatpush1.xpose.msra.mxu0 %v953
        %957 = vmatprep.subr.mxu0 0.0
        %958 = vmatpush1.xpose.msra.mxu0 0.0
        %959 = vmatprep.subr.mxu0 0.0
        %960 = vmatpush1.xpose.msra.mxu0 0.0
        %961 = vmatprep.subr.mxu0 0.0
        %962 = vmatpush1.xpose.msra.mxu0 0.0
        %963 = vmatprep.subr.mxu0 0.0
        %964 = vmatpush1.xpose.msra.mxu0 0.0
        %965 = vmatprep.subr.mxu0 0.0
        %966 = vmatpush1.xpose.msra.mxu0 0.0
        %967 = vmatprep.subr.mxu0 0.0
        %968 = vmatpush1.xpose.msra.mxu0 0.0
        %969 = vmatprep.subr.mxu0 0.0
        %970 = vmatpush1.xpose.msra.mxu0 0.0
        %971 = vmatprep.subr.mxu0 0.0
        %972 = vmatpush1.xpose.msra.mxu0 0.0
        %973 = vmatprep.subr.mxu0 0.0
        %974 = vmatpush1.xpose.msra.mxu0 0.0
        %975 = vmatprep.subr.mxu0 0.0
        %976 = vmatpush1.xpose.msra.mxu0 0.0
        %977 = vmatprep.subr.mxu0 0.0
        %978 = vmatpush1.xpose.msra.mxu0 0.0
        %979 = vmatprep.subr.mxu0 0.0
        %980 = vmatpush1.xpose.msra.mxu0 0.0
        %981 = vmatprep.subr.mxu0 0.0
        %982 = vmatpush1.xpose.msra.mxu0 0.0
        %983 = vmatprep.subr.mxu0 0.0
        %984 = vmatpush1.xpose.msra.mxu0 0.0
        %985 = vmatprep.subr.mxu0 0.0
        %986 = vmatpush1.xpose.msra.mxu0 0.0
        %987 = vmatprep.subr.mxu0 0.0
        %988 = vmatpush1.xpose.msra.mxu0 0.0
        %989 = vmatprep.subr.mxu0 0.0
        %990 = vmatpush1.xpose.msra.mxu0 0.0
        %991 = vmatprep.subr.mxu0 0.0
        %992 = vmatpush1.xpose.msra.mxu0 0.0
        %993 = vmatprep.subr.mxu0 0.0
        %994 = vmatpush1.xpose.msra.mxu0 0.0
        %995 = vmatprep.subr.mxu0 0.0
        %996 = vmatpush1.xpose.msra.mxu0 0.0
        %997 = vmatprep.subr.mxu0 0.0
        %998 = vmatpush1.xpose.msra.mxu0 0.0
        %999 = vmatprep.subr.mxu0 0.0
        %1000 = vmatpush1.xpose.msra.mxu0 0.0
        %1001 = vmatprep.subr.mxu0 0.0
        %1002 = vmatpush1.xpose.msra.mxu0 0.0
        %1003 = vmatprep.subr.mxu0 0.0
        %1004 = vmatpush1.xpose.msra.mxu0 0.0
        %1005 = vmatprep.subr.mxu0 0.0
        %1006 = vmatpush1.xpose.msra.mxu0 0.0
        %1007 = vmatprep.subr.mxu0 0.0
        %1008 = vmatpush1.xpose.msra.mxu0 0.0
        %1009 = vmatprep.subr.mxu0 0.0
        %1010 = vmatpush1.xpose.msra.mxu0 0.0
        %1011 = vmatprep.subr.mxu0 0.0
        %1012 = vmatpush1.xpose.msra.mxu0 0.0
        %1013 = vmatprep.subr.mxu0 0.0
        %1014 = vmatpush1.xpose.msra.mxu0 0.0
        %1015 = vmatprep.subr.mxu0 0.0
        %1016 = vmatpush1.xpose.msra.mxu0 0.0
        %1017 = vmatprep.subr.mxu0 0.0
        %1018 = vmatpush1.xpose.msra.mxu0 0.0
        %1019 = vmatprep.mubr.f32.mxu0 0.0
        %1020 = vmatmul.mubr.f32.gmra.mrb[0].mxu0 %v951
        %v1021 = vpop.f32.mrb[0].mxu0
        %v1022 = vadd.f32 0.0, %v1021
        %v1023 = vpop.f32.mrb[0].mxu0
        %1024 = vdwg.mxu0
        %v1025 = vsel %vm356, %v1022, -1e+20
        %v1026 = vmul.f32 %v1025, 0.17677669
        %s1027 = scalar_lea.vmem [#allocation2], 24
        %v1028 = vld [vmem:[%s1027] sm:$0xff]
        %v1029 = vsel %vm360, %v1026, -inf
        %1030 = vmax.xlane.f32.xlu0 %v1029
        %v1031 = vpop.xlane.xlu0 %1030
        %v1032 = vmax.f32 %v1028, %v1031
        %v1033 = vsub.f32 %v1028, %v1032
        %v1034 = vmul.f32 %v1033, 1.442695
        %v1035 = vpow.pop %v1034
        %1037 = vset.pattern.permute.xlu0 0
        %1038 = vperm.xlu0 %1037, %v1032
        %v1039 = vpop.permute.xlu0 %1038
        %v1041 = vsub.f32 %v1026, %v1039
        %v1042 = vmul.f32 %v1041, 1.442695
        %v1043 = vpow.pop %v1042
        %s1044 = scalar_lea.vmem [#allocation3], 24
        %v1045 = vld [vmem:[%s1044] sm:$0xff]
        %v1046 = vmul.f32 %v1035, %v1045
        %v1047 = vsel %vm360, %v1043, 0.0
        %1048 = vadd.xlane.f32.xlu0 %v1047
        %v1049 = vpop.xlane.xlu0 %1048
        %v1050 = vadd.f32 %v1046, %v1049
        %1051 = vst.msk [vmem:[%s1044] sm:$0xff] %vm461, %v1050
        %s1052 = scalar_lea.vmem [#allocation4], 24
        %v1053 = vld [vmem:[%s1052] sm:$0xff]
        %1055 = vset.pattern.permute.xlu0 0
        %1056 = vperm.xlu0 %1055, %v1035
        %v1057 = vpop.permute.xlu0 %1056
        %v1059 = vmul.f32 %v1057, %v1053
        %1061 = vrot.lane.b32.xlu0 %v944, 104
        %v1062 = vpop.permute.xlu0 %1061
        %v1065 = vsel %vm360, %v1043, 0
        %1067 = vmatprep.subr.mxu0 0.0
        %1068 = vmatpush1.msra.mxu0 %v1062
        %1069 = vmatprep.subr.mxu0 0.0
        %1070 = vmatpush1.msra.mxu0 0.0
        %1071 = vmatprep.subr.mxu0 0.0
        %1072 = vmatpush1.msra.mxu0 0.0
        %1073 = vmatprep.subr.mxu0 0.0
        %1074 = vmatpush1.msra.mxu0 0.0
        %1075 = vmatprep.subr.mxu0 0.0
        %1076 = vmatpush1.msra.mxu0 0.0
        %1077 = vmatprep.subr.mxu0 0.0
        %1078 = vmatpush1.msra.mxu0 0.0
        %1079 = vmatprep.subr.mxu0 0.0
        %1080 = vmatpush1.msra.mxu0 0.0
        %1081 = vmatprep.subr.mxu0 0.0
        %1082 = vmatpush1.msra.mxu0 0.0
        %1083 = vmatprep.subr.mxu0 0.0
        %1084 = vmatpush1.msra.mxu0 0.0
        %1085 = vmatprep.subr.mxu0 0.0
        %1086 = vmatpush1.msra.mxu0 0.0
        %1087 = vmatprep.subr.mxu0 0.0
        %1088 = vmatpush1.msra.mxu0 0.0
        %1089 = vmatprep.subr.mxu0 0.0
        %1090 = vmatpush1.msra.mxu0 0.0
        %1091 = vmatprep.subr.mxu0 0.0
        %1092 = vmatpush1.msra.mxu0 0.0
        %1093 = vmatprep.subr.mxu0 0.0
        %1094 = vmatpush1.msra.mxu0 0.0
        %1095 = vmatprep.subr.mxu0 0.0
        %1096 = vmatpush1.msra.mxu0 0.0
        %1097 = vmatprep.subr.mxu0 0.0
        %1098 = vmatpush1.msra.mxu0 0.0
        %1099 = vmatprep.subr.mxu0 0.0
        %1100 = vmatpush1.msra.mxu0 0.0
        %1101 = vmatprep.subr.mxu0 0.0
        %1102 = vmatpush1.msra.mxu0 0.0
        %1103 = vmatprep.subr.mxu0 0.0
        %1104 = vmatpush1.msra.mxu0 0.0
        %1105 = vmatprep.subr.mxu0 0.0
        %1106 = vmatpush1.msra.mxu0 0.0
        %1107 = vmatprep.subr.mxu0 0.0
        %1108 = vmatpush1.msra.mxu0 0.0
        %1109 = vmatprep.subr.mxu0 0.0
        %1110 = vmatpush1.msra.mxu0 0.0
        %1111 = vmatprep.subr.mxu0 0.0
        %1112 = vmatpush1.msra.mxu0 0.0
        %1113 = vmatprep.subr.mxu0 0.0
        %1114 = vmatpush1.msra.mxu0 0.0
        %1115 = vmatprep.subr.mxu0 0.0
        %1116 = vmatpush1.msra.mxu0 0.0
        %1117 = vmatprep.subr.mxu0 0.0
        %1118 = vmatpush1.msra.mxu0 0.0
        %1119 = vmatprep.subr.mxu0 0.0
        %1120 = vmatpush1.msra.mxu0 0.0
        %1121 = vmatprep.subr.mxu0 0.0
        %1122 = vmatpush1.msra.mxu0 0.0
        %1123 = vmatprep.subr.mxu0 0.0
        %1124 = vmatpush1.msra.mxu0 0.0
        %1125 = vmatprep.subr.mxu0 0.0
        %1126 = vmatpush1.msra.mxu0 0.0
        %1127 = vmatprep.subr.mxu0 0.0
        %1128 = vmatpush1.msra.mxu0 0.0
        %1129 = vmatprep.subr.mxu0 0.0
        %1130 = vmatpush1.msra.mxu0 0.0
        %1131 = vmatprep.mubr.f32.mxu0 0.0
        %1132 = vmatmul.mubr.f32.gmra.mrb[0].mxu0 %v1065
        %v1133 = vpop.f32.mrb[0].mxu0
        %v1134 = vadd.f32 0.0, %v1133
        %v1135 = vpop.f32.mrb[0].mxu0
        %1136 = vdwg.mxu0
        %v1137 = vadd.f32 %v1059, %v1134
        %1138 = vst.msk [vmem:[%s1052] sm:$0xff] %vm360, %v1137
        %1139 = vst.msk [vmem:[%s1027] sm:$0xff] %vm461, %v1032
      $region44: #{transformer_fwd.34} parent=35 // pred_fallthru
        _
      // Predicated region
      $region45: #{transformer_fwd.34} parent=35 // pred_check
        %p1140 = pneg %p312
      $region46: #{transformer_fwd.34} parent=35 // pred_check_branch
        %1142 = sbr.rel (%p1140) target = $region48
      $region47: #{transformer_fwd.34} parent=35 // pred_region
        %v1143 = vld [vmem:[#allocation3] sm:$0xff]
        %v1144 = vrcp.pop %v1143
        %v1145 = vld [vmem:[#allocation4] sm:$0xff]
        %1147 = vset.pattern.permute.xlu0 0
        %1148 = vperm.xlu0 %1147, %v1144
        %v1149 = vpop.permute.xlu0 %1148
        %v1151 = vmul.f32 %v1145, %v1149
        %s1152 = scalar_lea.vmem [#allocation3], 8
        %v1153 = vld [vmem:[%s1152] sm:$0xff]
        %v1154 = vrcp.pop %v1153
        %s1155 = scalar_lea.vmem [#allocation4], 8
        %v1156 = vld [vmem:[%s1155] sm:$0xff]
        %1158 = vset.pattern.permute.xlu0 0
        %1159 = vperm.xlu0 %1158, %v1154
        %v1160 = vpop.permute.xlu0 %1159
        %v1162 = vmul.f32 %v1156, %v1160
        %s1163 = scalar_lea.vmem [#allocation3], 16
        %v1164 = vld [vmem:[%s1163] sm:$0xff]
        %v1165 = vrcp.pop %v1164
        %s1166 = scalar_lea.vmem [#allocation4], 16
        %v1167 = vld [vmem:[%s1166] sm:$0xff]
        %1169 = vset.pattern.permute.xlu0 0
        %1170 = vperm.xlu0 %1169, %v1165
        %v1171 = vpop.permute.xlu0 %1170
        %v1173 = vmul.f32 %v1167, %v1171
        %s1174 = scalar_lea.vmem [#allocation3], 24
        %v1175 = vld [vmem:[%s1174] sm:$0xff]
        %v1176 = vrcp.pop %v1175
        %s1177 = scalar_lea.vmem [#allocation4], 24
        %v1178 = vld [vmem:[%s1177] sm:$0xff]
        %1180 = vset.pattern.permute.xlu0 0
        %1181 = vperm.xlu0 %1180, %v1176
        %v1182 = vpop.permute.xlu0 %1181
        %v1184 = vmul.f32 %v1178, %v1182
        %1186 = vrot.lane.b32.xlu0 %v1162, 8
        %v1187 = vpop.permute.xlu0 %1186
        %1190 = vrot.lane.b32.xlu0 %v1173, 16
        %v1191 = vpop.permute.xlu0 %1190
        %1194 = vrot.lane.b32.xlu0 %v1184, 24
        %v1195 = vpop.permute.xlu0 %1194
        %vm1197 = vcmask 64512
        %v1198 = vsel %vm1197, %v1151, %v1187
        %vm1199 = vcmask 130048
        %v1200 = vsel %vm1199, %v1198, %v1191
        %vm1201 = vcmask 195584
        %v1202 = vsel %vm1201, %v1200, %v1195
        %vm1203 = vcmask 261120
        %1204 = vst.msk [vmem:[%s311] sm:$0xff] %vm1203, %v1202
      $region48: #{transformer_fwd.34} parent=35 // pred_fallthru
        _
      %p1205 = scmp.lt.s32.totalorder %s20, 1
      %s1206 = scalar_select %p1205, %s20, 1
      %p1207 = scmp.lt.s32.totalorder %s21, 0
      %s1208 = scalar_select %p1207, %s21, 0
      %s1209 = sadd.s32 %s1208, %s1206
      %s1210 = smul.addr %s1209, 8
      %s1211 = scalar_lea.vmem %s4, %s1210
      // Predicated region
      $region49: #{transformer_fwd.34} parent=35 // pred_check
        %p1212 = pneg %p166
      $region50: #{transformer_fwd.34} parent=35 // pred_check_branch
        %1214 = sbr.rel (%p1212) target = $region52
      $region51: #{transformer_fwd.34} parent=35 // pred_region
        _
      $region52: #{transformer_fwd.34} parent=35 // pred_fallthru
        _
    $region36: #{transformer_fwd.34} parent=5 // pred_fallthru
      _
    %p1215 = scmp.le.s32.totalorder 2, %s10
    // Predicated region
    $region53: #{transformer_fwd.34} parent=5 // pred_check
      %p1216 = pneg %p1215
    $region54: #{transformer_fwd.34} parent=5 // pred_check_branch
      %1218 = sbr.rel (%p1216) target = $region56
    $region55: #{transformer_fwd.34} parent=5 // pred_region
      %s1219 = ssub.s32 %s10, 2
      // Predicated region
      $region57: #{transformer_fwd.34} parent=55 // pred_check
        %p1220 = pneg %p172
      $region58: #{transformer_fwd.34} parent=55 // pred_check_branch
        %1222 = sbr.rel (%p1220) target = $region60
      $region59: #{transformer_fwd.34} parent=55 // pred_region
        %p1223 = scmp.lt.s32.totalorder %s23, 1
        %s1224 = scalar_select %p1223, %s23, 1
        %p1225 = scmp.lt.s32.totalorder %s24, 0
        %s1226 = scalar_select %p1225, %s24, 0
        %s1227 = sadd.s32 %s1226, %s1224
        %s1228 = smul.addr %s1227, 8
        %s1229 = scalar_lea.vmem %s4, %s1228
      $region60: #{transformer_fwd.34} parent=55 // pred_fallthru
        _
    $region56: #{transformer_fwd.34} parent=5 // pred_fallthru
      _
  $region6: #{transformer_fwd.34} parent=0 // loop_footer
    %s14 = sadd.s32 1, %s10
  $region7: #{transformer_fwd.34} parent=0 // loop_footer_branch
    %9 = sbr.rel target = $region3
  $region8: #{transformer_fwd.34} parent=0 // loop_exit
    _

</llo_original>
